<compile_context>
chip_gen: v5e
topology: v5e:2x2
jax: 0.10.0
libtpu: 0.0.40
codegen_flags: <defaults>
</compile_context>

<pallas_src>
import jax
import jax.numpy as jnp
from jax.experimental import pallas as pl
from jax.experimental.pallas import tpu as pltpu

MODEL_CONFIGURATIONS = {
    "mnist": {
        "filter": [5, 3, 2, 2],
        "feature_dim": [1, 32, 64, 128, 128],
        "stride": [1, 1, 1, 1],
        "padding": [0, 0, 0, 0],
    }
}

_LANES = 128
# Upper bound on rows per grid step at large batch.  At MNIST sizes every
# block is well under any scoped-VMEM limit (worst case ~3 MiB per buffered
# block at tile=1024 on layer 1), so VMEM never binds tile choice.
_TILE_ROWS = 1024

_VMEM_SPEC = pl.BlockSpec(memory_space=pltpu.MemorySpace.VMEM)


def _round_up(x, m):
    return (x + m - 1) // m * m


def _choose_tile(p):
    """Rows per grid step: >=2 steps (dual-TC occupancy on v7x), <=_TILE_ROWS
    rows per step, rounded to 32 sublanes, padding minimized by splitting P
    evenly across steps."""
    steps = max(2, -(-p // _TILE_ROWS))
    tile = _round_up(-(-p // steps), 32)
    return tile, steps * tile


# ----------------------------------------------------------------------------
# Pallas kernels
# ----------------------------------------------------------------------------
def _conv_pool_relu_kernel(x_ref, w_ref, b_ref, o_ref):
    # x: (4, tile, Kd) bf16 pool-window-major im2col patches, w: (Kd, 128)
    # bf16, b: (1, 128) f32.  One MXU matmul over all 4*tile rows (single f32
    # accumulator), then max over the four 2x2 pool-window groups, +bias, ReLU.
    tile, kd = x_ref.shape[1], x_ref.shape[2]
    x = x_ref[...].reshape(4 * tile, kd)        # merge leading dims (layout-free)
    acc = jnp.dot(x, w_ref[...], preferred_element_type=jnp.float32)
    m = jnp.maximum(jnp.maximum(acc[:tile], acc[tile:2 * tile]),
                    jnp.maximum(acc[2 * tile:3 * tile], acc[3 * tile:]))
    o_ref[...] = jnp.maximum(m + b_ref[...], 0.0).astype(o_ref.dtype)


def _rep_dist_kernel(x_ref, w_ref, b_ref, o_ref):
    # Fused layer-3 dense (512->128) + triplet L2 distances.
    # x: (3, B, 512) bf16 = (anchor, positive, negative), w: (512, 128) bf16,
    # b: (1, 128) f32.  Bias cancels in the differences but is kept for
    # fidelity with the module's get_rep.  Dropout(0.2) is eval-mode identity.
    w = w_ref[...]
    b = b_ref[...]
    xr = jnp.dot(x_ref[0], w, preferred_element_type=jnp.float32) + b
    pr = jnp.dot(x_ref[1], w, preferred_element_type=jnp.float32) + b
    nr = jnp.dot(x_ref[2], w, preferred_element_type=jnp.float32) + b
    dxp = xr - pr
    dxn = xr - nr
    o_ref[:, 0:1] = jnp.sqrt(jnp.sum(dxp * dxp, axis=1, keepdims=True))
    o_ref[:, 1:2] = jnp.sqrt(jnp.sum(dxn * dxn, axis=1, keepdims=True))


# ----------------------------------------------------------------------------
# Kernel wrappers (grid / BlockSpec plumbing)
# ----------------------------------------------------------------------------
def conv_pool_relu(patches, w_mat, b_vec):
    # patches: (4, P, Kd) bf16 with Kd % 128 == 0, w_mat: (Kd, 128) bf16,
    # b_vec: (128,) f32  ->  (P, 128) bf16 = relu(maxpool2x2(conv) + b).
    _, P, Kd = patches.shape
    Cp = w_mat.shape[1]
    tile, Ppad = _choose_tile(P)
    if Ppad != P:
        patches = jnp.pad(patches, ((0, 0), (0, Ppad - P), (0, 0)))
    cost = pl.CostEstimate(
        flops=2 * 4 * Ppad * Kd * Cp,
        transcendentals=0,
        bytes_accessed=(4 * Ppad * Kd + Kd * Cp) * 2 + Cp * 4 + Ppad * Cp * 2,
    )
    out = pl.pallas_call(
        _conv_pool_relu_kernel,
        out_shape=jax.ShapeDtypeStruct((Ppad, Cp), jnp.bfloat16),
        grid=(Ppad // tile,),
        in_specs=[
            pl.BlockSpec((4, tile, Kd), lambda i: (0, i, 0)),   # row-tiled patches
            pl.BlockSpec((Kd, Cp), lambda i: (0, 0)),           # resident weights
            pl.BlockSpec((1, Cp), lambda i: (0, 0)),            # resident bias
        ],
        out_specs=pl.BlockSpec((tile, Cp), lambda i: (i, 0)),
        compiler_params=pltpu.CompilerParams(dimension_semantics=("parallel",)),
        cost_estimate=cost,
    )(patches, w_mat, b_vec.reshape(1, Cp))
    return out[:P]


def rep_and_distances(x3, w3, b_vec):
    # x3: (3, B, Kd) bf16, w3: (Kd, 128) bf16, b_vec: (128,) f32
    # -> (B, 2) f32 with columns (pos_distance, neg_distance).
    _, B, _ = x3.shape
    N = w3.shape[1]
    return pl.pallas_call(
        _rep_dist_kernel,
        out_shape=jax.ShapeDtypeStruct((B, 2), jnp.float32),
        in_specs=[_VMEM_SPEC, _VMEM_SPEC, _VMEM_SPEC],
        out_specs=_VMEM_SPEC,
    )(x3, w3, b_vec.reshape(1, N).astype(jnp.float32))


# ----------------------------------------------------------------------------
# Glue (plain JAX): pool-ordered im2col, parameter init, network composition
# ----------------------------------------------------------------------------
def pool_ordered_patches(h, K, cin):
    """h: (N, H, W, C>=cin) -> patches (4, N*Hp*Wp, K*K*cin), pool-window-major.

    Axis 0 enumerates the 2x2 max-pool window position (dy, dx); the conv
    kernel maxes over it, so the un-pooled conv activation never hits HBM.
    The true channel count `cin` is sliced inside each tap expression so the
    128-channel (lane-padded) activation never needs a separate slice copy.
    Patch features are ordered (ky, kx, ci) to match the HWIO weight reshape.
    # TODO(synk): the K*K*cin patch expansion itself is still materialized via
    # HBM by XLA; end-state is in-kernel im2col (memory_space=pl.ANY on the
    # activation + manual loads) since each layer's activation is <1 MiB.
    """
    N, H, W, _ = h.shape
    Ho, Wo = H - K + 1, W - K + 1
    assert Ho % 2 == 0 and Wo % 2 == 0, "MaxPool2d(2,2) needs even conv output"
    Hp, Wp = Ho // 2, Wo // 2
    planes = []
    for dy in (0, 1):
        for dx in (0, 1):
            cols = []
            for ky in range(K):
                for kx in range(K):
                    y0, x0 = dy + ky, dx + kx
                    cols.append(h[:, y0:y0 + 2 * Hp:2, x0:x0 + 2 * Wp:2, :cin])
            p = jnp.stack(cols, axis=3)                  # (N, Hp, Wp, K*K, cin)
            planes.append(p.reshape(N * Hp * Wp, K * K * cin))
    return jnp.stack(planes, axis=0), (N, Hp, Wp)


def init_params(key, model="mnist"):
    # Deterministic synthetic init, PyTorch Conv2d-style U(-1/sqrt(fan_in), +).
    cfg = MODEL_CONFIGURATIONS[model]
    params = []
    for i in range(4):
        key, wk, bk = jax.random.split(key, 3)
        K = cfg["filter"][i]
        cin = cfg["feature_dim"][i]
        cout = cfg["feature_dim"][i + 1]
        bound = 1.0 / (cin * K * K) ** 0.5
        w = jax.random.uniform(wk, (K, K, cin, cout), jnp.float32, -bound, bound)
        b = jax.random.uniform(bk, (cout,), jnp.float32, -bound, bound)
        params.append((w, b))
    return params


def conv_stages(x_nhwc_bf16, params):
    """Layers 0-2: Conv2d -> MaxPool2d(2,2) -> ReLU, each as one fused kernel.

    Returns the lane-dense (N, 2, 2, 128) bf16 activation feeding layer 3.
    """
    h = x_nhwc_bf16
    for i in range(3):
        w, b = params[i]
        K, _, cin, cout = w.shape
        patches, (N, Hp, Wp) = pool_ordered_patches(h, K, cin)   # (4, P, K*K*cin)
        kd = K * K * cin
        kd_pad = _round_up(kd, _LANES)                           # lane-align Kd
        w_mat = jnp.pad(w.reshape(kd, cout).astype(jnp.bfloat16),
                        ((0, kd_pad - kd), (0, _LANES - cout)))
        b_pad = jnp.pad(b.astype(jnp.float32), (0, _LANES - cout))
        if kd_pad != kd:
            patches = jnp.pad(patches, ((0, 0), (0, 0), (0, kd_pad - kd)))
        y = conv_pool_relu(patches, w_mat, b_pad)                # (P, 128) bf16
        # Keep all 128 channels: pad channels are exactly zero (zero weight
        # columns + zero bias + ReLU), the next layer slices :cin per tap.
        h = y.reshape(N, Hp, Wp, _LANES)
    return h


def triplet_forward(params, x, pos_x, neg_x):
    # Inputs are NCHW; transpose/concat directly in bf16 and run all three
    # branches as one batch through the shared conv stack.
    def to_nhwc(t):
        return jnp.transpose(t, (0, 2, 3, 1)).astype(jnp.bfloat16)

    B = x.shape[0]
    batched = jnp.concatenate([to_nhwc(x), to_nhwc(pos_x), to_nhwc(neg_x)], axis=0)
    h = conv_stages(batched, params)                     # (3B, 2, 2, 128) bf16
    # Layer 3: 2x2 conv on a 2x2 input == dense 512->128 matmul (no pool/ReLU),
    # fused with the triplet L2 distances in a single kernel.
    w, b = params[3]
    K, _, cin, cout = w.shape
    kd = K * K * cin
    x3 = h.reshape(3, B, kd)                             # (3, B, 512) bf16
    w3 = w.reshape(kd, cout).astype(jnp.bfloat16)
    d = rep_and_distances(x3, w3, b)                     # (B, 2) f32
    # TODO(synk): Dropout(0.2) is identity in eval/inference mode; no RNG mask.
    return d[:, 0], d[:, 1]


# ----------------------------------------------------------------------------
# Pure-JAX reference (for correctness check only)
# ----------------------------------------------------------------------------
def reference_forward(params, x, pos_x, neg_x):
    def rep(t):
        h = jnp.transpose(t, (0, 2, 3, 1)).astype(jnp.float32)
        for i, (w, b) in enumerate(params):
            h = jax.lax.conv_general_dilated(
                h, w, (1, 1), "VALID",
                dimension_numbers=("NHWC", "HWIO", "NHWC")) + b
            if i != 3:
                h = jax.lax.reduce_window(h, -jnp.inf, jax.lax.max,
                                          (1, 2, 2, 1), (1, 2, 2, 1), "VALID")
                h = jnp.maximum(h, 0.0)
        return h.reshape(h.shape[0], 128)

    xr, pr, nr = rep(x), rep(pos_x), rep(neg_x)
    dp = jnp.sqrt(jnp.sum((xr - pr) ** 2, axis=1))
    dn = jnp.sqrt(jnp.sum((xr - nr) ** 2, axis=1))
    return dp, dn


if __name__ == "__main__":
    key = jax.random.PRNGKey(0)
    kp, kx, kpx, knx = jax.random.split(key, 4)

    params = init_params(kp)

    B = 2
    x = jax.random.normal(kx, (B, 1, 28, 28), jnp.float32)       # NCHW
    pos_x = jax.random.normal(kpx, (B, 1, 28, 28), jnp.float32)  # NCHW
    neg_x = jax.random.normal(knx, (B, 1, 28, 28), jnp.float32)  # NCHW

    fwd = jax.jit(triplet_forward)
    pos_d, neg_d = fwd(params, x, pos_x, neg_x)
    jax.block_until_ready((pos_d, neg_d))

    ref_pos, ref_neg = reference_forward(params, x, pos_x, neg_x)
    assert pos_d.shape == (B,) and neg_d.shape == (B,)
    # bf16 matmul inputs / bf16 activations vs f32 reference -> modest tolerance.
    assert jnp.allclose(pos_d, ref_pos, rtol=3e-2, atol=3e-2), (pos_d, ref_pos)
    assert jnp.allclose(neg_d, ref_neg, rtol=3e-2, atol=3e-2), (neg_d, ref_neg)

    print("KERNEL_OK")
</pallas_src>

<mosaic_0001>
module attributes {stable_mosaic.version = 11 : i64} {
  func.func @_conv_pool_relu_kernel(%arg0: i32, %arg1: memref<4x448x128xbf16, #tpu.memory_space<vmem>>, %arg2: memref<128x128xbf16, #tpu.memory_space<vmem>>, %arg3: memref<1x128xf32, #tpu.memory_space<vmem>>, %arg4: memref<448x128xbf16, #tpu.memory_space<vmem>>) attributes {dimension_semantics = [#tpu.dimension_semantics<parallel>], iteration_bounds = array<i64: 2>, scalar_prefetch = 0 : i64, scratch_operands = 0 : i64, tpu.core_type = #tpu.core_type<tc>, window_params = [{transform_indices = @transform_0, window_bounds = array<i64: 4, 448, 128>}, {pipeline_mode = #tpu.pipeline_mode<synchronous>, transform_indices = @transform_1, window_bounds = array<i64: 128, 128>}, {pipeline_mode = #tpu.pipeline_mode<synchronous>, transform_indices = @transform_2, window_bounds = array<i64: 1, 128>}, {transform_indices = @transform_3, window_bounds = array<i64: 448, 128>}]} {
    %c0 = arith.constant 0 : index
    %c0_0 = arith.constant 0 : index
    %c0_1 = arith.constant 0 : index
    %0 = vector.load %arg1[%c0, %c0_0, %c0_1] : memref<4x448x128xbf16, #tpu.memory_space<vmem>>, vector<4x448x128xbf16>
    %1 = vector.shape_cast %0 : vector<4x448x128xbf16> to vector<1792x128xbf16>
    %c0_2 = arith.constant 0 : index
    %c0_3 = arith.constant 0 : index
    %2 = vector.load %arg2[%c0_2, %c0_3] : memref<128x128xbf16, #tpu.memory_space<vmem>>, vector<128x128xbf16>
    %cst = arith.constant dense<0.000000e+00> : vector<1792x128xf32>
    %3 = tpu.matmul %1, %2, %cst {dimension_numbers = #tpu.dot_dimension_numbers<[1], [0], [0], [1], [0, 0, 1, 1], [], []>} : vector<1792x128xbf16>, vector<128x128xbf16>, vector<1792x128xf32> -> vector<1792x128xf32>
    %4 = vector.extract_strided_slice %3 {offsets = [0, 0], sizes = [448, 128], strides = [1, 1]} : vector<1792x128xf32> to vector<448x128xf32>
    %5 = vector.extract_strided_slice %3 {offsets = [448, 0], sizes = [448, 128], strides = [1, 1]} : vector<1792x128xf32> to vector<448x128xf32>
    %6 = arith.maximumf %4, %5 : vector<448x128xf32>
    %7 = vector.extract_strided_slice %3 {offsets = [896, 0], sizes = [448, 128], strides = [1, 1]} : vector<1792x128xf32> to vector<448x128xf32>
    %8 = vector.extract_strided_slice %3 {offsets = [1344, 0], sizes = [448, 128], strides = [1, 1]} : vector<1792x128xf32> to vector<448x128xf32>
    %9 = arith.maximumf %7, %8 : vector<448x128xf32>
    %10 = arith.maximumf %6, %9 : vector<448x128xf32>
    %c0_4 = arith.constant 0 : index
    %c0_5 = arith.constant 0 : index
    %11 = vector.load %arg3[%c0_4, %c0_5] : memref<1x128xf32, #tpu.memory_space<vmem>>, vector<1x128xf32>
    %12 = vector.broadcast %11 : vector<1x128xf32> to vector<448x128xf32>
    %13 = arith.addf %10, %12 : vector<448x128xf32>
    %cst_6 = arith.constant 0.000000e+00 : f32
    %14 = vector.broadcast %cst_6 : f32 to vector<448x128xf32>
    %15 = arith.maximumf %13, %14 : vector<448x128xf32>
    %16 = arith.truncf %15 : vector<448x128xf32> to vector<448x128xbf16>
    %c0_7 = arith.constant 0 : index
    %c0_8 = arith.constant 0 : index
    %17 = vector.load %arg4[%c0_7, %c0_8] : memref<448x128xbf16, #tpu.memory_space<vmem>>, vector<448x128xbf16>
    tpu.vector_store %arg4[%c0_7, %c0_8], %16 {strides = array<i32>} : memref<448x128xbf16, #tpu.memory_space<vmem>>, vector<448x128xbf16>,
    return
  }
  func.func @transform_0(%arg0: i32) -> (i32, i32, i32) {
    %c0_i32 = arith.constant 0 : i32
    %c0_i32_0 = arith.constant 0 : i32
    %c0_i32_1 = arith.constant 0 : i32
    return %c0_i32, %arg0, %c0_i32_0 : i32, i32, i32
  }
  func.func @transform_1(%arg0: i32) -> (i32, i32) {
    %c0_i32 = arith.constant 0 : i32
    %c0_i32_0 = arith.constant 0 : i32
    %c0_i32_1 = arith.constant 0 : i32
    return %c0_i32, %c0_i32_0 : i32, i32
  }
  func.func @transform_2(%arg0: i32) -> (i32, i32) {
    %c0_i32 = arith.constant 0 : i32
    %c0_i32_0 = arith.constant 0 : i32
    %c0_i32_1 = arith.constant 0 : i32
    return %c0_i32, %c0_i32_0 : i32, i32
  }
  func.func @transform_3(%arg0: i32) -> (i32, i32) {
    %c0_i32 = arith.constant 0 : i32
    %c0_i32_0 = arith.constant 0 : i32
    return %arg0, %c0_i32 : i32, i32
  }
}

module attributes {stable_mosaic.version = 11 : i64} {
  func.func @_conv_pool_relu_kernel(%arg0: i32, %arg1: memref<4x96x384xbf16, #tpu.memory_space<vmem>>, %arg2: memref<384x128xbf16, #tpu.memory_space<vmem>>, %arg3: memref<1x128xf32, #tpu.memory_space<vmem>>, %arg4: memref<96x128xbf16, #tpu.memory_space<vmem>>) attributes {dimension_semantics = [#tpu.dimension_semantics<parallel>], iteration_bounds = array<i64: 2>, scalar_prefetch = 0 : i64, scratch_operands = 0 : i64, tpu.core_type = #tpu.core_type<tc>, window_params = [{transform_indices = @transform_0, window_bounds = array<i64: 4, 96, 384>}, {pipeline_mode = #tpu.pipeline_mode<synchronous>, transform_indices = @transform_1, window_bounds = array<i64: 384, 128>}, {pipeline_mode = #tpu.pipeline_mode<synchronous>, transform_indices = @transform_2, window_bounds = array<i64: 1, 128>}, {transform_indices = @transform_3, window_bounds = array<i64: 96, 128>}]} {
    %c0 = arith.constant 0 : index
    %c0_0 = arith.constant 0 : index
    %c0_1 = arith.constant 0 : index
    %0 = vector.load %arg1[%c0, %c0_0, %c0_1] : memref<4x96x384xbf16, #tpu.memory_space<vmem>>, vector<4x96x384xbf16>
    %1 = vector.shape_cast %0 : vector<4x96x384xbf16> to vector<384x384xbf16>
    %c0_2 = arith.constant 0 : index
    %c0_3 = arith.constant 0 : index
    %2 = vector.load %arg2[%c0_2, %c0_3] : memref<384x128xbf16, #tpu.memory_space<vmem>>, vector<384x128xbf16>
    %cst = arith.constant dense<0.000000e+00> : vector<384x128xf32>
    %3 = tpu.matmul %1, %2, %cst {dimension_numbers = #tpu.dot_dimension_numbers<[1], [0], [0], [1], [0, 0, 1, 1], [], []>} : vector<384x384xbf16>, vector<384x128xbf16>, vector<384x128xf32> -> vector<384x128xf32>
    %4 = vector.extract_strided_slice %3 {offsets = [0, 0], sizes = [96, 128], strides = [1, 1]} : vector<384x128xf32> to vector<96x128xf32>
    %5 = vector.extract_strided_slice %3 {offsets = [96, 0], sizes = [96, 128], strides = [1, 1]} : vector<384x128xf32> to vector<96x128xf32>
    %6 = arith.maximumf %4, %5 : vector<96x128xf32>
    %7 = vector.extract_strided_slice %3 {offsets = [192, 0], sizes = [96, 128], strides = [1, 1]} : vector<384x128xf32> to vector<96x128xf32>
    %8 = vector.extract_strided_slice %3 {offsets = [288, 0], sizes = [96, 128], strides = [1, 1]} : vector<384x128xf32> to vector<96x128xf32>
    %9 = arith.maximumf %7, %8 : vector<96x128xf32>
    %10 = arith.maximumf %6, %9 : vector<96x128xf32>
    %c0_4 = arith.constant 0 : index
    %c0_5 = arith.constant 0 : index
    %11 = vector.load %arg3[%c0_4, %c0_5] : memref<1x128xf32, #tpu.memory_space<vmem>>, vector<1x128xf32>
    %12 = vector.broadcast %11 : vector<1x128xf32> to vector<96x128xf32>
    %13 = arith.addf %10, %12 : vector<96x128xf32>
    %cst_6 = arith.constant 0.000000e+00 : f32
    %14 = vector.broadcast %cst_6 : f32 to vector<96x128xf32>
    %15 = arith.maximumf %13, %14 : vector<96x128xf32>
    %16 = arith.truncf %15 : vector<96x128xf32> to vector<96x128xbf16>
    %c0_7 = arith.constant 0 : index
    %c0_8 = arith.constant 0 : index
    %17 = vector.load %arg4[%c0_7, %c0_8] : memref<96x128xbf16, #tpu.memory_space<vmem>>, vector<96x128xbf16>
    tpu.vector_store %arg4[%c0_7, %c0_8], %16 {strides = array<i32>} : memref<96x128xbf16, #tpu.memory_space<vmem>>, vector<96x128xbf16>,
    return
  }
  func.func @transform_0(%arg0: i32) -> (i32, i32, i32) {
    %c0_i32 = arith.constant 0 : i32
    %c0_i32_0 = arith.constant 0 : i32
    %c0_i32_1 = arith.constant 0 : i32
    return %c0_i32, %arg0, %c0_i32_0 : i32, i32, i32
  }
  func.func @transform_1(%arg0: i32) -> (i32, i32) {
    %c0_i32 = arith.constant 0 : i32
    %c0_i32_0 = arith.constant 0 : i32
    %c0_i32_1 = arith.constant 0 : i32
    return %c0_i32, %c0_i32_0 : i32, i32
  }
  func.func @transform_2(%arg0: i32) -> (i32, i32) {
    %c0_i32 = arith.constant 0 : i32
    %c0_i32_0 = arith.constant 0 : i32
    %c0_i32_1 = arith.constant 0 : i32
    return %c0_i32, %c0_i32_0 : i32, i32
  }
  func.func @transform_3(%arg0: i32) -> (i32, i32) {
    %c0_i32 = arith.constant 0 : i32
    %c0_i32_0 = arith.constant 0 : i32
    return %arg0, %c0_i32 : i32, i32
  }
}

module attributes {stable_mosaic.version = 11 : i64} {
  func.func @_conv_pool_relu_kernel(%arg0: i32, %arg1: memref<4x32x256xbf16, #tpu.memory_space<vmem>>, %arg2: memref<256x128xbf16, #tpu.memory_space<vmem>>, %arg3: memref<1x128xf32, #tpu.memory_space<vmem>>, %arg4: memref<32x128xbf16, #tpu.memory_space<vmem>>) attributes {dimension_semantics = [#tpu.dimension_semantics<parallel>], iteration_bounds = array<i64: 2>, scalar_prefetch = 0 : i64, scratch_operands = 0 : i64, tpu.core_type = #tpu.core_type<tc>, window_params = [{transform_indices = @transform_0, window_bounds = array<i64: 4, 32, 256>}, {pipeline_mode = #tpu.pipeline_mode<synchronous>, transform_indices = @transform_1, window_bounds = array<i64: 256, 128>}, {pipeline_mode = #tpu.pipeline_mode<synchronous>, transform_indices = @transform_2, window_bounds = array<i64: 1, 128>}, {transform_indices = @transform_3, window_bounds = array<i64: 32, 128>}]} {
    %c0 = arith.constant 0 : index
    %c0_0 = arith.constant 0 : index
    %c0_1 = arith.constant 0 : index
    %0 = vector.load %arg1[%c0, %c0_0, %c0_1] : memref<4x32x256xbf16, #tpu.memory_space<vmem>>, vector<4x32x256xbf16>
    %1 = vector.shape_cast %0 : vector<4x32x256xbf16> to vector<128x256xbf16>
    %c0_2 = arith.constant 0 : index
    %c0_3 = arith.constant 0 : index
    %2 = vector.load %arg2[%c0_2, %c0_3] : memref<256x128xbf16, #tpu.memory_space<vmem>>, vector<256x128xbf16>
    %cst = arith.constant dense<0.000000e+00> : vector<128x128xf32>
    %3 = tpu.matmul %1, %2, %cst {dimension_numbers = #tpu.dot_dimension_numbers<[1], [0], [0], [1], [0, 0, 1, 1], [], []>} : vector<128x256xbf16>, vector<256x128xbf16>, vector<128x128xf32> -> vector<128x128xf32>
    %4 = vector.extract_strided_slice %3 {offsets = [0, 0], sizes = [32, 128], strides = [1, 1]} : vector<128x128xf32> to vector<32x128xf32>
    %5 = vector.extract_strided_slice %3 {offsets = [32, 0], sizes = [32, 128], strides = [1, 1]} : vector<128x128xf32> to vector<32x128xf32>
    %6 = arith.maximumf %4, %5 : vector<32x128xf32>
    %7 = vector.extract_strided_slice %3 {offsets = [64, 0], sizes = [32, 128], strides = [1, 1]} : vector<128x128xf32> to vector<32x128xf32>
    %8 = vector.extract_strided_slice %3 {offsets = [96, 0], sizes = [32, 128], strides = [1, 1]} : vector<128x128xf32> to vector<32x128xf32>
    %9 = arith.maximumf %7, %8 : vector<32x128xf32>
    %10 = arith.maximumf %6, %9 : vector<32x128xf32>
    %c0_4 = arith.constant 0 : index
    %c0_5 = arith.constant 0 : index
    %11 = vector.load %arg3[%c0_4, %c0_5] : memref<1x128xf32, #tpu.memory_space<vmem>>, vector<1x128xf32>
    %12 = vector.broadcast %11 : vector<1x128xf32> to vector<32x128xf32>
    %13 = arith.addf %10, %12 : vector<32x128xf32>
    %cst_6 = arith.constant 0.000000e+00 : f32
    %14 = vector.broadcast %cst_6 : f32 to vector<32x128xf32>
    %15 = arith.maximumf %13, %14 : vector<32x128xf32>
    %16 = arith.truncf %15 : vector<32x128xf32> to vector<32x128xbf16>
    %c0_7 = arith.constant 0 : index
    %c0_8 = arith.constant 0 : index
    %17 = vector.load %arg4[%c0_7, %c0_8] : memref<32x128xbf16, #tpu.memory_space<vmem>>, vector<32x128xbf16>
    tpu.vector_store %arg4[%c0_7, %c0_8], %16 {strides = array<i32>} : memref<32x128xbf16, #tpu.memory_space<vmem>>, vector<32x128xbf16>,
    return
  }
  func.func @transform_0(%arg0: i32) -> (i32, i32, i32) {
    %c0_i32 = arith.constant 0 : i32
    %c0_i32_0 = arith.constant 0 : i32
    %c0_i32_1 = arith.constant 0 : i32
    return %c0_i32, %arg0, %c0_i32_0 : i32, i32, i32
  }
  func.func @transform_1(%arg0: i32) -> (i32, i32) {
    %c0_i32 = arith.constant 0 : i32
    %c0_i32_0 = arith.constant 0 : i32
    %c0_i32_1 = arith.constant 0 : i32
    return %c0_i32, %c0_i32_0 : i32, i32
  }
  func.func @transform_2(%arg0: i32) -> (i32, i32) {
    %c0_i32 = arith.constant 0 : i32
    %c0_i32_0 = arith.constant 0 : i32
    %c0_i32_1 = arith.constant 0 : i32
    return %c0_i32, %c0_i32_0 : i32, i32
  }
  func.func @transform_3(%arg0: i32) -> (i32, i32) {
    %c0_i32 = arith.constant 0 : i32
    %c0_i32_0 = arith.constant 0 : i32
    return %arg0, %c0_i32 : i32, i32
  }
}

module attributes {stable_mosaic.version = 11 : i64} {
  func.func @_rep_dist_kernel(%arg0: memref<3x2x512xbf16, #tpu.memory_space<vmem>>, %arg1: memref<512x128xbf16, #tpu.memory_space<vmem>>, %arg2: memref<1x128xf32, #tpu.memory_space<vmem>>, %arg3: memref<2x2xf32, #tpu.memory_space<vmem>>) attributes {dimension_semantics = [], scalar_prefetch = 0 : i64, scratch_operands = 0 : i64, tpu.core_type = #tpu.core_type<tc>} {
    %c0 = arith.constant 0 : index
    %c0_0 = arith.constant 0 : index
    %0 = vector.load %arg1[%c0, %c0_0] : memref<512x128xbf16, #tpu.memory_space<vmem>>, vector<512x128xbf16>
    %c0_1 = arith.constant 0 : index
    %c0_2 = arith.constant 0 : index
    %1 = vector.load %arg2[%c0_1, %c0_2] : memref<1x128xf32, #tpu.memory_space<vmem>>, vector<1x128xf32>
    %c0_3 = arith.constant 0 : index
    %c0_4 = arith.constant 0 : index
    %c0_5 = arith.constant 0 : index
    %2 = vector.load %arg0[%c0_3, %c0_4, %c0_5] : memref<3x2x512xbf16, #tpu.memory_space<vmem>>, vector<1x2x512xbf16>
    %3 = vector.shape_cast %2 : vector<1x2x512xbf16> to vector<2x512xbf16>
    %cst = arith.constant dense<0.000000e+00> : vector<2x128xf32>
    %4 = tpu.matmul %3, %0, %cst {dimension_numbers = #tpu.dot_dimension_numbers<[1], [0], [0], [1], [0, 0, 1, 1], [], []>} : vector<2x512xbf16>, vector<512x128xbf16>, vector<2x128xf32> -> vector<2x128xf32>
    %5 = vector.broadcast %1 : vector<1x128xf32> to vector<2x128xf32>
    %6 = arith.addf %4, %5 : vector<2x128xf32>
    %c1 = arith.constant 1 : index
    %c0_6 = arith.constant 0 : index
    %c0_7 = arith.constant 0 : index
    %7 = vector.load %arg0[%c1, %c0_6, %c0_7] : memref<3x2x512xbf16, #tpu.memory_space<vmem>>, vector<1x2x512xbf16>
    %8 = vector.shape_cast %7 : vector<1x2x512xbf16> to vector<2x512xbf16>
    %cst_8 = arith.constant dense<0.000000e+00> : vector<2x128xf32>
    %9 = tpu.matmul %8, %0, %cst_8 {dimension_numbers = #tpu.dot_dimension_numbers<[1], [0], [0], [1], [0, 0, 1, 1], [], []>} : vector<2x512xbf16>, vector<512x128xbf16>, vector<2x128xf32> -> vector<2x128xf32>
    %10 = vector.broadcast %1 : vector<1x128xf32> to vector<2x128xf32>
    %11 = arith.addf %9, %10 : vector<2x128xf32>
    %c2 = arith.constant 2 : index
    %c0_9 = arith.constant 0 : index
    %c0_10 = arith.constant 0 : index
    %12 = vector.load %arg0[%c2, %c0_9, %c0_10] : memref<3x2x512xbf16, #tpu.memory_space<vmem>>, vector<1x2x512xbf16>
    %13 = vector.shape_cast %12 : vector<1x2x512xbf16> to vector<2x512xbf16>
    %cst_11 = arith.constant dense<0.000000e+00> : vector<2x128xf32>
    %14 = tpu.matmul %13, %0, %cst_11 {dimension_numbers = #tpu.dot_dimension_numbers<[1], [0], [0], [1], [0, 0, 1, 1], [], []>} : vector<2x512xbf16>, vector<512x128xbf16>, vector<2x128xf32> -> vector<2x128xf32>
    %15 = vector.broadcast %1 : vector<1x128xf32> to vector<2x128xf32>
    %16 = arith.addf %14, %15 : vector<2x128xf32>
    %17 = arith.subf %6, %11 : vector<2x128xf32>
    %18 = arith.subf %6, %16 : vector<2x128xf32>
    %19 = arith.mulf %17, %17 : vector<2x128xf32>
    %cst_12 = arith.constant dense<0.000000e+00> : vector<2xf32>
    %20 = vector.multi_reduction <add>, %19, %cst_12 [1] : vector<2x128xf32> to vector<2xf32>
    %21 = vector.shape_cast %20 : vector<2xf32> to vector<2x1xf32>
    %22 = math.sqrt %21 : vector<2x1xf32>
    %c0_13 = arith.constant 0 : index
    %c0_14 = arith.constant 0 : index
    %23 = vector.load %arg3[%c0_13, %c0_14] : memref<2x2xf32, #tpu.memory_space<vmem>>, vector<2x1xf32>
    tpu.vector_store %arg3[%c0_13, %c0_14], %22 {strides = array<i32>} : memref<2x2xf32, #tpu.memory_space<vmem>>, vector<2x1xf32>,
    %24 = arith.mulf %18, %18 : vector<2x128xf32>
    %cst_15 = arith.constant dense<0.000000e+00> : vector<2xf32>
    %25 = vector.multi_reduction <add>, %24, %cst_15 [1] : vector<2x128xf32> to vector<2xf32>
    %26 = vector.shape_cast %25 : vector<2xf32> to vector<2x1xf32>
    %27 = math.sqrt %26 : vector<2x1xf32>
    %c0_16 = arith.constant 0 : index
    %c1_17 = arith.constant 1 : index
    %28 = vector.load %arg3[%c0_16, %c1_17] : memref<2x2xf32, #tpu.memory_space<vmem>>, vector<2x1xf32>
    tpu.vector_store %arg3[%c0_16, %c1_17], %27 {strides = array<i32>} : memref<2x2xf32, #tpu.memory_space<vmem>>, vector<2x1xf32>,
    return
  }
}

</mosaic_0001>

<llo_original>
// kernel: triplet_forward.4
$region0: #{triplet_forward.4}
  #allocation0 [shape = 'u32[]', space=smem, size = 0x4, offset = 0x4, fixed_abs, tag = 'smem constant byte address 0x4 - core index']
  #allocation1 [shape = 'u32[72,128]{1,0:T(1,128)}', space=vmem, size = 0x9000, scoped, tag = 'internal scratch']
  %s0 = inlined_call_operand.vmem [shape: bf16[4,896,128], index: 0, kind: input, shape index: {}]
  %s1 = inlined_call_operand.vmem [shape: bf16[128,128], index: 1, kind: input, shape index: {}]
  %s2 = inlined_call_operand.vmem [shape: f32[1,128], index: 2, kind: input, shape index: {}]
  %s3 = inlined_call_operand.vmem [shape: bf16[896,128], index: 3, kind: output, shape index: {}]
  %s4 = sld [smem:[#allocation0]]
  $region86: #{triplet_forward.4} parent=0
    _
  %s6 = ssub.s32 1, %s4
  %s7 = scalar_select 0, %s6, %s4
  $region1: #{triplet_forward.4} parent=0
    #allocation2 [shape = 'u8[917504]{0}', space=vmem, size = 0xe0000, scoped, tag = 'input window, operand 0']
    loop: start=0, step=1, limit=4
    $region2: #{triplet_forward.4} parent=1 // loop_pre_header
      _
    $region3: #{triplet_forward.4} parent=1 // loop_header
      %s9 = sphi 0, %s13
      %p10 = scmp.ge.s32.totalorder %s9, 4
      %s19 = sphi 0, %s21
      %s22 = sphi 0, %s19
      %s23 = sphi 0, %s22
      %s39 = sphi 0, %s23
      %s43 = sphi 0, %s43
      %s45 = sphi 0, %s43
      %s46 = sphi 0, %s45
      %s60 = sphi 0, %s46
      %s64 = sphi 0, %s64
      %s66 = sphi 0, %s64
      %s67 = sphi 0, %s66
      %s81 = sphi 0, %s67
      %s87 = sphi 0, %s89
      %s90 = sphi 0, %s87
      %s91 = sphi 0, %s90
      %s107 = sphi 0, %s91
    $region4: #{triplet_forward.4} parent=1 // loop_header_branch
      %12 = sbr.rel (%p10) target = $region8
    $region5: #{triplet_forward.4} parent=1 // loop_body
      %s14 = ssub.s32 %s9, 1
      %s15 = ssub.s32 %s9, 2
      %s16 = sadd.s32 %s9, 1
      %s17 = ssub.s32 %s9, %s16
      %p18 = scmp.eq.s32.totalorder %s17, 0
      %s20 = sadd.s32 %s19, 1
      %s21 = scalar_select %p18, %s19, %s20
      %p24 = pneg %p18
      %p25 = scmp.eq.s32.totalorder %s9, 1
      %p26 = por %p24, %p25
      %p27 = scmp.ne.s32.totalorder %s19, %s22
      %p28 = scmp.eq.s32.totalorder %s9, 0
      %p29 = por %p27, %p28
      %p30 = scmp.ne.s32.totalorder %s19, %s22
      %p31 = scmp.eq.s32.totalorder %s14, 1
      %p32 = por %p30, %p31
      %p33 = scmp.ne.s32.totalorder %s22, %s23
      %p34 = scmp.eq.s32.totalorder %s14, 0
      %p35 = por %p33, %p34
      %p36 = scmp.ne.s32.totalorder %s22, %s23
      %p37 = scmp.eq.s32.totalorder %s15, 1
      %p38 = por %p36, %p37
      %p40 = scmp.ne.s32.totalorder %s23, %s39
      %p41 = scmp.eq.s32.totalorder %s15, 0
      %p42 = por %p40, %p41
      %s44 = sadd.s32 %s43, 1
      %p47 = scmp.eq.s32.totalorder %s9, 1
      %p48 = scmp.ne.s32.totalorder %s43, %s45
      %p49 = scmp.eq.s32.totalorder %s9, 0
      %p50 = por %p48, %p49
      %p51 = scmp.ne.s32.totalorder %s43, %s45
      %p52 = scmp.eq.s32.totalorder %s14, 1
      %p53 = por %p51, %p52
      %p54 = scmp.ne.s32.totalorder %s45, %s46
      %p55 = scmp.eq.s32.totalorder %s14, 0
      %p56 = por %p54, %p55
      %p57 = scmp.ne.s32.totalorder %s45, %s46
      %p58 = scmp.eq.s32.totalorder %s15, 1
      %p59 = por %p57, %p58
      %p61 = scmp.ne.s32.totalorder %s46, %s60
      %p62 = scmp.eq.s32.totalorder %s15, 0
      %p63 = por %p61, %p62
      %s65 = sadd.s32 %s64, 1
      %p68 = scmp.eq.s32.totalorder %s9, 1
      %p69 = scmp.ne.s32.totalorder %s64, %s66
      %p70 = scmp.eq.s32.totalorder %s9, 0
      %p71 = por %p69, %p70
      %p72 = scmp.ne.s32.totalorder %s64, %s66
      %p73 = scmp.eq.s32.totalorder %s14, 1
      %p74 = por %p72, %p73
      %p75 = scmp.ne.s32.totalorder %s66, %s67
      %p76 = scmp.eq.s32.totalorder %s14, 0
      %p77 = por %p75, %p76
      %p78 = scmp.ne.s32.totalorder %s66, %s67
      %p79 = scmp.eq.s32.totalorder %s15, 1
      %p80 = por %p78, %p79
      %p82 = scmp.ne.s32.totalorder %s67, %s81
      %p83 = scmp.eq.s32.totalorder %s15, 0
      %p84 = por %p82, %p83
      %s85 = ssub.s32 %s9, %s16
      %p86 = scmp.eq.s32.totalorder %s85, 0
      %s88 = sadd.s32 %s87, 1
      %s89 = scalar_select %p86, %s87, %s88
      %p92 = pneg %p86
      %p93 = scmp.eq.s32.totalorder %s9, 1
      %p94 = por %p92, %p93
      %p95 = scmp.ne.s32.totalorder %s87, %s90
      %p96 = scmp.eq.s32.totalorder %s9, 0
      %p97 = por %p95, %p96
      %p98 = scmp.ne.s32.totalorder %s87, %s90
      %p99 = scmp.eq.s32.totalorder %s14, 1
      %p100 = por %p98, %p99
      %p101 = scmp.ne.s32.totalorder %s90, %s91
      %p102 = scmp.eq.s32.totalorder %s14, 0
      %p103 = por %p101, %p102
      %p104 = scmp.ne.s32.totalorder %s90, %s91
      %p105 = scmp.eq.s32.totalorder %s15, 1
      %p106 = por %p104, %p105
      %p108 = scmp.ne.s32.totalorder %s91, %s107
      %p109 = scmp.eq.s32.totalorder %s15, 0
      %p110 = por %p108, %p109
      %p111 = scmp.le.s32.totalorder 1, %s9
      %p112 = scmp.lt.s32.totalorder %s9, 3
      %p113 = pnand %p111, %p112
      %p114 = pneg %p113
      // Predicated region
      $region9: #{triplet_forward.4} parent=5 // pred_check
        _
      $region10: #{triplet_forward.4} parent=5 // pred_check_branch
        %116 = sbr.rel (%p113) target = $region12
      $region11: #{triplet_forward.4} parent=5 // pred_region
        %s117 = ssub.s32 %s9, 1
        // Predicated region
        $region13: #{triplet_forward.4} parent=11 // pred_check
          %p118 = pneg %p56
        $region14: #{triplet_forward.4} parent=11 // pred_check_branch
          %120 = sbr.rel (%p118) target = $region16
        $region15: #{triplet_forward.4} parent=11 // pred_region
          _
        $region16: #{triplet_forward.4} parent=11 // pred_fallthru
          _
        // Predicated region
        $region17: #{triplet_forward.4} parent=11 // pred_check
          %p121 = pneg %p77
        $region18: #{triplet_forward.4} parent=11 // pred_check_branch
          %123 = sbr.rel (%p121) target = $region20
        $region19: #{triplet_forward.4} parent=11 // pred_region
          _
        $region20: #{triplet_forward.4} parent=11 // pred_fallthru
          _
      $region12: #{triplet_forward.4} parent=5 // pred_fallthru
        _
      %p124 = scmp.lt.s32.totalorder %s9, 2
      // Predicated region
      $region21: #{triplet_forward.4} parent=5 // pred_check
        %p125 = pneg %p124
      $region22: #{triplet_forward.4} parent=5 // pred_check_branch
        %127 = sbr.rel (%p125) target = $region24
      $region23: #{triplet_forward.4} parent=5 // pred_region
        // Predicated region
        $region25: #{triplet_forward.4} parent=23 // pred_check
          %p128 = pneg %p29
        $region26: #{triplet_forward.4} parent=23 // pred_check_branch
          %130 = sbr.rel (%p128) target = $region28
        $region27: #{triplet_forward.4} parent=23 // pred_region
          %s131 = sand.u32 %s19, 1
          %s132 = sand.u32 %s19, 1
          %s133 = smul.addr %s132, 896
          %s134 = scalar_lea.vmem [#allocation2], %s133
          %s135 = smul.u32 56, %s9
          %s136 = smul.addr %s135, 4
          %s137 = scalar_lea.vmem %s0, %s136
          // Predicated region
          $region29: #{triplet_forward.4} parent=27 // pred_check
            _
          $region30: #{triplet_forward.4} parent=27 // pred_check_branch
            %139 = sbr.rel (0) target = $region32
          $region31: #{triplet_forward.4} parent=27 // pred_region
            // Predicated region
            $region33: #{triplet_forward.4} parent=31 // pred_check
              _
            $region34: #{triplet_forward.4} parent=31 // pred_check_branch
              %141 = sbr.rel target = $region36
            $region35: #{triplet_forward.4} parent=31 // pred_region
              // Predicated region
              $region48: #{triplet_forward.4} parent=35 // pred_check
                _
              $region49: #{triplet_forward.4} parent=35 // pred_check_branch
                %603 = sbr.rel (0) target = $region51
              $region50: #{triplet_forward.4} parent=35 // pred_region
                loop: start=0, step=1, limit=1
                $region52: #{triplet_forward.4} parent=50 // loop_pre_header
                  _
                $region53: #{triplet_forward.4} parent=50 // loop_header
                  %s605 = sphi 0, %s609
                  %p606 = scmp.ge.s32.totalorder %s605, 1
                  %s610 = sphi %s137, %s137
                  %s611 = sphi %s134, %s134
                $region54: #{triplet_forward.4} parent=50 // loop_header_branch
                  %608 = sbr.rel (%p606) target = $region58
                $region55: #{triplet_forward.4} parent=50 // loop_body
                  _
                $region56: #{triplet_forward.4} parent=50 // loop_footer
                  %s609 = sadd.s32 1, %s605
                $region57: #{triplet_forward.4} parent=50 // loop_footer_branch
                  %604 = sbr.rel target = $region53
                $region58: #{triplet_forward.4} parent=50 // loop_exit
                  _
                %s613 = ssub.s32 16, 1
                loop: start=0, step=1, limit=1
                $region59: #{triplet_forward.4} parent=50 // loop_pre_header
                  _
                $region60: #{triplet_forward.4} parent=50 // loop_header
                  %s615 = sphi 0, %s619
                  %p616 = scmp.ge.s32.totalorder %s615, 1
                  %s620 = sphi %s137, %s137
                  %s621 = sphi %s134, %s134
                $region61: #{triplet_forward.4} parent=50 // loop_header_branch
                  %618 = sbr.rel (%p616) target = $region65
                $region62: #{triplet_forward.4} parent=50 // loop_body
                  %v622 = vld [vmem:[%s620] sm:%s613]
                  %623 = vst [vmem:[%s621] sm:%s613] %v622
                  %v624 = vld [vmem:[%s620 + $0x4] sm:%s613]
                  %625 = vst [vmem:[%s621 + $0x4] sm:%s613] %v624
                  %v626 = vld [vmem:[%s620 + $0x8] sm:%s613]
                  %627 = vst [vmem:[%s621 + $0x8] sm:%s613] %v626
                  %v628 = vld [vmem:[%s620 + $0xc] sm:%s613]
                  %629 = vst [vmem:[%s621 + $0xc] sm:%s613] %v628
                  %v630 = vld [vmem:[%s620 + $0x10] sm:%s613]
                  %631 = vst [vmem:[%s621 + $0x10] sm:%s613] %v630
                  %v632 = vld [vmem:[%s620 + $0x14] sm:%s613]
                  %633 = vst [vmem:[%s621 + $0x14] sm:%s613] %v632
                  %v634 = vld [vmem:[%s620 + $0x18] sm:%s613]
                  %635 = vst [vmem:[%s621 + $0x18] sm:%s613] %v634
                  %v636 = vld [vmem:[%s620 + $0x1c] sm:%s613]
                  %637 = vst [vmem:[%s621 + $0x1c] sm:%s613] %v636
                  %v638 = vld [vmem:[%s620 + $0x20] sm:%s613]
                  %639 = vst [vmem:[%s621 + $0x20] sm:%s613] %v638
                  %v640 = vld [vmem:[%s620 + $0x24] sm:%s613]
                  %641 = vst [vmem:[%s621 + $0x24] sm:%s613] %v640
                  %v642 = vld [vmem:[%s620 + $0x28] sm:%s613]
                  %643 = vst [vmem:[%s621 + $0x28] sm:%s613] %v642
                  %v644 = vld [vmem:[%s620 + $0x2c] sm:%s613]
                  %645 = vst [vmem:[%s621 + $0x2c] sm:%s613] %v644
                  %v646 = vld [vmem:[%s620 + $0x30] sm:%s613]
                  %647 = vst [vmem:[%s621 + $0x30] sm:%s613] %v646
                  %v648 = vld [vmem:[%s620 + $0x34] sm:%s613]
                  %649 = vst [vmem:[%s621 + $0x34] sm:%s613] %v648
                  %v650 = vld [vmem:[%s620 + $0x38] sm:%s613]
                  %651 = vst [vmem:[%s621 + $0x38] sm:%s613] %v650
                  %v652 = vld [vmem:[%s620 + $0x3c] sm:%s613]
                  %653 = vst [vmem:[%s621 + $0x3c] sm:%s613] %v652
                  %v654 = vld [vmem:[%s620 + $0x40] sm:%s613]
                  %655 = vst [vmem:[%s621 + $0x40] sm:%s613] %v654
                  %v656 = vld [vmem:[%s620 + $0x44] sm:%s613]
                  %657 = vst [vmem:[%s621 + $0x44] sm:%s613] %v656
                  %v658 = vld [vmem:[%s620 + $0x48] sm:%s613]
                  %659 = vst [vmem:[%s621 + $0x48] sm:%s613] %v658
                  %v660 = vld [vmem:[%s620 + $0x4c] sm:%s613]
                  %661 = vst [vmem:[%s621 + $0x4c] sm:%s613] %v660
                  %v662 = vld [vmem:[%s620 + $0x50] sm:%s613]
                  %663 = vst [vmem:[%s621 + $0x50] sm:%s613] %v662
                  %v664 = vld [vmem:[%s620 + $0x54] sm:%s613]
                  %665 = vst [vmem:[%s621 + $0x54] sm:%s613] %v664
                  %v666 = vld [vmem:[%s620 + $0x58] sm:%s613]
                  %667 = vst [vmem:[%s621 + $0x58] sm:%s613] %v666
                  %v668 = vld [vmem:[%s620 + $0x5c] sm:%s613]
                  %669 = vst [vmem:[%s621 + $0x5c] sm:%s613] %v668
                  %v670 = vld [vmem:[%s620 + $0x60] sm:%s613]
                  %671 = vst [vmem:[%s621 + $0x60] sm:%s613] %v670
                  %v672 = vld [vmem:[%s620 + $0x64] sm:%s613]
                  %673 = vst [vmem:[%s621 + $0x64] sm:%s613] %v672
                  %v674 = vld [vmem:[%s620 + $0x68] sm:%s613]
                  %675 = vst [vmem:[%s621 + $0x68] sm:%s613] %v674
                  %v676 = vld [vmem:[%s620 + $0x6c] sm:%s613]
                  %677 = vst [vmem:[%s621 + $0x6c] sm:%s613] %v676
                  %v678 = vld [vmem:[%s620 + $0x70] sm:%s613]
                  %679 = vst [vmem:[%s621 + $0x70] sm:%s613] %v678
                  %v680 = vld [vmem:[%s620 + $0x74] sm:%s613]
                  %681 = vst [vmem:[%s621 + $0x74] sm:%s613] %v680
                  %v682 = vld [vmem:[%s620 + $0x78] sm:%s613]
                  %683 = vst [vmem:[%s621 + $0x78] sm:%s613] %v682
                  %v684 = vld [vmem:[%s620 + $0x7c] sm:%s613]
                  %685 = vst [vmem:[%s621 + $0x7c] sm:%s613] %v684
                  %v686 = vld [vmem:[%s620 + $0x80] sm:%s613]
                  %687 = vst [vmem:[%s621 + $0x80] sm:%s613] %v686
                  %v688 = vld [vmem:[%s620 + $0x84] sm:%s613]
                  %689 = vst [vmem:[%s621 + $0x84] sm:%s613] %v688
                  %v690 = vld [vmem:[%s620 + $0x88] sm:%s613]
                  %691 = vst [vmem:[%s621 + $0x88] sm:%s613] %v690
                  %v692 = vld [vmem:[%s620 + $0x8c] sm:%s613]
                  %693 = vst [vmem:[%s621 + $0x8c] sm:%s613] %v692
                  %v694 = vld [vmem:[%s620 + $0x90] sm:%s613]
                  %695 = vst [vmem:[%s621 + $0x90] sm:%s613] %v694
                  %v696 = vld [vmem:[%s620 + $0x94] sm:%s613]
                  %697 = vst [vmem:[%s621 + $0x94] sm:%s613] %v696
                  %v698 = vld [vmem:[%s620 + $0x98] sm:%s613]
                  %699 = vst [vmem:[%s621 + $0x98] sm:%s613] %v698
                  %v700 = vld [vmem:[%s620 + $0x9c] sm:%s613]
                  %701 = vst [vmem:[%s621 + $0x9c] sm:%s613] %v700
                  %v702 = vld [vmem:[%s620 + $0xa0] sm:%s613]
                  %703 = vst [vmem:[%s621 + $0xa0] sm:%s613] %v702
                  %v704 = vld [vmem:[%s620 + $0xa4] sm:%s613]
                  %705 = vst [vmem:[%s621 + $0xa4] sm:%s613] %v704
                  %v706 = vld [vmem:[%s620 + $0xa8] sm:%s613]
                  %707 = vst [vmem:[%s621 + $0xa8] sm:%s613] %v706
                  %v708 = vld [vmem:[%s620 + $0xac] sm:%s613]
                  %709 = vst [vmem:[%s621 + $0xac] sm:%s613] %v708
                  %v710 = vld [vmem:[%s620 + $0xb0] sm:%s613]
                  %711 = vst [vmem:[%s621 + $0xb0] sm:%s613] %v710
                  %v712 = vld [vmem:[%s620 + $0xb4] sm:%s613]
                  %713 = vst [vmem:[%s621 + $0xb4] sm:%s613] %v712
                  %v714 = vld [vmem:[%s620 + $0xb8] sm:%s613]
                  %715 = vst [vmem:[%s621 + $0xb8] sm:%s613] %v714
                  %v716 = vld [vmem:[%s620 + $0xbc] sm:%s613]
                  %717 = vst [vmem:[%s621 + $0xbc] sm:%s613] %v716
                  %v718 = vld [vmem:[%s620 + $0xc0] sm:%s613]
                  %719 = vst [vmem:[%s621 + $0xc0] sm:%s613] %v718
                  %v720 = vld [vmem:[%s620 + $0xc4] sm:%s613]
                  %721 = vst [vmem:[%s621 + $0xc4] sm:%s613] %v720
                  %v722 = vld [vmem:[%s620 + $0xc8] sm:%s613]
                  %723 = vst [vmem:[%s621 + $0xc8] sm:%s613] %v722
                  %v724 = vld [vmem:[%s620 + $0xcc] sm:%s613]
                  %725 = vst [vmem:[%s621 + $0xcc] sm:%s613] %v724
                  %v726 = vld [vmem:[%s620 + $0xd0] sm:%s613]
                  %727 = vst [vmem:[%s621 + $0xd0] sm:%s613] %v726
                  %v728 = vld [vmem:[%s620 + $0xd4] sm:%s613]
                  %729 = vst [vmem:[%s621 + $0xd4] sm:%s613] %v728
                  %v730 = vld [vmem:[%s620 + $0xd8] sm:%s613]
                  %731 = vst [vmem:[%s621 + $0xd8] sm:%s613] %v730
                  %v732 = vld [vmem:[%s620 + $0xdc] sm:%s613]
                  %733 = vst [vmem:[%s621 + $0xdc] sm:%s613] %v732
                  %v734 = vld [vmem:[%s620 + $0x1c0] sm:%s613]
                  %735 = vst [vmem:[%s621 + $0xe0] sm:%s613] %v734
                  %v736 = vld [vmem:[%s620 + $0x1c4] sm:%s613]
                  %737 = vst [vmem:[%s621 + $0xe4] sm:%s613] %v736
                  %v738 = vld [vmem:[%s620 + $0x1c8] sm:%s613]
                  %739 = vst [vmem:[%s621 + $0xe8] sm:%s613] %v738
                  %v740 = vld [vmem:[%s620 + $0x1cc] sm:%s613]
                  %741 = vst [vmem:[%s621 + $0xec] sm:%s613] %v740
                  %v742 = vld [vmem:[%s620 + $0x1d0] sm:%s613]
                  %743 = vst [vmem:[%s621 + $0xf0] sm:%s613] %v742
                  %v744 = vld [vmem:[%s620 + $0x1d4] sm:%s613]
                  %745 = vst [vmem:[%s621 + $0xf4] sm:%s613] %v744
                  %v746 = vld [vmem:[%s620 + $0x1d8] sm:%s613]
                  %747 = vst [vmem:[%s621 + $0xf8] sm:%s613] %v746
                  %v748 = vld [vmem:[%s620 + $0x1dc] sm:%s613]
                  %749 = vst [vmem:[%s621 + $0xfc] sm:%s613] %v748
                  %v750 = vld [vmem:[%s620 + $0x1e0] sm:%s613]
                  %751 = vst [vmem:[%s621 + $0x100] sm:%s613] %v750
                  %v752 = vld [vmem:[%s620 + $0x1e4] sm:%s613]
                  %753 = vst [vmem:[%s621 + $0x104] sm:%s613] %v752
                  %v754 = vld [vmem:[%s620 + $0x1e8] sm:%s613]
                  %755 = vst [vmem:[%s621 + $0x108] sm:%s613] %v754
                  %v756 = vld [vmem:[%s620 + $0x1ec] sm:%s613]
                  %757 = vst [vmem:[%s621 + $0x10c] sm:%s613] %v756
                  %v758 = vld [vmem:[%s620 + $0x1f0] sm:%s613]
                  %759 = vst [vmem:[%s621 + $0x110] sm:%s613] %v758
                  %v760 = vld [vmem:[%s620 + $0x1f4] sm:%s613]
                  %761 = vst [vmem:[%s621 + $0x114] sm:%s613] %v760
                  %v762 = vld [vmem:[%s620 + $0x1f8] sm:%s613]
                  %763 = vst [vmem:[%s621 + $0x118] sm:%s613] %v762
                  %v764 = vld [vmem:[%s620 + $0x1fc] sm:%s613]
                  %765 = vst [vmem:[%s621 + $0x11c] sm:%s613] %v764
                  %v766 = vld [vmem:[%s620 + $0x200] sm:%s613]
                  %767 = vst [vmem:[%s621 + $0x120] sm:%s613] %v766
                  %v768 = vld [vmem:[%s620 + $0x204] sm:%s613]
                  %769 = vst [vmem:[%s621 + $0x124] sm:%s613] %v768
                  %v770 = vld [vmem:[%s620 + $0x208] sm:%s613]
                  %771 = vst [vmem:[%s621 + $0x128] sm:%s613] %v770
                  %v772 = vld [vmem:[%s620 + $0x20c] sm:%s613]
                  %773 = vst [vmem:[%s621 + $0x12c] sm:%s613] %v772
                  %v774 = vld [vmem:[%s620 + $0x210] sm:%s613]
                  %775 = vst [vmem:[%s621 + $0x130] sm:%s613] %v774
                  %v776 = vld [vmem:[%s620 + $0x214] sm:%s613]
                  %777 = vst [vmem:[%s621 + $0x134] sm:%s613] %v776
                  %v778 = vld [vmem:[%s620 + $0x218] sm:%s613]
                  %779 = vst [vmem:[%s621 + $0x138] sm:%s613] %v778
                  %v780 = vld [vmem:[%s620 + $0x21c] sm:%s613]
                  %781 = vst [vmem:[%s621 + $0x13c] sm:%s613] %v780
                  %v782 = vld [vmem:[%s620 + $0x220] sm:%s613]
                  %783 = vst [vmem:[%s621 + $0x140] sm:%s613] %v782
                  %v784 = vld [vmem:[%s620 + $0x224] sm:%s613]
                  %785 = vst [vmem:[%s621 + $0x144] sm:%s613] %v784
                  %v786 = vld [vmem:[%s620 + $0x228] sm:%s613]
                  %787 = vst [vmem:[%s621 + $0x148] sm:%s613] %v786
                  %v788 = vld [vmem:[%s620 + $0x22c] sm:%s613]
                  %789 = vst [vmem:[%s621 + $0x14c] sm:%s613] %v788
                  %v790 = vld [vmem:[%s620 + $0x230] sm:%s613]
                  %791 = vst [vmem:[%s621 + $0x150] sm:%s613] %v790
                  %v792 = vld [vmem:[%s620 + $0x234] sm:%s613]
                  %793 = vst [vmem:[%s621 + $0x154] sm:%s613] %v792
                  %v794 = vld [vmem:[%s620 + $0x238] sm:%s613]
                  %795 = vst [vmem:[%s621 + $0x158] sm:%s613] %v794
                  %v796 = vld [vmem:[%s620 + $0x23c] sm:%s613]
                  %797 = vst [vmem:[%s621 + $0x15c] sm:%s613] %v796
                  %v798 = vld [vmem:[%s620 + $0x240] sm:%s613]
                  %799 = vst [vmem:[%s621 + $0x160] sm:%s613] %v798
                  %v800 = vld [vmem:[%s620 + $0x244] sm:%s613]
                  %801 = vst [vmem:[%s621 + $0x164] sm:%s613] %v800
                  %v802 = vld [vmem:[%s620 + $0x248] sm:%s613]
                  %803 = vst [vmem:[%s621 + $0x168] sm:%s613] %v802
                  %v804 = vld [vmem:[%s620 + $0x24c] sm:%s613]
                  %805 = vst [vmem:[%s621 + $0x16c] sm:%s613] %v804
                  %v806 = vld [vmem:[%s620 + $0x250] sm:%s613]
                  %807 = vst [vmem:[%s621 + $0x170] sm:%s613] %v806
                  %v808 = vld [vmem:[%s620 + $0x254] sm:%s613]
                  %809 = vst [vmem:[%s621 + $0x174] sm:%s613] %v808
                  %v810 = vld [vmem:[%s620 + $0x258] sm:%s613]
                  %811 = vst [vmem:[%s621 + $0x178] sm:%s613] %v810
                  %v812 = vld [vmem:[%s620 + $0x25c] sm:%s613]
                  %813 = vst [vmem:[%s621 + $0x17c] sm:%s613] %v812
                  %v814 = vld [vmem:[%s620 + $0x260] sm:%s613]
                  %815 = vst [vmem:[%s621 + $0x180] sm:%s613] %v814
                  %v816 = vld [vmem:[%s620 + $0x264] sm:%s613]
                  %817 = vst [vmem:[%s621 + $0x184] sm:%s613] %v816
                  %v818 = vld [vmem:[%s620 + $0x268] sm:%s613]
                  %819 = vst [vmem:[%s621 + $0x188] sm:%s613] %v818
                  %v820 = vld [vmem:[%s620 + $0x26c] sm:%s613]
                  %821 = vst [vmem:[%s621 + $0x18c] sm:%s613] %v820
                  %v822 = vld [vmem:[%s620 + $0x270] sm:%s613]
                  %823 = vst [vmem:[%s621 + $0x190] sm:%s613] %v822
                  %v824 = vld [vmem:[%s620 + $0x274] sm:%s613]
                  %825 = vst [vmem:[%s621 + $0x194] sm:%s613] %v824
                  %v826 = vld [vmem:[%s620 + $0x278] sm:%s613]
                  %827 = vst [vmem:[%s621 + $0x198] sm:%s613] %v826
                  %v828 = vld [vmem:[%s620 + $0x27c] sm:%s613]
                  %829 = vst [vmem:[%s621 + $0x19c] sm:%s613] %v828
                  %v830 = vld [vmem:[%s620 + $0x280] sm:%s613]
                  %831 = vst [vmem:[%s621 + $0x1a0] sm:%s613] %v830
                  %v832 = vld [vmem:[%s620 + $0x284] sm:%s613]
                  %833 = vst [vmem:[%s621 + $0x1a4] sm:%s613] %v832
                  %v834 = vld [vmem:[%s620 + $0x288] sm:%s613]
                  %835 = vst [vmem:[%s621 + $0x1a8] sm:%s613] %v834
                  %v836 = vld [vmem:[%s620 + $0x28c] sm:%s613]
                  %837 = vst [vmem:[%s621 + $0x1ac] sm:%s613] %v836
                  %v838 = vld [vmem:[%s620 + $0x290] sm:%s613]
                  %839 = vst [vmem:[%s621 + $0x1b0] sm:%s613] %v838
                  %v840 = vld [vmem:[%s620 + $0x294] sm:%s613]
                  %841 = vst [vmem:[%s621 + $0x1b4] sm:%s613] %v840
                  %v842 = vld [vmem:[%s620 + $0x298] sm:%s613]
                  %843 = vst [vmem:[%s621 + $0x1b8] sm:%s613] %v842
                  %v844 = vld [vmem:[%s620 + $0x29c] sm:%s613]
                  %845 = vst [vmem:[%s621 + $0x1bc] sm:%s613] %v844
                  %v846 = vld [vmem:[%s620 + $0x380] sm:%s613]
                  %847 = vst [vmem:[%s621 + $0x1c0] sm:%s613] %v846
                  %v848 = vld [vmem:[%s620 + $0x384] sm:%s613]
                  %849 = vst [vmem:[%s621 + $0x1c4] sm:%s613] %v848
                  %v850 = vld [vmem:[%s620 + $0x388] sm:%s613]
                  %851 = vst [vmem:[%s621 + $0x1c8] sm:%s613] %v850
                  %v852 = vld [vmem:[%s620 + $0x38c] sm:%s613]
                  %853 = vst [vmem:[%s621 + $0x1cc] sm:%s613] %v852
                  %v854 = vld [vmem:[%s620 + $0x390] sm:%s613]
                  %855 = vst [vmem:[%s621 + $0x1d0] sm:%s613] %v854
                  %v856 = vld [vmem:[%s620 + $0x394] sm:%s613]
                  %857 = vst [vmem:[%s621 + $0x1d4] sm:%s613] %v856
                  %v858 = vld [vmem:[%s620 + $0x398] sm:%s613]
                  %859 = vst [vmem:[%s621 + $0x1d8] sm:%s613] %v858
                  %v860 = vld [vmem:[%s620 + $0x39c] sm:%s613]
                  %861 = vst [vmem:[%s621 + $0x1dc] sm:%s613] %v860
                  %v862 = vld [vmem:[%s620 + $0x3a0] sm:%s613]
                  %863 = vst [vmem:[%s621 + $0x1e0] sm:%s613] %v862
                  %v864 = vld [vmem:[%s620 + $0x3a4] sm:%s613]
                  %865 = vst [vmem:[%s621 + $0x1e4] sm:%s613] %v864
                  %v866 = vld [vmem:[%s620 + $0x3a8] sm:%s613]
                  %867 = vst [vmem:[%s621 + $0x1e8] sm:%s613] %v866
                  %v868 = vld [vmem:[%s620 + $0x3ac] sm:%s613]
                  %869 = vst [vmem:[%s621 + $0x1ec] sm:%s613] %v868
                  %v870 = vld [vmem:[%s620 + $0x3b0] sm:%s613]
                  %871 = vst [vmem:[%s621 + $0x1f0] sm:%s613] %v870
                  %v872 = vld [vmem:[%s620 + $0x3b4] sm:%s613]
                  %873 = vst [vmem:[%s621 + $0x1f4] sm:%s613] %v872
                  %v874 = vld [vmem:[%s620 + $0x3b8] sm:%s613]
                  %875 = vst [vmem:[%s621 + $0x1f8] sm:%s613] %v874
                  %v876 = vld [vmem:[%s620 + $0x3bc] sm:%s613]
                  %877 = vst [vmem:[%s621 + $0x1fc] sm:%s613] %v876
                  %v878 = vld [vmem:[%s620 + $0x3c0] sm:%s613]
                  %879 = vst [vmem:[%s621 + $0x200] sm:%s613] %v878
                  %v880 = vld [vmem:[%s620 + $0x3c4] sm:%s613]
                  %881 = vst [vmem:[%s621 + $0x204] sm:%s613] %v880
                  %v882 = vld [vmem:[%s620 + $0x3c8] sm:%s613]
                  %883 = vst [vmem:[%s621 + $0x208] sm:%s613] %v882
                  %v884 = vld [vmem:[%s620 + $0x3cc] sm:%s613]
                  %885 = vst [vmem:[%s621 + $0x20c] sm:%s613] %v884
                  %v886 = vld [vmem:[%s620 + $0x3d0] sm:%s613]
                  %887 = vst [vmem:[%s621 + $0x210] sm:%s613] %v886
                  %v888 = vld [vmem:[%s620 + $0x3d4] sm:%s613]
                  %889 = vst [vmem:[%s621 + $0x214] sm:%s613] %v888
                  %v890 = vld [vmem:[%s620 + $0x3d8] sm:%s613]
                  %891 = vst [vmem:[%s621 + $0x218] sm:%s613] %v890
                  %v892 = vld [vmem:[%s620 + $0x3dc] sm:%s613]
                  %893 = vst [vmem:[%s621 + $0x21c] sm:%s613] %v892
                  %v894 = vld [vmem:[%s620 + $0x3e0] sm:%s613]
                  %895 = vst [vmem:[%s621 + $0x220] sm:%s613] %v894
                  %v896 = vld [vmem:[%s620 + $0x3e4] sm:%s613]
                  %897 = vst [vmem:[%s621 + $0x224] sm:%s613] %v896
                  %v898 = vld [vmem:[%s620 + $0x3e8] sm:%s613]
                  %899 = vst [vmem:[%s621 + $0x228] sm:%s613] %v898
                  %v900 = vld [vmem:[%s620 + $0x3ec] sm:%s613]
                  %901 = vst [vmem:[%s621 + $0x22c] sm:%s613] %v900
                  %v902 = vld [vmem:[%s620 + $0x3f0] sm:%s613]
                  %903 = vst [vmem:[%s621 + $0x230] sm:%s613] %v902
                  %v904 = vld [vmem:[%s620 + $0x3f4] sm:%s613]
                  %905 = vst [vmem:[%s621 + $0x234] sm:%s613] %v904
                  %v906 = vld [vmem:[%s620 + $0x3f8] sm:%s613]
                  %907 = vst [vmem:[%s621 + $0x238] sm:%s613] %v906
                  %v908 = vld [vmem:[%s620 + $0x3fc] sm:%s613]
                  %909 = vst [vmem:[%s621 + $0x23c] sm:%s613] %v908
                  %v910 = vld [vmem:[%s620 + $0x400] sm:%s613]
                  %911 = vst [vmem:[%s621 + $0x240] sm:%s613] %v910
                  %v912 = vld [vmem:[%s620 + $0x404] sm:%s613]
                  %913 = vst [vmem:[%s621 + $0x244] sm:%s613] %v912
                  %v914 = vld [vmem:[%s620 + $0x408] sm:%s613]
                  %915 = vst [vmem:[%s621 + $0x248] sm:%s613] %v914
                  %v916 = vld [vmem:[%s620 + $0x40c] sm:%s613]
                  %917 = vst [vmem:[%s621 + $0x24c] sm:%s613] %v916
                  %v918 = vld [vmem:[%s620 + $0x410] sm:%s613]
                  %919 = vst [vmem:[%s621 + $0x250] sm:%s613] %v918
                  %v920 = vld [vmem:[%s620 + $0x414] sm:%s613]
                  %921 = vst [vmem:[%s621 + $0x254] sm:%s613] %v920
                  %v922 = vld [vmem:[%s620 + $0x418] sm:%s613]
                  %923 = vst [vmem:[%s621 + $0x258] sm:%s613] %v922
                  %v924 = vld [vmem:[%s620 + $0x41c] sm:%s613]
                  %925 = vst [vmem:[%s621 + $0x25c] sm:%s613] %v924
                  %v926 = vld [vmem:[%s620 + $0x420] sm:%s613]
                  %927 = vst [vmem:[%s621 + $0x260] sm:%s613] %v926
                  %v928 = vld [vmem:[%s620 + $0x424] sm:%s613]
                  %929 = vst [vmem:[%s621 + $0x264] sm:%s613] %v928
                  %v930 = vld [vmem:[%s620 + $0x428] sm:%s613]
                  %931 = vst [vmem:[%s621 + $0x268] sm:%s613] %v930
                  %v932 = vld [vmem:[%s620 + $0x42c] sm:%s613]
                  %933 = vst [vmem:[%s621 + $0x26c] sm:%s613] %v932
                  %v934 = vld [vmem:[%s620 + $0x430] sm:%s613]
                  %935 = vst [vmem:[%s621 + $0x270] sm:%s613] %v934
                  %v936 = vld [vmem:[%s620 + $0x434] sm:%s613]
                  %937 = vst [vmem:[%s621 + $0x274] sm:%s613] %v936
                  %v938 = vld [vmem:[%s620 + $0x438] sm:%s613]
                  %939 = vst [vmem:[%s621 + $0x278] sm:%s613] %v938
                  %v940 = vld [vmem:[%s620 + $0x43c] sm:%s613]
                  %941 = vst [vmem:[%s621 + $0x27c] sm:%s613] %v940
                  %v942 = vld [vmem:[%s620 + $0x440] sm:%s613]
                  %943 = vst [vmem:[%s621 + $0x280] sm:%s613] %v942
                  %v944 = vld [vmem:[%s620 + $0x444] sm:%s613]
                  %945 = vst [vmem:[%s621 + $0x284] sm:%s613] %v944
                  %v946 = vld [vmem:[%s620 + $0x448] sm:%s613]
                  %947 = vst [vmem:[%s621 + $0x288] sm:%s613] %v946
                  %v948 = vld [vmem:[%s620 + $0x44c] sm:%s613]
                  %949 = vst [vmem:[%s621 + $0x28c] sm:%s613] %v948
                  %v950 = vld [vmem:[%s620 + $0x450] sm:%s613]
                  %951 = vst [vmem:[%s621 + $0x290] sm:%s613] %v950
                  %v952 = vld [vmem:[%s620 + $0x454] sm:%s613]
                  %953 = vst [vmem:[%s621 + $0x294] sm:%s613] %v952
                  %v954 = vld [vmem:[%s620 + $0x458] sm:%s613]
                  %955 = vst [vmem:[%s621 + $0x298] sm:%s613] %v954
                  %v956 = vld [vmem:[%s620 + $0x45c] sm:%s613]
                  %957 = vst [vmem:[%s621 + $0x29c] sm:%s613] %v956
                  %v958 = vld [vmem:[%s620 + $0x540] sm:%s613]
                  %959 = vst [vmem:[%s621 + $0x2a0] sm:%s613] %v958
                  %v960 = vld [vmem:[%s620 + $0x544] sm:%s613]
                  %961 = vst [vmem:[%s621 + $0x2a4] sm:%s613] %v960
                  %v962 = vld [vmem:[%s620 + $0x548] sm:%s613]
                  %963 = vst [vmem:[%s621 + $0x2a8] sm:%s613] %v962
                  %v964 = vld [vmem:[%s620 + $0x54c] sm:%s613]
                  %965 = vst [vmem:[%s621 + $0x2ac] sm:%s613] %v964
                  %v966 = vld [vmem:[%s620 + $0x550] sm:%s613]
                  %967 = vst [vmem:[%s621 + $0x2b0] sm:%s613] %v966
                  %v968 = vld [vmem:[%s620 + $0x554] sm:%s613]
                  %969 = vst [vmem:[%s621 + $0x2b4] sm:%s613] %v968
                  %v970 = vld [vmem:[%s620 + $0x558] sm:%s613]
                  %971 = vst [vmem:[%s621 + $0x2b8] sm:%s613] %v970
                  %v972 = vld [vmem:[%s620 + $0x55c] sm:%s613]
                  %973 = vst [vmem:[%s621 + $0x2bc] sm:%s613] %v972
                  %v974 = vld [vmem:[%s620 + $0x560] sm:%s613]
                  %975 = vst [vmem:[%s621 + $0x2c0] sm:%s613] %v974
                  %v976 = vld [vmem:[%s620 + $0x564] sm:%s613]
                  %977 = vst [vmem:[%s621 + $0x2c4] sm:%s613] %v976
                  %v978 = vld [vmem:[%s620 + $0x568] sm:%s613]
                  %979 = vst [vmem:[%s621 + $0x2c8] sm:%s613] %v978
                  %v980 = vld [vmem:[%s620 + $0x56c] sm:%s613]
                  %981 = vst [vmem:[%s621 + $0x2cc] sm:%s613] %v980
                  %v982 = vld [vmem:[%s620 + $0x570] sm:%s613]
                  %983 = vst [vmem:[%s621 + $0x2d0] sm:%s613] %v982
                  %v984 = vld [vmem:[%s620 + $0x574] sm:%s613]
                  %985 = vst [vmem:[%s621 + $0x2d4] sm:%s613] %v984
                  %v986 = vld [vmem:[%s620 + $0x578] sm:%s613]
                  %987 = vst [vmem:[%s621 + $0x2d8] sm:%s613] %v986
                  %v988 = vld [vmem:[%s620 + $0x57c] sm:%s613]
                  %989 = vst [vmem:[%s621 + $0x2dc] sm:%s613] %v988
                  %v990 = vld [vmem:[%s620 + $0x580] sm:%s613]
                  %991 = vst [vmem:[%s621 + $0x2e0] sm:%s613] %v990
                  %v992 = vld [vmem:[%s620 + $0x584] sm:%s613]
                  %993 = vst [vmem:[%s621 + $0x2e4] sm:%s613] %v992
                  %v994 = vld [vmem:[%s620 + $0x588] sm:%s613]
                  %995 = vst [vmem:[%s621 + $0x2e8] sm:%s613] %v994
                  %v996 = vld [vmem:[%s620 + $0x58c] sm:%s613]
                  %997 = vst [vmem:[%s621 + $0x2ec] sm:%s613] %v996
                  %v998 = vld [vmem:[%s620 + $0x590] sm:%s613]
                  %999 = vst [vmem:[%s621 + $0x2f0] sm:%s613] %v998
                  %v1000 = vld [vmem:[%s620 + $0x594] sm:%s613]
                  %1001 = vst [vmem:[%s621 + $0x2f4] sm:%s613] %v1000
                  %v1002 = vld [vmem:[%s620 + $0x598] sm:%s613]
                  %1003 = vst [vmem:[%s621 + $0x2f8] sm:%s613] %v1002
                  %v1004 = vld [vmem:[%s620 + $0x59c] sm:%s613]
                  %1005 = vst [vmem:[%s621 + $0x2fc] sm:%s613] %v1004
                  %v1006 = vld [vmem:[%s620 + $0x5a0] sm:%s613]
                  %1007 = vst [vmem:[%s621 + $0x300] sm:%s613] %v1006
                  %v1008 = vld [vmem:[%s620 + $0x5a4] sm:%s613]
                  %1009 = vst [vmem:[%s621 + $0x304] sm:%s613] %v1008
                  %v1010 = vld [vmem:[%s620 + $0x5a8] sm:%s613]
                  %1011 = vst [vmem:[%s621 + $0x308] sm:%s613] %v1010
                  %v1012 = vld [vmem:[%s620 + $0x5ac] sm:%s613]
                  %1013 = vst [vmem:[%s621 + $0x30c] sm:%s613] %v1012
                  %v1014 = vld [vmem:[%s620 + $0x5b0] sm:%s613]
                  %1015 = vst [vmem:[%s621 + $0x310] sm:%s613] %v1014
                  %v1016 = vld [vmem:[%s620 + $0x5b4] sm:%s613]
                  %1017 = vst [vmem:[%s621 + $0x314] sm:%s613] %v1016
                  %v1018 = vld [vmem:[%s620 + $0x5b8] sm:%s613]
                  %1019 = vst [vmem:[%s621 + $0x318] sm:%s613] %v1018
                  %v1020 = vld [vmem:[%s620 + $0x5bc] sm:%s613]
                  %1021 = vst [vmem:[%s621 + $0x31c] sm:%s613] %v1020
                  %v1022 = vld [vmem:[%s620 + $0x5c0] sm:%s613]
                  %1023 = vst [vmem:[%s621 + $0x320] sm:%s613] %v1022
                  %v1024 = vld [vmem:[%s620 + $0x5c4] sm:%s613]
                  %1025 = vst [vmem:[%s621 + $0x324] sm:%s613] %v1024
                  %v1026 = vld [vmem:[%s620 + $0x5c8] sm:%s613]
                  %1027 = vst [vmem:[%s621 + $0x328] sm:%s613] %v1026
                  %v1028 = vld [vmem:[%s620 + $0x5cc] sm:%s613]
                  %1029 = vst [vmem:[%s621 + $0x32c] sm:%s613] %v1028
                  %v1030 = vld [vmem:[%s620 + $0x5d0] sm:%s613]
                  %1031 = vst [vmem:[%s621 + $0x330] sm:%s613] %v1030
                  %v1032 = vld [vmem:[%s620 + $0x5d4] sm:%s613]
                  %1033 = vst [vmem:[%s621 + $0x334] sm:%s613] %v1032
                  %v1034 = vld [vmem:[%s620 + $0x5d8] sm:%s613]
                  %1035 = vst [vmem:[%s621 + $0x338] sm:%s613] %v1034
                  %v1036 = vld [vmem:[%s620 + $0x5dc] sm:%s613]
                  %1037 = vst [vmem:[%s621 + $0x33c] sm:%s613] %v1036
                  %v1038 = vld [vmem:[%s620 + $0x5e0] sm:%s613]
                  %1039 = vst [vmem:[%s621 + $0x340] sm:%s613] %v1038
                  %v1040 = vld [vmem:[%s620 + $0x5e4] sm:%s613]
                  %1041 = vst [vmem:[%s621 + $0x344] sm:%s613] %v1040
                  %v1042 = vld [vmem:[%s620 + $0x5e8] sm:%s613]
                  %1043 = vst [vmem:[%s621 + $0x348] sm:%s613] %v1042
                  %v1044 = vld [vmem:[%s620 + $0x5ec] sm:%s613]
                  %1045 = vst [vmem:[%s621 + $0x34c] sm:%s613] %v1044
                  %v1046 = vld [vmem:[%s620 + $0x5f0] sm:%s613]
                  %1047 = vst [vmem:[%s621 + $0x350] sm:%s613] %v1046
                  %v1048 = vld [vmem:[%s620 + $0x5f4] sm:%s613]
                  %1049 = vst [vmem:[%s621 + $0x354] sm:%s613] %v1048
                  %v1050 = vld [vmem:[%s620 + $0x5f8] sm:%s613]
                  %1051 = vst [vmem:[%s621 + $0x358] sm:%s613] %v1050
                  %v1052 = vld [vmem:[%s620 + $0x5fc] sm:%s613]
                  %1053 = vst [vmem:[%s621 + $0x35c] sm:%s613] %v1052
                  %v1054 = vld [vmem:[%s620 + $0x600] sm:%s613]
                  %1055 = vst [vmem:[%s621 + $0x360] sm:%s613] %v1054
                  %v1056 = vld [vmem:[%s620 + $0x604] sm:%s613]
                  %1057 = vst [vmem:[%s621 + $0x364] sm:%s613] %v1056
                  %v1058 = vld [vmem:[%s620 + $0x608] sm:%s613]
                  %1059 = vst [vmem:[%s621 + $0x368] sm:%s613] %v1058
                  %v1060 = vld [vmem:[%s620 + $0x60c] sm:%s613]
                  %1061 = vst [vmem:[%s621 + $0x36c] sm:%s613] %v1060
                  %v1062 = vld [vmem:[%s620 + $0x610] sm:%s613]
                  %1063 = vst [vmem:[%s621 + $0x370] sm:%s613] %v1062
                  %v1064 = vld [vmem:[%s620 + $0x614] sm:%s613]
                  %1065 = vst [vmem:[%s621 + $0x374] sm:%s613] %v1064
                  %v1066 = vld [vmem:[%s620 + $0x618] sm:%s613]
                  %1067 = vst [vmem:[%s621 + $0x378] sm:%s613] %v1066
                  %v1068 = vld [vmem:[%s620 + $0x61c] sm:%s613]
                  %1069 = vst [vmem:[%s621 + $0x37c] sm:%s613] %v1068
                $region63: #{triplet_forward.4} parent=50 // loop_footer
                  %s619 = sadd.s32 1, %s615
                $region64: #{triplet_forward.4} parent=50 // loop_footer_branch
                  %614 = sbr.rel target = $region60
                $region65: #{triplet_forward.4} parent=50 // loop_exit
                  _
              $region51: #{triplet_forward.4} parent=35 // pred_fallthru
                _
            $region36: #{triplet_forward.4} parent=31 // pred_fallthru
              _
            // Predicated region
            $region37: #{triplet_forward.4} parent=31 // pred_check
              _
            $region38: #{triplet_forward.4} parent=31 // pred_check_branch
              %143 = sbr.rel (0) target = $region40
            $region39: #{triplet_forward.4} parent=31 // pred_region
              %s145 = ssub.s32 16, 1
              loop: start=0, step=1, limit=1
              $region41: #{triplet_forward.4} parent=39 // loop_pre_header
                _
              $region42: #{triplet_forward.4} parent=39 // loop_header
                %s147 = sphi 0, %s151
                %p148 = scmp.ge.s32.totalorder %s147, 1
                %s152 = sphi %s137, %s137
                %s153 = sphi %s134, %s134
              $region43: #{triplet_forward.4} parent=39 // loop_header_branch
                %150 = sbr.rel (%p148) target = $region47
              $region44: #{triplet_forward.4} parent=39 // loop_body
                %v154 = vld [vmem:[%s152] sm:%s145]
                %155 = vst [vmem:[%s153] sm:%s145] %v154
                %v156 = vld [vmem:[%s152 + $0x4] sm:%s145]
                %157 = vst [vmem:[%s153 + $0x4] sm:%s145] %v156
                %v158 = vld [vmem:[%s152 + $0x8] sm:%s145]
                %159 = vst [vmem:[%s153 + $0x8] sm:%s145] %v158
                %v160 = vld [vmem:[%s152 + $0xc] sm:%s145]
                %161 = vst [vmem:[%s153 + $0xc] sm:%s145] %v160
                %v162 = vld [vmem:[%s152 + $0x10] sm:%s145]
                %163 = vst [vmem:[%s153 + $0x10] sm:%s145] %v162
                %v164 = vld [vmem:[%s152 + $0x14] sm:%s145]
                %165 = vst [vmem:[%s153 + $0x14] sm:%s145] %v164
                %v166 = vld [vmem:[%s152 + $0x18] sm:%s145]
                %167 = vst [vmem:[%s153 + $0x18] sm:%s145] %v166
                %v168 = vld [vmem:[%s152 + $0x1c] sm:%s145]
                %169 = vst [vmem:[%s153 + $0x1c] sm:%s145] %v168
                %v170 = vld [vmem:[%s152 + $0x20] sm:%s145]
                %171 = vst [vmem:[%s153 + $0x20] sm:%s145] %v170
                %v172 = vld [vmem:[%s152 + $0x24] sm:%s145]
                %173 = vst [vmem:[%s153 + $0x24] sm:%s145] %v172
                %v174 = vld [vmem:[%s152 + $0x28] sm:%s145]
                %175 = vst [vmem:[%s153 + $0x28] sm:%s145] %v174
                %v176 = vld [vmem:[%s152 + $0x2c] sm:%s145]
                %177 = vst [vmem:[%s153 + $0x2c] sm:%s145] %v176
                %v178 = vld [vmem:[%s152 + $0x30] sm:%s145]
                %179 = vst [vmem:[%s153 + $0x30] sm:%s145] %v178
                %v180 = vld [vmem:[%s152 + $0x34] sm:%s145]
                %181 = vst [vmem:[%s153 + $0x34] sm:%s145] %v180
                %v182 = vld [vmem:[%s152 + $0x38] sm:%s145]
                %183 = vst [vmem:[%s153 + $0x38] sm:%s145] %v182
                %v184 = vld [vmem:[%s152 + $0x3c] sm:%s145]
                %185 = vst [vmem:[%s153 + $0x3c] sm:%s145] %v184
                %v186 = vld [vmem:[%s152 + $0x40] sm:%s145]
                %187 = vst [vmem:[%s153 + $0x40] sm:%s145] %v186
                %v188 = vld [vmem:[%s152 + $0x44] sm:%s145]
                %189 = vst [vmem:[%s153 + $0x44] sm:%s145] %v188
                %v190 = vld [vmem:[%s152 + $0x48] sm:%s145]
                %191 = vst [vmem:[%s153 + $0x48] sm:%s145] %v190
                %v192 = vld [vmem:[%s152 + $0x4c] sm:%s145]
                %193 = vst [vmem:[%s153 + $0x4c] sm:%s145] %v192
                %v194 = vld [vmem:[%s152 + $0x50] sm:%s145]
                %195 = vst [vmem:[%s153 + $0x50] sm:%s145] %v194
                %v196 = vld [vmem:[%s152 + $0x54] sm:%s145]
                %197 = vst [vmem:[%s153 + $0x54] sm:%s145] %v196
                %v198 = vld [vmem:[%s152 + $0x58] sm:%s145]
                %199 = vst [vmem:[%s153 + $0x58] sm:%s145] %v198
                %v200 = vld [vmem:[%s152 + $0x5c] sm:%s145]
                %201 = vst [vmem:[%s153 + $0x5c] sm:%s145] %v200
                %v202 = vld [vmem:[%s152 + $0x60] sm:%s145]
                %203 = vst [vmem:[%s153 + $0x60] sm:%s145] %v202
                %v204 = vld [vmem:[%s152 + $0x64] sm:%s145]
                %205 = vst [vmem:[%s153 + $0x64] sm:%s145] %v204
                %v206 = vld [vmem:[%s152 + $0x68] sm:%s145]
                %207 = vst [vmem:[%s153 + $0x68] sm:%s145] %v206
                %v208 = vld [vmem:[%s152 + $0x6c] sm:%s145]
                %209 = vst [vmem:[%s153 + $0x6c] sm:%s145] %v208
                %v210 = vld [vmem:[%s152 + $0x70] sm:%s145]
                %211 = vst [vmem:[%s153 + $0x70] sm:%s145] %v210
                %v212 = vld [vmem:[%s152 + $0x74] sm:%s145]
                %213 = vst [vmem:[%s153 + $0x74] sm:%s145] %v212
                %v214 = vld [vmem:[%s152 + $0x78] sm:%s145]
                %215 = vst [vmem:[%s153 + $0x78] sm:%s145] %v214
                %v216 = vld [vmem:[%s152 + $0x7c] sm:%s145]
                %217 = vst [vmem:[%s153 + $0x7c] sm:%s145] %v216
                %v218 = vld [vmem:[%s152 + $0x80] sm:%s145]
                %219 = vst [vmem:[%s153 + $0x80] sm:%s145] %v218
                %v220 = vld [vmem:[%s152 + $0x84] sm:%s145]
                %221 = vst [vmem:[%s153 + $0x84] sm:%s145] %v220
                %v222 = vld [vmem:[%s152 + $0x88] sm:%s145]
                %223 = vst [vmem:[%s153 + $0x88] sm:%s145] %v222
                %v224 = vld [vmem:[%s152 + $0x8c] sm:%s145]
                %225 = vst [vmem:[%s153 + $0x8c] sm:%s145] %v224
                %v226 = vld [vmem:[%s152 + $0x90] sm:%s145]
                %227 = vst [vmem:[%s153 + $0x90] sm:%s145] %v226
                %v228 = vld [vmem:[%s152 + $0x94] sm:%s145]
                %229 = vst [vmem:[%s153 + $0x94] sm:%s145] %v228
                %v230 = vld [vmem:[%s152 + $0x98] sm:%s145]
                %231 = vst [vmem:[%s153 + $0x98] sm:%s145] %v230
                %v232 = vld [vmem:[%s152 + $0x9c] sm:%s145]
                %233 = vst [vmem:[%s153 + $0x9c] sm:%s145] %v232
                %v234 = vld [vmem:[%s152 + $0xa0] sm:%s145]
                %235 = vst [vmem:[%s153 + $0xa0] sm:%s145] %v234
                %v236 = vld [vmem:[%s152 + $0xa4] sm:%s145]
                %237 = vst [vmem:[%s153 + $0xa4] sm:%s145] %v236
                %v238 = vld [vmem:[%s152 + $0xa8] sm:%s145]
                %239 = vst [vmem:[%s153 + $0xa8] sm:%s145] %v238
                %v240 = vld [vmem:[%s152 + $0xac] sm:%s145]
                %241 = vst [vmem:[%s153 + $0xac] sm:%s145] %v240
                %v242 = vld [vmem:[%s152 + $0xb0] sm:%s145]
                %243 = vst [vmem:[%s153 + $0xb0] sm:%s145] %v242
                %v244 = vld [vmem:[%s152 + $0xb4] sm:%s145]
                %245 = vst [vmem:[%s153 + $0xb4] sm:%s145] %v244
                %v246 = vld [vmem:[%s152 + $0xb8] sm:%s145]
                %247 = vst [vmem:[%s153 + $0xb8] sm:%s145] %v246
                %v248 = vld [vmem:[%s152 + $0xbc] sm:%s145]
                %249 = vst [vmem:[%s153 + $0xbc] sm:%s145] %v248
                %v250 = vld [vmem:[%s152 + $0xc0] sm:%s145]
                %251 = vst [vmem:[%s153 + $0xc0] sm:%s145] %v250
                %v252 = vld [vmem:[%s152 + $0xc4] sm:%s145]
                %253 = vst [vmem:[%s153 + $0xc4] sm:%s145] %v252
                %v254 = vld [vmem:[%s152 + $0xc8] sm:%s145]
                %255 = vst [vmem:[%s153 + $0xc8] sm:%s145] %v254
                %v256 = vld [vmem:[%s152 + $0xcc] sm:%s145]
                %257 = vst [vmem:[%s153 + $0xcc] sm:%s145] %v256
                %v258 = vld [vmem:[%s152 + $0xd0] sm:%s145]
                %259 = vst [vmem:[%s153 + $0xd0] sm:%s145] %v258
                %v260 = vld [vmem:[%s152 + $0xd4] sm:%s145]
                %261 = vst [vmem:[%s153 + $0xd4] sm:%s145] %v260
                %v262 = vld [vmem:[%s152 + $0xd8] sm:%s145]
                %263 = vst [vmem:[%s153 + $0xd8] sm:%s145] %v262
                %v264 = vld [vmem:[%s152 + $0xdc] sm:%s145]
                %265 = vst [vmem:[%s153 + $0xdc] sm:%s145] %v264
                %v266 = vld [vmem:[%s152 + $0x1c0] sm:%s145]
                %267 = vst [vmem:[%s153 + $0xe0] sm:%s145] %v266
                %v268 = vld [vmem:[%s152 + $0x1c4] sm:%s145]
                %269 = vst [vmem:[%s153 + $0xe4] sm:%s145] %v268
                %v270 = vld [vmem:[%s152 + $0x1c8] sm:%s145]
                %271 = vst [vmem:[%s153 + $0xe8] sm:%s145] %v270
                %v272 = vld [vmem:[%s152 + $0x1cc] sm:%s145]
                %273 = vst [vmem:[%s153 + $0xec] sm:%s145] %v272
                %v274 = vld [vmem:[%s152 + $0x1d0] sm:%s145]
                %275 = vst [vmem:[%s153 + $0xf0] sm:%s145] %v274
                %v276 = vld [vmem:[%s152 + $0x1d4] sm:%s145]
                %277 = vst [vmem:[%s153 + $0xf4] sm:%s145] %v276
                %v278 = vld [vmem:[%s152 + $0x1d8] sm:%s145]
                %279 = vst [vmem:[%s153 + $0xf8] sm:%s145] %v278
                %v280 = vld [vmem:[%s152 + $0x1dc] sm:%s145]
                %281 = vst [vmem:[%s153 + $0xfc] sm:%s145] %v280
                %v282 = vld [vmem:[%s152 + $0x1e0] sm:%s145]
                %283 = vst [vmem:[%s153 + $0x100] sm:%s145] %v282
                %v284 = vld [vmem:[%s152 + $0x1e4] sm:%s145]
                %285 = vst [vmem:[%s153 + $0x104] sm:%s145] %v284
                %v286 = vld [vmem:[%s152 + $0x1e8] sm:%s145]
                %287 = vst [vmem:[%s153 + $0x108] sm:%s145] %v286
                %v288 = vld [vmem:[%s152 + $0x1ec] sm:%s145]
                %289 = vst [vmem:[%s153 + $0x10c] sm:%s145] %v288
                %v290 = vld [vmem:[%s152 + $0x1f0] sm:%s145]
                %291 = vst [vmem:[%s153 + $0x110] sm:%s145] %v290
                %v292 = vld [vmem:[%s152 + $0x1f4] sm:%s145]
                %293 = vst [vmem:[%s153 + $0x114] sm:%s145] %v292
                %v294 = vld [vmem:[%s152 + $0x1f8] sm:%s145]
                %295 = vst [vmem:[%s153 + $0x118] sm:%s145] %v294
                %v296 = vld [vmem:[%s152 + $0x1fc] sm:%s145]
                %297 = vst [vmem:[%s153 + $0x11c] sm:%s145] %v296
                %v298 = vld [vmem:[%s152 + $0x200] sm:%s145]
                %299 = vst [vmem:[%s153 + $0x120] sm:%s145] %v298
                %v300 = vld [vmem:[%s152 + $0x204] sm:%s145]
                %301 = vst [vmem:[%s153 + $0x124] sm:%s145] %v300
                %v302 = vld [vmem:[%s152 + $0x208] sm:%s145]
                %303 = vst [vmem:[%s153 + $0x128] sm:%s145] %v302
                %v304 = vld [vmem:[%s152 + $0x20c] sm:%s145]
                %305 = vst [vmem:[%s153 + $0x12c] sm:%s145] %v304
                %v306 = vld [vmem:[%s152 + $0x210] sm:%s145]
                %307 = vst [vmem:[%s153 + $0x130] sm:%s145] %v306
                %v308 = vld [vmem:[%s152 + $0x214] sm:%s145]
                %309 = vst [vmem:[%s153 + $0x134] sm:%s145] %v308
                %v310 = vld [vmem:[%s152 + $0x218] sm:%s145]
                %311 = vst [vmem:[%s153 + $0x138] sm:%s145] %v310
                %v312 = vld [vmem:[%s152 + $0x21c] sm:%s145]
                %313 = vst [vmem:[%s153 + $0x13c] sm:%s145] %v312
                %v314 = vld [vmem:[%s152 + $0x220] sm:%s145]
                %315 = vst [vmem:[%s153 + $0x140] sm:%s145] %v314
                %v316 = vld [vmem:[%s152 + $0x224] sm:%s145]
                %317 = vst [vmem:[%s153 + $0x144] sm:%s145] %v316
                %v318 = vld [vmem:[%s152 + $0x228] sm:%s145]
                %319 = vst [vmem:[%s153 + $0x148] sm:%s145] %v318
                %v320 = vld [vmem:[%s152 + $0x22c] sm:%s145]
                %321 = vst [vmem:[%s153 + $0x14c] sm:%s145] %v320
                %v322 = vld [vmem:[%s152 + $0x230] sm:%s145]
                %323 = vst [vmem:[%s153 + $0x150] sm:%s145] %v322
                %v324 = vld [vmem:[%s152 + $0x234] sm:%s145]
                %325 = vst [vmem:[%s153 + $0x154] sm:%s145] %v324
                %v326 = vld [vmem:[%s152 + $0x238] sm:%s145]
                %327 = vst [vmem:[%s153 + $0x158] sm:%s145] %v326
                %v328 = vld [vmem:[%s152 + $0x23c] sm:%s145]
                %329 = vst [vmem:[%s153 + $0x15c] sm:%s145] %v328
                %v330 = vld [vmem:[%s152 + $0x240] sm:%s145]
                %331 = vst [vmem:[%s153 + $0x160] sm:%s145] %v330
                %v332 = vld [vmem:[%s152 + $0x244] sm:%s145]
                %333 = vst [vmem:[%s153 + $0x164] sm:%s145] %v332
                %v334 = vld [vmem:[%s152 + $0x248] sm:%s145]
                %335 = vst [vmem:[%s153 + $0x168] sm:%s145] %v334
                %v336 = vld [vmem:[%s152 + $0x24c] sm:%s145]
                %337 = vst [vmem:[%s153 + $0x16c] sm:%s145] %v336
                %v338 = vld [vmem:[%s152 + $0x250] sm:%s145]
                %339 = vst [vmem:[%s153 + $0x170] sm:%s145] %v338
                %v340 = vld [vmem:[%s152 + $0x254] sm:%s145]
                %341 = vst [vmem:[%s153 + $0x174] sm:%s145] %v340
                %v342 = vld [vmem:[%s152 + $0x258] sm:%s145]
                %343 = vst [vmem:[%s153 + $0x178] sm:%s145] %v342
                %v344 = vld [vmem:[%s152 + $0x25c] sm:%s145]
                %345 = vst [vmem:[%s153 + $0x17c] sm:%s145] %v344
                %v346 = vld [vmem:[%s152 + $0x260] sm:%s145]
                %347 = vst [vmem:[%s153 + $0x180] sm:%s145] %v346
                %v348 = vld [vmem:[%s152 + $0x264] sm:%s145]
                %349 = vst [vmem:[%s153 + $0x184] sm:%s145] %v348
                %v350 = vld [vmem:[%s152 + $0x268] sm:%s145]
                %351 = vst [vmem:[%s153 + $0x188] sm:%s145] %v350
                %v352 = vld [vmem:[%s152 + $0x26c] sm:%s145]
                %353 = vst [vmem:[%s153 + $0x18c] sm:%s145] %v352
                %v354 = vld [vmem:[%s152 + $0x270] sm:%s145]
                %355 = vst [vmem:[%s153 + $0x190] sm:%s145] %v354
                %v356 = vld [vmem:[%s152 + $0x274] sm:%s145]
                %357 = vst [vmem:[%s153 + $0x194] sm:%s145] %v356
                %v358 = vld [vmem:[%s152 + $0x278] sm:%s145]
                %359 = vst [vmem:[%s153 + $0x198] sm:%s145] %v358
                %v360 = vld [vmem:[%s152 + $0x27c] sm:%s145]
                %361 = vst [vmem:[%s153 + $0x19c] sm:%s145] %v360
                %v362 = vld [vmem:[%s152 + $0x280] sm:%s145]
                %363 = vst [vmem:[%s153 + $0x1a0] sm:%s145] %v362
                %v364 = vld [vmem:[%s152 + $0x284] sm:%s145]
                %365 = vst [vmem:[%s153 + $0x1a4] sm:%s145] %v364
                %v366 = vld [vmem:[%s152 + $0x288] sm:%s145]
                %367 = vst [vmem:[%s153 + $0x1a8] sm:%s145] %v366
                %v368 = vld [vmem:[%s152 + $0x28c] sm:%s145]
                %369 = vst [vmem:[%s153 + $0x1ac] sm:%s145] %v368
                %v370 = vld [vmem:[%s152 + $0x290] sm:%s145]
                %371 = vst [vmem:[%s153 + $0x1b0] sm:%s145] %v370
                %v372 = vld [vmem:[%s152 + $0x294] sm:%s145]
                %373 = vst [vmem:[%s153 + $0x1b4] sm:%s145] %v372
                %v374 = vld [vmem:[%s152 + $0x298] sm:%s145]
                %375 = vst [vmem:[%s153 + $0x1b8] sm:%s145] %v374
                %v376 = vld [vmem:[%s152 + $0x29c] sm:%s145]
                %377 = vst [vmem:[%s153 + $0x1bc] sm:%s145] %v376
                %v378 = vld [vmem:[%s152 + $0x380] sm:%s145]
                %379 = vst [vmem:[%s153 + $0x1c0] sm:%s145] %v378
                %v380 = vld [vmem:[%s152 + $0x384] sm:%s145]
                %381 = vst [vmem:[%s153 + $0x1c4] sm:%s145] %v380
                %v382 = vld [vmem:[%s152 + $0x388] sm:%s145]
                %383 = vst [vmem:[%s153 + $0x1c8] sm:%s145] %v382
                %v384 = vld [vmem:[%s152 + $0x38c] sm:%s145]
                %385 = vst [vmem:[%s153 + $0x1cc] sm:%s145] %v384
                %v386 = vld [vmem:[%s152 + $0x390] sm:%s145]
                %387 = vst [vmem:[%s153 + $0x1d0] sm:%s145] %v386
                %v388 = vld [vmem:[%s152 + $0x394] sm:%s145]
                %389 = vst [vmem:[%s153 + $0x1d4] sm:%s145] %v388
                %v390 = vld [vmem:[%s152 + $0x398] sm:%s145]
                %391 = vst [vmem:[%s153 + $0x1d8] sm:%s145] %v390
                %v392 = vld [vmem:[%s152 + $0x39c] sm:%s145]
                %393 = vst [vmem:[%s153 + $0x1dc] sm:%s145] %v392
                %v394 = vld [vmem:[%s152 + $0x3a0] sm:%s145]
                %395 = vst [vmem:[%s153 + $0x1e0] sm:%s145] %v394
                %v396 = vld [vmem:[%s152 + $0x3a4] sm:%s145]
                %397 = vst [vmem:[%s153 + $0x1e4] sm:%s145] %v396
                %v398 = vld [vmem:[%s152 + $0x3a8] sm:%s145]
                %399 = vst [vmem:[%s153 + $0x1e8] sm:%s145] %v398
                %v400 = vld [vmem:[%s152 + $0x3ac] sm:%s145]
                %401 = vst [vmem:[%s153 + $0x1ec] sm:%s145] %v400
                %v402 = vld [vmem:[%s152 + $0x3b0] sm:%s145]
                %403 = vst [vmem:[%s153 + $0x1f0] sm:%s145] %v402
                %v404 = vld [vmem:[%s152 + $0x3b4] sm:%s145]
                %405 = vst [vmem:[%s153 + $0x1f4] sm:%s145] %v404
                %v406 = vld [vmem:[%s152 + $0x3b8] sm:%s145]
                %407 = vst [vmem:[%s153 + $0x1f8] sm:%s145] %v406
                %v408 = vld [vmem:[%s152 + $0x3bc] sm:%s145]
                %409 = vst [vmem:[%s153 + $0x1fc] sm:%s145] %v408
                %v410 = vld [vmem:[%s152 + $0x3c0] sm:%s145]
                %411 = vst [vmem:[%s153 + $0x200] sm:%s145] %v410
                %v412 = vld [vmem:[%s152 + $0x3c4] sm:%s145]
                %413 = vst [vmem:[%s153 + $0x204] sm:%s145] %v412
                %v414 = vld [vmem:[%s152 + $0x3c8] sm:%s145]
                %415 = vst [vmem:[%s153 + $0x208] sm:%s145] %v414
                %v416 = vld [vmem:[%s152 + $0x3cc] sm:%s145]
                %417 = vst [vmem:[%s153 + $0x20c] sm:%s145] %v416
                %v418 = vld [vmem:[%s152 + $0x3d0] sm:%s145]
                %419 = vst [vmem:[%s153 + $0x210] sm:%s145] %v418
                %v420 = vld [vmem:[%s152 + $0x3d4] sm:%s145]
                %421 = vst [vmem:[%s153 + $0x214] sm:%s145] %v420
                %v422 = vld [vmem:[%s152 + $0x3d8] sm:%s145]
                %423 = vst [vmem:[%s153 + $0x218] sm:%s145] %v422
                %v424 = vld [vmem:[%s152 + $0x3dc] sm:%s145]
                %425 = vst [vmem:[%s153 + $0x21c] sm:%s145] %v424
                %v426 = vld [vmem:[%s152 + $0x3e0] sm:%s145]
                %427 = vst [vmem:[%s153 + $0x220] sm:%s145] %v426
                %v428 = vld [vmem:[%s152 + $0x3e4] sm:%s145]
                %429 = vst [vmem:[%s153 + $0x224] sm:%s145] %v428
                %v430 = vld [vmem:[%s152 + $0x3e8] sm:%s145]
                %431 = vst [vmem:[%s153 + $0x228] sm:%s145] %v430
                %v432 = vld [vmem:[%s152 + $0x3ec] sm:%s145]
                %433 = vst [vmem:[%s153 + $0x22c] sm:%s145] %v432
                %v434 = vld [vmem:[%s152 + $0x3f0] sm:%s145]
                %435 = vst [vmem:[%s153 + $0x230] sm:%s145] %v434
                %v436 = vld [vmem:[%s152 + $0x3f4] sm:%s145]
                %437 = vst [vmem:[%s153 + $0x234] sm:%s145] %v436
                %v438 = vld [vmem:[%s152 + $0x3f8] sm:%s145]
                %439 = vst [vmem:[%s153 + $0x238] sm:%s145] %v438
                %v440 = vld [vmem:[%s152 + $0x3fc] sm:%s145]
                %441 = vst [vmem:[%s153 + $0x23c] sm:%s145] %v440
                %v442 = vld [vmem:[%s152 + $0x400] sm:%s145]
                %443 = vst [vmem:[%s153 + $0x240] sm:%s145] %v442
                %v444 = vld [vmem:[%s152 + $0x404] sm:%s145]
                %445 = vst [vmem:[%s153 + $0x244] sm:%s145] %v444
                %v446 = vld [vmem:[%s152 + $0x408] sm:%s145]
                %447 = vst [vmem:[%s153 + $0x248] sm:%s145] %v446
                %v448 = vld [vmem:[%s152 + $0x40c] sm:%s145]
                %449 = vst [vmem:[%s153 + $0x24c] sm:%s145] %v448
                %v450 = vld [vmem:[%s152 + $0x410] sm:%s145]
                %451 = vst [vmem:[%s153 + $0x250] sm:%s145] %v450
                %v452 = vld [vmem:[%s152 + $0x414] sm:%s145]
                %453 = vst [vmem:[%s153 + $0x254] sm:%s145] %v452
                %v454 = vld [vmem:[%s152 + $0x418] sm:%s145]
                %455 = vst [vmem:[%s153 + $0x258] sm:%s145] %v454
                %v456 = vld [vmem:[%s152 + $0x41c] sm:%s145]
                %457 = vst [vmem:[%s153 + $0x25c] sm:%s145] %v456
                %v458 = vld [vmem:[%s152 + $0x420] sm:%s145]
                %459 = vst [vmem:[%s153 + $0x260] sm:%s145] %v458
                %v460 = vld [vmem:[%s152 + $0x424] sm:%s145]
                %461 = vst [vmem:[%s153 + $0x264] sm:%s145] %v460
                %v462 = vld [vmem:[%s152 + $0x428] sm:%s145]
                %463 = vst [vmem:[%s153 + $0x268] sm:%s145] %v462
                %v464 = vld [vmem:[%s152 + $0x42c] sm:%s145]
                %465 = vst [vmem:[%s153 + $0x26c] sm:%s145] %v464
                %v466 = vld [vmem:[%s152 + $0x430] sm:%s145]
                %467 = vst [vmem:[%s153 + $0x270] sm:%s145] %v466
                %v468 = vld [vmem:[%s152 + $0x434] sm:%s145]
                %469 = vst [vmem:[%s153 + $0x274] sm:%s145] %v468
                %v470 = vld [vmem:[%s152 + $0x438] sm:%s145]
                %471 = vst [vmem:[%s153 + $0x278] sm:%s145] %v470
                %v472 = vld [vmem:[%s152 + $0x43c] sm:%s145]
                %473 = vst [vmem:[%s153 + $0x27c] sm:%s145] %v472
                %v474 = vld [vmem:[%s152 + $0x440] sm:%s145]
                %475 = vst [vmem:[%s153 + $0x280] sm:%s145] %v474
                %v476 = vld [vmem:[%s152 + $0x444] sm:%s145]
                %477 = vst [vmem:[%s153 + $0x284] sm:%s145] %v476
                %v478 = vld [vmem:[%s152 + $0x448] sm:%s145]
                %479 = vst [vmem:[%s153 + $0x288] sm:%s145] %v478
                %v480 = vld [vmem:[%s152 + $0x44c] sm:%s145]
                %481 = vst [vmem:[%s153 + $0x28c] sm:%s145] %v480
                %v482 = vld [vmem:[%s152 + $0x450] sm:%s145]
                %483 = vst [vmem:[%s153 + $0x290] sm:%s145] %v482
                %v484 = vld [vmem:[%s152 + $0x454] sm:%s145]
                %485 = vst [vmem:[%s153 + $0x294] sm:%s145] %v484
                %v486 = vld [vmem:[%s152 + $0x458] sm:%s145]
                %487 = vst [vmem:[%s153 + $0x298] sm:%s145] %v486
                %v488 = vld [vmem:[%s152 + $0x45c] sm:%s145]
                %489 = vst [vmem:[%s153 + $0x29c] sm:%s145] %v488
                %v490 = vld [vmem:[%s152 + $0x540] sm:%s145]
                %491 = vst [vmem:[%s153 + $0x2a0] sm:%s145] %v490
                %v492 = vld [vmem:[%s152 + $0x544] sm:%s145]
                %493 = vst [vmem:[%s153 + $0x2a4] sm:%s145] %v492
                %v494 = vld [vmem:[%s152 + $0x548] sm:%s145]
                %495 = vst [vmem:[%s153 + $0x2a8] sm:%s145] %v494
                %v496 = vld [vmem:[%s152 + $0x54c] sm:%s145]
                %497 = vst [vmem:[%s153 + $0x2ac] sm:%s145] %v496
                %v498 = vld [vmem:[%s152 + $0x550] sm:%s145]
                %499 = vst [vmem:[%s153 + $0x2b0] sm:%s145] %v498
                %v500 = vld [vmem:[%s152 + $0x554] sm:%s145]
                %501 = vst [vmem:[%s153 + $0x2b4] sm:%s145] %v500
                %v502 = vld [vmem:[%s152 + $0x558] sm:%s145]
                %503 = vst [vmem:[%s153 + $0x2b8] sm:%s145] %v502
                %v504 = vld [vmem:[%s152 + $0x55c] sm:%s145]
                %505 = vst [vmem:[%s153 + $0x2bc] sm:%s145] %v504
                %v506 = vld [vmem:[%s152 + $0x560] sm:%s145]
                %507 = vst [vmem:[%s153 + $0x2c0] sm:%s145] %v506
                %v508 = vld [vmem:[%s152 + $0x564] sm:%s145]
                %509 = vst [vmem:[%s153 + $0x2c4] sm:%s145] %v508
                %v510 = vld [vmem:[%s152 + $0x568] sm:%s145]
                %511 = vst [vmem:[%s153 + $0x2c8] sm:%s145] %v510
                %v512 = vld [vmem:[%s152 + $0x56c] sm:%s145]
                %513 = vst [vmem:[%s153 + $0x2cc] sm:%s145] %v512
                %v514 = vld [vmem:[%s152 + $0x570] sm:%s145]
                %515 = vst [vmem:[%s153 + $0x2d0] sm:%s145] %v514
                %v516 = vld [vmem:[%s152 + $0x574] sm:%s145]
                %517 = vst [vmem:[%s153 + $0x2d4] sm:%s145] %v516
                %v518 = vld [vmem:[%s152 + $0x578] sm:%s145]
                %519 = vst [vmem:[%s153 + $0x2d8] sm:%s145] %v518
                %v520 = vld [vmem:[%s152 + $0x57c] sm:%s145]
                %521 = vst [vmem:[%s153 + $0x2dc] sm:%s145] %v520
                %v522 = vld [vmem:[%s152 + $0x580] sm:%s145]
                %523 = vst [vmem:[%s153 + $0x2e0] sm:%s145] %v522
                %v524 = vld [vmem:[%s152 + $0x584] sm:%s145]
                %525 = vst [vmem:[%s153 + $0x2e4] sm:%s145] %v524
                %v526 = vld [vmem:[%s152 + $0x588] sm:%s145]
                %527 = vst [vmem:[%s153 + $0x2e8] sm:%s145] %v526
                %v528 = vld [vmem:[%s152 + $0x58c] sm:%s145]
                %529 = vst [vmem:[%s153 + $0x2ec] sm:%s145] %v528
                %v530 = vld [vmem:[%s152 + $0x590] sm:%s145]
                %531 = vst [vmem:[%s153 + $0x2f0] sm:%s145] %v530
                %v532 = vld [vmem:[%s152 + $0x594] sm:%s145]
                %533 = vst [vmem:[%s153 + $0x2f4] sm:%s145] %v532
                %v534 = vld [vmem:[%s152 + $0x598] sm:%s145]
                %535 = vst [vmem:[%s153 + $0x2f8] sm:%s145] %v534
                %v536 = vld [vmem:[%s152 + $0x59c] sm:%s145]
                %537 = vst [vmem:[%s153 + $0x2fc] sm:%s145] %v536
                %v538 = vld [vmem:[%s152 + $0x5a0] sm:%s145]
                %539 = vst [vmem:[%s153 + $0x300] sm:%s145] %v538
                %v540 = vld [vmem:[%s152 + $0x5a4] sm:%s145]
                %541 = vst [vmem:[%s153 + $0x304] sm:%s145] %v540
                %v542 = vld [vmem:[%s152 + $0x5a8] sm:%s145]
                %543 = vst [vmem:[%s153 + $0x308] sm:%s145] %v542
                %v544 = vld [vmem:[%s152 + $0x5ac] sm:%s145]
                %545 = vst [vmem:[%s153 + $0x30c] sm:%s145] %v544
                %v546 = vld [vmem:[%s152 + $0x5b0] sm:%s145]
                %547 = vst [vmem:[%s153 + $0x310] sm:%s145] %v546
                %v548 = vld [vmem:[%s152 + $0x5b4] sm:%s145]
                %549 = vst [vmem:[%s153 + $0x314] sm:%s145] %v548
                %v550 = vld [vmem:[%s152 + $0x5b8] sm:%s145]
                %551 = vst [vmem:[%s153 + $0x318] sm:%s145] %v550
                %v552 = vld [vmem:[%s152 + $0x5bc] sm:%s145]
                %553 = vst [vmem:[%s153 + $0x31c] sm:%s145] %v552
                %v554 = vld [vmem:[%s152 + $0x5c0] sm:%s145]
                %555 = vst [vmem:[%s153 + $0x320] sm:%s145] %v554
                %v556 = vld [vmem:[%s152 + $0x5c4] sm:%s145]
                %557 = vst [vmem:[%s153 + $0x324] sm:%s145] %v556
                %v558 = vld [vmem:[%s152 + $0x5c8] sm:%s145]
                %559 = vst [vmem:[%s153 + $0x328] sm:%s145] %v558
                %v560 = vld [vmem:[%s152 + $0x5cc] sm:%s145]
                %561 = vst [vmem:[%s153 + $0x32c] sm:%s145] %v560
                %v562 = vld [vmem:[%s152 + $0x5d0] sm:%s145]
                %563 = vst [vmem:[%s153 + $0x330] sm:%s145] %v562
                %v564 = vld [vmem:[%s152 + $0x5d4] sm:%s145]
                %565 = vst [vmem:[%s153 + $0x334] sm:%s145] %v564
                %v566 = vld [vmem:[%s152 + $0x5d8] sm:%s145]
                %567 = vst [vmem:[%s153 + $0x338] sm:%s145] %v566
                %v568 = vld [vmem:[%s152 + $0x5dc] sm:%s145]
                %569 = vst [vmem:[%s153 + $0x33c] sm:%s145] %v568
                %v570 = vld [vmem:[%s152 + $0x5e0] sm:%s145]
                %571 = vst [vmem:[%s153 + $0x340] sm:%s145] %v570
                %v572 = vld [vmem:[%s152 + $0x5e4] sm:%s145]
                %573 = vst [vmem:[%s153 + $0x344] sm:%s145] %v572
                %v574 = vld [vmem:[%s152 + $0x5e8] sm:%s145]
                %575 = vst [vmem:[%s153 + $0x348] sm:%s145] %v574
                %v576 = vld [vmem:[%s152 + $0x5ec] sm:%s145]
                %577 = vst [vmem:[%s153 + $0x34c] sm:%s145] %v576
                %v578 = vld [vmem:[%s152 + $0x5f0] sm:%s145]
                %579 = vst [vmem:[%s153 + $0x350] sm:%s145] %v578
                %v580 = vld [vmem:[%s152 + $0x5f4] sm:%s145]
                %581 = vst [vmem:[%s153 + $0x354] sm:%s145] %v580
                %v582 = vld [vmem:[%s152 + $0x5f8] sm:%s145]
                %583 = vst [vmem:[%s153 + $0x358] sm:%s145] %v582
                %v584 = vld [vmem:[%s152 + $0x5fc] sm:%s145]
                %585 = vst [vmem:[%s153 + $0x35c] sm:%s145] %v584
                %v586 = vld [vmem:[%s152 + $0x600] sm:%s145]
                %587 = vst [vmem:[%s153 + $0x360] sm:%s145] %v586
                %v588 = vld [vmem:[%s152 + $0x604] sm:%s145]
                %589 = vst [vmem:[%s153 + $0x364] sm:%s145] %v588
                %v590 = vld [vmem:[%s152 + $0x608] sm:%s145]
                %591 = vst [vmem:[%s153 + $0x368] sm:%s145] %v590
                %v592 = vld [vmem:[%s152 + $0x60c] sm:%s145]
                %593 = vst [vmem:[%s153 + $0x36c] sm:%s145] %v592
                %v594 = vld [vmem:[%s152 + $0x610] sm:%s145]
                %595 = vst [vmem:[%s153 + $0x370] sm:%s145] %v594
                %v596 = vld [vmem:[%s152 + $0x614] sm:%s145]
                %597 = vst [vmem:[%s153 + $0x374] sm:%s145] %v596
                %v598 = vld [vmem:[%s152 + $0x618] sm:%s145]
                %599 = vst [vmem:[%s153 + $0x378] sm:%s145] %v598
                %v600 = vld [vmem:[%s152 + $0x61c] sm:%s145]
                %601 = vst [vmem:[%s153 + $0x37c] sm:%s145] %v600
              $region45: #{triplet_forward.4} parent=39 // loop_footer
                %s151 = sadd.s32 1, %s147
              $region46: #{triplet_forward.4} parent=39 // loop_footer_branch
                %146 = sbr.rel target = $region42
              $region47: #{triplet_forward.4} parent=39 // loop_exit
                _
            $region40: #{triplet_forward.4} parent=31 // pred_fallthru
              _
          $region32: #{triplet_forward.4} parent=27 // pred_fallthru
            _
          %1070 = vnop
        $region28: #{triplet_forward.4} parent=23 // pred_fallthru
          _
      $region24: #{triplet_forward.4} parent=5 // pred_fallthru
        _
      %p1071 = scmp.le.s32.totalorder 1, %s9
      %p1072 = scmp.lt.s32.totalorder %s9, 3
      %p1073 = pnand %p1071, %p1072
      %p1074 = pneg %p1073
      // Predicated region
      $region66: #{triplet_forward.4} parent=5 // pred_check
        _
      $region67: #{triplet_forward.4} parent=5 // pred_check_branch
        %1076 = sbr.rel (%p1073) target = $region69
      $region68: #{triplet_forward.4} parent=5 // pred_region
        %s1077 = ssub.s32 %s9, 1
        %s1078 = sand.u32 %s22, 1
        %s1079 = sand.u32 %s22, 1
        %s1080 = smul.addr %s1079, 896
        %s1081 = scalar_lea.vmem [#allocation2], %s1080
        // Predicated region
        $region70: #{triplet_forward.4} parent=68 // pred_check
          %p1082 = pneg %p35
        $region71: #{triplet_forward.4} parent=68 // pred_check_branch
          %1084 = sbr.rel (%p1082) target = $region73
        $region72: #{triplet_forward.4} parent=68 // pred_region
          _
        $region73: #{triplet_forward.4} parent=68 // pred_fallthru
          _
        %s1085 = sand.u32 %s22, 1
        %s1086 = sand.u32 %s22, 1
        %s1087 = smul.addr %s1086, 896
        %s1088 = scalar_lea.vmem [#allocation2], %s1087
        %p1089 = pneg %p35
        %p1090 = pneg %p32
        %p1091 = pneg %p56
        %p1092 = pneg %p53
        %p1093 = pneg %p77
        %p1094 = pneg %p74
        %p1095 = pneg %p103
        %p1096 = pneg %p100
        %s1097 = smul.u32 56, %s14
        %p1098 = scmp.lt.s32.totalorder %s1097, 111
        %s1099 = scalar_select %p1098, %s1097, 111
        %s1100 = smul.addr %s1099, 4
        %s1101 = scalar_lea.vmem %s3, %s1100
        %s1102 = smul.u32 56, %s14
        %s1103 = smul.u32 56, %s14
        %p1104 = scmp.lt.s32.totalorder %s1103, 111
        %s1105 = scalar_select %p1104, %s1103, 111
        %s1106 = smul.addr %s1105, 4
        %s1107 = scalar_lea.vmem %s3, %s1106
        %s1108 = smul.u32 56, %s14
        %v1109 = vld [vmem:[%s1081] sm:$0xf]
        %v1110 = vld [vmem:[%s1081 + $0x4] sm:$0xf]
        %v1111 = vld [vmem:[%s1081 + $0x8] sm:$0xf]
        %v1112 = vld [vmem:[%s1081 + $0xc] sm:$0xf]
        %v1113 = vld [vmem:[%s1081 + $0x10] sm:$0xf]
        %v1114 = vld [vmem:[%s1081 + $0x14] sm:$0xf]
        %v1115 = vld [vmem:[%s1081 + $0x18] sm:$0xf]
        %v1116 = vld [vmem:[%s1081 + $0x1c] sm:$0xf]
        %v1117 = vld [vmem:[%s1081 + $0x20] sm:$0xf]
        %v1118 = vld [vmem:[%s1081 + $0x24] sm:$0xf]
        %v1119 = vld [vmem:[%s1081 + $0x28] sm:$0xf]
        %v1120 = vld [vmem:[%s1081 + $0x2c] sm:$0xf]
        %v1121 = vld [vmem:[%s1081 + $0x30] sm:$0xf]
        %v1122 = vld [vmem:[%s1081 + $0x34] sm:$0xf]
        %v1123 = vld [vmem:[%s1081 + $0x38] sm:$0xf]
        %v1124 = vld [vmem:[%s1081 + $0x3c] sm:$0xf]
        %v1125 = vld [vmem:[%s1081 + $0x40] sm:$0xf]
        %v1126 = vld [vmem:[%s1081 + $0x44] sm:$0xf]
        %v1127 = vld [vmem:[%s1081 + $0x48] sm:$0xf]
        %v1128 = vld [vmem:[%s1081 + $0x4c] sm:$0xf]
        %v1129 = vld [vmem:[%s1081 + $0x50] sm:$0xf]
        %v1130 = vld [vmem:[%s1081 + $0x54] sm:$0xf]
        %v1131 = vld [vmem:[%s1081 + $0x58] sm:$0xf]
        %v1132 = vld [vmem:[%s1081 + $0x5c] sm:$0xf]
        %v1133 = vld [vmem:[%s1081 + $0x60] sm:$0xf]
        %v1134 = vld [vmem:[%s1081 + $0x64] sm:$0xf]
        %v1135 = vld [vmem:[%s1081 + $0x68] sm:$0xf]
        %v1136 = vld [vmem:[%s1081 + $0x6c] sm:$0xf]
        %v1137 = vld [vmem:[%s1081 + $0x70] sm:$0xf]
        %v1138 = vld [vmem:[%s1081 + $0x74] sm:$0xf]
        %v1139 = vld [vmem:[%s1081 + $0x78] sm:$0xf]
        %v1140 = vld [vmem:[%s1081 + $0x7c] sm:$0xf]
        %v1141 = vld [vmem:[%s1081 + $0x80] sm:$0xf]
        %v1142 = vld [vmem:[%s1081 + $0x84] sm:$0xf]
        %v1143 = vld [vmem:[%s1081 + $0x88] sm:$0xf]
        %v1144 = vld [vmem:[%s1081 + $0x8c] sm:$0xf]
        %v1145 = vld [vmem:[%s1081 + $0x90] sm:$0xf]
        %v1146 = vld [vmem:[%s1081 + $0x94] sm:$0xf]
        %v1147 = vld [vmem:[%s1081 + $0x98] sm:$0xf]
        %v1148 = vld [vmem:[%s1081 + $0x9c] sm:$0xf]
        %v1149 = vld [vmem:[%s1081 + $0xa0] sm:$0xf]
        %v1150 = vld [vmem:[%s1081 + $0xa4] sm:$0xf]
        %v1151 = vld [vmem:[%s1081 + $0xa8] sm:$0xf]
        %v1152 = vld [vmem:[%s1081 + $0xac] sm:$0xf]
        %v1153 = vld [vmem:[%s1081 + $0xb0] sm:$0xf]
        %v1154 = vld [vmem:[%s1081 + $0xb4] sm:$0xf]
        %v1155 = vld [vmem:[%s1081 + $0xb8] sm:$0xf]
        %v1156 = vld [vmem:[%s1081 + $0xbc] sm:$0xf]
        %v1157 = vld [vmem:[%s1081 + $0xc0] sm:$0xf]
        %v1158 = vld [vmem:[%s1081 + $0xc4] sm:$0xf]
        %v1159 = vld [vmem:[%s1081 + $0xc8] sm:$0xf]
        %v1160 = vld [vmem:[%s1081 + $0xcc] sm:$0xf]
        %v1161 = vld [vmem:[%s1081 + $0xd0] sm:$0xf]
        %v1162 = vld [vmem:[%s1081 + $0xd4] sm:$0xf]
        %v1163 = vld [vmem:[%s1081 + $0xd8] sm:$0xf]
        %v1164 = vld [vmem:[%s1081 + $0xdc] sm:$0xf]
        %v1165 = vld [vmem:[%s1081 + $0xe0] sm:$0xf]
        %v1166 = vld [vmem:[%s1081 + $0xe4] sm:$0xf]
        %v1167 = vld [vmem:[%s1081 + $0xe8] sm:$0xf]
        %v1168 = vld [vmem:[%s1081 + $0xec] sm:$0xf]
        %v1169 = vld [vmem:[%s1081 + $0xf0] sm:$0xf]
        %v1170 = vld [vmem:[%s1081 + $0xf4] sm:$0xf]
        %v1171 = vld [vmem:[%s1081 + $0xf8] sm:$0xf]
        %v1172 = vld [vmem:[%s1081 + $0xfc] sm:$0xf]
        %v1173 = vld [vmem:[%s1081 + $0x100] sm:$0xf]
        %v1174 = vld [vmem:[%s1081 + $0x104] sm:$0xf]
        %v1175 = vld [vmem:[%s1081 + $0x108] sm:$0xf]
        %v1176 = vld [vmem:[%s1081 + $0x10c] sm:$0xf]
        %v1177 = vld [vmem:[%s1081 + $0x110] sm:$0xf]
        %v1178 = vld [vmem:[%s1081 + $0x114] sm:$0xf]
        %v1179 = vld [vmem:[%s1081 + $0x118] sm:$0xf]
        %v1180 = vld [vmem:[%s1081 + $0x11c] sm:$0xf]
        %v1181 = vld [vmem:[%s1081 + $0x120] sm:$0xf]
        %v1182 = vld [vmem:[%s1081 + $0x124] sm:$0xf]
        %v1183 = vld [vmem:[%s1081 + $0x128] sm:$0xf]
        %v1184 = vld [vmem:[%s1081 + $0x12c] sm:$0xf]
        %v1185 = vld [vmem:[%s1081 + $0x130] sm:$0xf]
        %v1186 = vld [vmem:[%s1081 + $0x134] sm:$0xf]
        %v1187 = vld [vmem:[%s1081 + $0x138] sm:$0xf]
        %v1188 = vld [vmem:[%s1081 + $0x13c] sm:$0xf]
        %v1189 = vld [vmem:[%s1081 + $0x140] sm:$0xf]
        %v1190 = vld [vmem:[%s1081 + $0x144] sm:$0xf]
        %v1191 = vld [vmem:[%s1081 + $0x148] sm:$0xf]
        %v1192 = vld [vmem:[%s1081 + $0x14c] sm:$0xf]
        %v1193 = vld [vmem:[%s1081 + $0x150] sm:$0xf]
        %v1194 = vld [vmem:[%s1081 + $0x154] sm:$0xf]
        %v1195 = vld [vmem:[%s1081 + $0x158] sm:$0xf]
        %v1196 = vld [vmem:[%s1081 + $0x15c] sm:$0xf]
        %v1197 = vld [vmem:[%s1081 + $0x160] sm:$0xf]
        %v1198 = vld [vmem:[%s1081 + $0x164] sm:$0xf]
        %v1199 = vld [vmem:[%s1081 + $0x168] sm:$0xf]
        %v1200 = vld [vmem:[%s1081 + $0x16c] sm:$0xf]
        %v1201 = vld [vmem:[%s1081 + $0x170] sm:$0xf]
        %v1202 = vld [vmem:[%s1081 + $0x174] sm:$0xf]
        %v1203 = vld [vmem:[%s1081 + $0x178] sm:$0xf]
        %v1204 = vld [vmem:[%s1081 + $0x17c] sm:$0xf]
        %v1205 = vld [vmem:[%s1081 + $0x180] sm:$0xf]
        %v1206 = vld [vmem:[%s1081 + $0x184] sm:$0xf]
        %v1207 = vld [vmem:[%s1081 + $0x188] sm:$0xf]
        %v1208 = vld [vmem:[%s1081 + $0x18c] sm:$0xf]
        %v1209 = vld [vmem:[%s1081 + $0x190] sm:$0xf]
        %v1210 = vld [vmem:[%s1081 + $0x194] sm:$0xf]
        %v1211 = vld [vmem:[%s1081 + $0x198] sm:$0xf]
        %v1212 = vld [vmem:[%s1081 + $0x19c] sm:$0xf]
        %v1213 = vld [vmem:[%s1081 + $0x1a0] sm:$0xf]
        %v1214 = vld [vmem:[%s1081 + $0x1a4] sm:$0xf]
        %v1215 = vld [vmem:[%s1081 + $0x1a8] sm:$0xf]
        %v1216 = vld [vmem:[%s1081 + $0x1ac] sm:$0xf]
        %v1217 = vld [vmem:[%s1081 + $0x1b0] sm:$0xf]
        %v1218 = vld [vmem:[%s1081 + $0x1b4] sm:$0xf]
        %v1219 = vld [vmem:[%s1081 + $0x1b8] sm:$0xf]
        %v1220 = vld [vmem:[%s1081 + $0x1bc] sm:$0xf]
        %v1221 = vld [vmem:[%s1081 + $0x1c0] sm:$0xf]
        %v1222 = vld [vmem:[%s1081 + $0x1c4] sm:$0xf]
        %v1223 = vld [vmem:[%s1081 + $0x1c8] sm:$0xf]
        %v1224 = vld [vmem:[%s1081 + $0x1cc] sm:$0xf]
        %v1225 = vld [vmem:[%s1081 + $0x1d0] sm:$0xf]
        %v1226 = vld [vmem:[%s1081 + $0x1d4] sm:$0xf]
        %v1227 = vld [vmem:[%s1081 + $0x1d8] sm:$0xf]
        %v1228 = vld [vmem:[%s1081 + $0x1dc] sm:$0xf]
        %v1229 = vld [vmem:[%s1081 + $0x1e0] sm:$0xf]
        %v1230 = vld [vmem:[%s1081 + $0x1e4] sm:$0xf]
        %v1231 = vld [vmem:[%s1081 + $0x1e8] sm:$0xf]
        %v1232 = vld [vmem:[%s1081 + $0x1ec] sm:$0xf]
        %v1233 = vld [vmem:[%s1081 + $0x1f0] sm:$0xf]
        %v1234 = vld [vmem:[%s1081 + $0x1f4] sm:$0xf]
        %v1235 = vld [vmem:[%s1081 + $0x1f8] sm:$0xf]
        %v1236 = vld [vmem:[%s1081 + $0x1fc] sm:$0xf]
        %v1237 = vld [vmem:[%s1081 + $0x200] sm:$0xf]
        %v1238 = vld [vmem:[%s1081 + $0x204] sm:$0xf]
        %v1239 = vld [vmem:[%s1081 + $0x208] sm:$0xf]
        %v1240 = vld [vmem:[%s1081 + $0x20c] sm:$0xf]
        %v1241 = vld [vmem:[%s1081 + $0x210] sm:$0xf]
        %v1242 = vld [vmem:[%s1081 + $0x214] sm:$0xf]
        %v1243 = vld [vmem:[%s1081 + $0x218] sm:$0xf]
        %v1244 = vld [vmem:[%s1081 + $0x21c] sm:$0xf]
        %v1245 = vld [vmem:[%s1081 + $0x220] sm:$0xf]
        %v1246 = vld [vmem:[%s1081 + $0x224] sm:$0xf]
        %v1247 = vld [vmem:[%s1081 + $0x228] sm:$0xf]
        %v1248 = vld [vmem:[%s1081 + $0x22c] sm:$0xf]
        %v1249 = vld [vmem:[%s1081 + $0x230] sm:$0xf]
        %v1250 = vld [vmem:[%s1081 + $0x234] sm:$0xf]
        %v1251 = vld [vmem:[%s1081 + $0x238] sm:$0xf]
        %v1252 = vld [vmem:[%s1081 + $0x23c] sm:$0xf]
        %v1253 = vld [vmem:[%s1081 + $0x240] sm:$0xf]
        %v1254 = vld [vmem:[%s1081 + $0x244] sm:$0xf]
        %v1255 = vld [vmem:[%s1081 + $0x248] sm:$0xf]
        %v1256 = vld [vmem:[%s1081 + $0x24c] sm:$0xf]
        %v1257 = vld [vmem:[%s1081 + $0x250] sm:$0xf]
        %v1258 = vld [vmem:[%s1081 + $0x254] sm:$0xf]
        %v1259 = vld [vmem:[%s1081 + $0x258] sm:$0xf]
        %v1260 = vld [vmem:[%s1081 + $0x25c] sm:$0xf]
        %v1261 = vld [vmem:[%s1081 + $0x260] sm:$0xf]
        %v1262 = vld [vmem:[%s1081 + $0x264] sm:$0xf]
        %v1263 = vld [vmem:[%s1081 + $0x268] sm:$0xf]
        %v1264 = vld [vmem:[%s1081 + $0x26c] sm:$0xf]
        %v1265 = vld [vmem:[%s1081 + $0x270] sm:$0xf]
        %v1266 = vld [vmem:[%s1081 + $0x274] sm:$0xf]
        %v1267 = vld [vmem:[%s1081 + $0x278] sm:$0xf]
        %v1268 = vld [vmem:[%s1081 + $0x27c] sm:$0xf]
        %v1269 = vld [vmem:[%s1081 + $0x280] sm:$0xf]
        %v1270 = vld [vmem:[%s1081 + $0x284] sm:$0xf]
        %v1271 = vld [vmem:[%s1081 + $0x288] sm:$0xf]
        %v1272 = vld [vmem:[%s1081 + $0x28c] sm:$0xf]
        %v1273 = vld [vmem:[%s1081 + $0x290] sm:$0xf]
        %v1274 = vld [vmem:[%s1081 + $0x294] sm:$0xf]
        %v1275 = vld [vmem:[%s1081 + $0x298] sm:$0xf]
        %v1276 = vld [vmem:[%s1081 + $0x29c] sm:$0xf]
        %v1277 = vld [vmem:[%s1081 + $0x2a0] sm:$0xf]
        %v1278 = vld [vmem:[%s1081 + $0x2a4] sm:$0xf]
        %v1279 = vld [vmem:[%s1081 + $0x2a8] sm:$0xf]
        %v1280 = vld [vmem:[%s1081 + $0x2ac] sm:$0xf]
        %v1281 = vld [vmem:[%s1081 + $0x2b0] sm:$0xf]
        %v1282 = vld [vmem:[%s1081 + $0x2b4] sm:$0xf]
        %v1283 = vld [vmem:[%s1081 + $0x2b8] sm:$0xf]
        %v1284 = vld [vmem:[%s1081 + $0x2bc] sm:$0xf]
        %v1285 = vld [vmem:[%s1081 + $0x2c0] sm:$0xf]
        %v1286 = vld [vmem:[%s1081 + $0x2c4] sm:$0xf]
        %v1287 = vld [vmem:[%s1081 + $0x2c8] sm:$0xf]
        %v1288 = vld [vmem:[%s1081 + $0x2cc] sm:$0xf]
        %v1289 = vld [vmem:[%s1081 + $0x2d0] sm:$0xf]
        %v1290 = vld [vmem:[%s1081 + $0x2d4] sm:$0xf]
        %v1291 = vld [vmem:[%s1081 + $0x2d8] sm:$0xf]
        %v1292 = vld [vmem:[%s1081 + $0x2dc] sm:$0xf]
        %v1293 = vld [vmem:[%s1081 + $0x2e0] sm:$0xf]
        %v1294 = vld [vmem:[%s1081 + $0x2e4] sm:$0xf]
        %v1295 = vld [vmem:[%s1081 + $0x2e8] sm:$0xf]
        %v1296 = vld [vmem:[%s1081 + $0x2ec] sm:$0xf]
        %v1297 = vld [vmem:[%s1081 + $0x2f0] sm:$0xf]
        %v1298 = vld [vmem:[%s1081 + $0x2f4] sm:$0xf]
        %v1299 = vld [vmem:[%s1081 + $0x2f8] sm:$0xf]
        %v1300 = vld [vmem:[%s1081 + $0x2fc] sm:$0xf]
        %v1301 = vld [vmem:[%s1081 + $0x300] sm:$0xf]
        %v1302 = vld [vmem:[%s1081 + $0x304] sm:$0xf]
        %v1303 = vld [vmem:[%s1081 + $0x308] sm:$0xf]
        %v1304 = vld [vmem:[%s1081 + $0x30c] sm:$0xf]
        %v1305 = vld [vmem:[%s1081 + $0x310] sm:$0xf]
        %v1306 = vld [vmem:[%s1081 + $0x314] sm:$0xf]
        %v1307 = vld [vmem:[%s1081 + $0x318] sm:$0xf]
        %v1308 = vld [vmem:[%s1081 + $0x31c] sm:$0xf]
        %v1309 = vld [vmem:[%s1081 + $0x320] sm:$0xf]
        %v1310 = vld [vmem:[%s1081 + $0x324] sm:$0xf]
        %v1311 = vld [vmem:[%s1081 + $0x328] sm:$0xf]
        %v1312 = vld [vmem:[%s1081 + $0x32c] sm:$0xf]
        %v1313 = vld [vmem:[%s1081 + $0x330] sm:$0xf]
        %v1314 = vld [vmem:[%s1081 + $0x334] sm:$0xf]
        %v1315 = vld [vmem:[%s1081 + $0x338] sm:$0xf]
        %v1316 = vld [vmem:[%s1081 + $0x33c] sm:$0xf]
        %v1317 = vld [vmem:[%s1081 + $0x340] sm:$0xf]
        %v1318 = vld [vmem:[%s1081 + $0x344] sm:$0xf]
        %v1319 = vld [vmem:[%s1081 + $0x348] sm:$0xf]
        %v1320 = vld [vmem:[%s1081 + $0x34c] sm:$0xf]
        %v1321 = vld [vmem:[%s1081 + $0x350] sm:$0xf]
        %v1322 = vld [vmem:[%s1081 + $0x354] sm:$0xf]
        %v1323 = vld [vmem:[%s1081 + $0x358] sm:$0xf]
        %v1324 = vld [vmem:[%s1081 + $0x35c] sm:$0xf]
        %v1325 = vld [vmem:[%s1081 + $0x360] sm:$0xf]
        %v1326 = vld [vmem:[%s1081 + $0x364] sm:$0xf]
        %v1327 = vld [vmem:[%s1081 + $0x368] sm:$0xf]
        %v1328 = vld [vmem:[%s1081 + $0x36c] sm:$0xf]
        %v1329 = vld [vmem:[%s1081 + $0x370] sm:$0xf]
        %v1330 = vld [vmem:[%s1081 + $0x374] sm:$0xf]
        %v1331 = vld [vmem:[%s1081 + $0x378] sm:$0xf]
        %v1332 = vld [vmem:[%s1081 + $0x37c] sm:$0xf]
        %v1333 = vld [vmem:[%s1] sm:$0xf]
        %v1334 = vld [vmem:[%s1 + $0x4] sm:$0xf]
        %v1335 = vld [vmem:[%s1 + $0x8] sm:$0xf]
        %v1336 = vld [vmem:[%s1 + $0xc] sm:$0xf]
        %v1337 = vld [vmem:[%s1 + $0x10] sm:$0xf]
        %v1338 = vld [vmem:[%s1 + $0x14] sm:$0xf]
        %v1339 = vld [vmem:[%s1 + $0x18] sm:$0xf]
        %v1340 = vld [vmem:[%s1 + $0x1c] sm:$0xf]
        %v1341 = vld [vmem:[%s1 + $0x20] sm:$0xf]
        %v1342 = vld [vmem:[%s1 + $0x24] sm:$0xf]
        %v1343 = vld [vmem:[%s1 + $0x28] sm:$0xf]
        %v1344 = vld [vmem:[%s1 + $0x2c] sm:$0xf]
        %v1345 = vld [vmem:[%s1 + $0x30] sm:$0xf]
        %v1346 = vld [vmem:[%s1 + $0x34] sm:$0xf]
        %v1347 = vld [vmem:[%s1 + $0x38] sm:$0xf]
        %v1348 = vld [vmem:[%s1 + $0x3c] sm:$0xf]
        %v1573 = vunpack.c.l.b16 %v1109
        %v1574 = vunpack.c.l.b16 %v1110
        %v1575 = vunpack.c.l.b16 %v1111
        %v1576 = vunpack.c.l.b16 %v1112
        %v1577 = vunpack.c.l.b16 %v1113
        %v1578 = vunpack.c.l.b16 %v1114
        %v1579 = vunpack.c.l.b16 %v1115
        %v1580 = vunpack.c.l.b16 %v1116
        %v1581 = vunpack.c.l.b16 %v1117
        %v1582 = vunpack.c.l.b16 %v1118
        %v1583 = vunpack.c.l.b16 %v1119
        %v1584 = vunpack.c.l.b16 %v1120
        %v1585 = vunpack.c.l.b16 %v1121
        %v1586 = vunpack.c.l.b16 %v1122
        %v1587 = vunpack.c.l.b16 %v1123
        %v1588 = vunpack.c.l.b16 %v1124
        %v1589 = vunpack.c.l.b16 %v1125
        %v1590 = vunpack.c.l.b16 %v1126
        %v1591 = vunpack.c.l.b16 %v1127
        %v1592 = vunpack.c.l.b16 %v1128
        %v1593 = vunpack.c.l.b16 %v1129
        %v1594 = vunpack.c.l.b16 %v1130
        %v1595 = vunpack.c.l.b16 %v1131
        %v1596 = vunpack.c.l.b16 %v1132
        %v1597 = vunpack.c.l.b16 %v1133
        %v1598 = vunpack.c.l.b16 %v1134
        %v1599 = vunpack.c.l.b16 %v1135
        %v1600 = vunpack.c.l.b16 %v1136
        %v1601 = vunpack.c.l.b16 %v1137
        %v1602 = vunpack.c.l.b16 %v1138
        %v1603 = vunpack.c.l.b16 %v1139
        %v1604 = vunpack.c.l.b16 %v1140
        %v1605 = vunpack.c.l.b16 %v1141
        %v1606 = vunpack.c.l.b16 %v1142
        %v1607 = vunpack.c.l.b16 %v1143
        %v1608 = vunpack.c.l.b16 %v1144
        %v1609 = vunpack.c.l.b16 %v1145
        %v1610 = vunpack.c.l.b16 %v1146
        %v1611 = vunpack.c.l.b16 %v1147
        %v1612 = vunpack.c.l.b16 %v1148
        %v1613 = vunpack.c.l.b16 %v1149
        %v1614 = vunpack.c.l.b16 %v1150
        %v1615 = vunpack.c.l.b16 %v1151
        %v1616 = vunpack.c.l.b16 %v1152
        %v1617 = vunpack.c.l.b16 %v1153
        %v1618 = vunpack.c.l.b16 %v1154
        %v1619 = vunpack.c.l.b16 %v1155
        %v1620 = vunpack.c.l.b16 %v1156
        %v1621 = vunpack.c.l.b16 %v1157
        %v1622 = vunpack.c.l.b16 %v1158
        %v1623 = vunpack.c.l.b16 %v1159
        %v1624 = vunpack.c.l.b16 %v1160
        %v1625 = vunpack.c.l.b16 %v1161
        %v1626 = vunpack.c.l.b16 %v1162
        %v1627 = vunpack.c.l.b16 %v1163
        %v1628 = vunpack.c.l.b16 %v1164
        %v1629 = vunpack.c.l.b16 %v1165
        %v1630 = vunpack.c.l.b16 %v1166
        %v1631 = vunpack.c.l.b16 %v1167
        %v1632 = vunpack.c.l.b16 %v1168
        %v1633 = vunpack.c.l.b16 %v1169
        %v1634 = vunpack.c.l.b16 %v1170
        %v1635 = vunpack.c.l.b16 %v1171
        %v1636 = vunpack.c.l.b16 %v1172
        %v1637 = vunpack.c.l.b16 %v1173
        %v1638 = vunpack.c.l.b16 %v1174
        %v1639 = vunpack.c.l.b16 %v1175
        %v1640 = vunpack.c.l.b16 %v1176
        %v1641 = vunpack.c.l.b16 %v1177
        %v1642 = vunpack.c.l.b16 %v1178
        %v1643 = vunpack.c.l.b16 %v1179
        %v1644 = vunpack.c.l.b16 %v1180
        %v1645 = vunpack.c.l.b16 %v1181
        %v1646 = vunpack.c.l.b16 %v1182
        %v1647 = vunpack.c.l.b16 %v1183
        %v1648 = vunpack.c.l.b16 %v1184
        %v1649 = vunpack.c.l.b16 %v1185
        %v1650 = vunpack.c.l.b16 %v1186
        %v1651 = vunpack.c.l.b16 %v1187
        %v1652 = vunpack.c.l.b16 %v1188
        %v1653 = vunpack.c.l.b16 %v1189
        %v1654 = vunpack.c.l.b16 %v1190
        %v1655 = vunpack.c.l.b16 %v1191
        %v1656 = vunpack.c.l.b16 %v1192
        %v1657 = vunpack.c.l.b16 %v1193
        %v1658 = vunpack.c.l.b16 %v1194
        %v1659 = vunpack.c.l.b16 %v1195
        %v1660 = vunpack.c.l.b16 %v1196
        %v1661 = vunpack.c.l.b16 %v1197
        %v1662 = vunpack.c.l.b16 %v1198
        %v1663 = vunpack.c.l.b16 %v1199
        %v1664 = vunpack.c.l.b16 %v1200
        %v1665 = vunpack.c.l.b16 %v1201
        %v1666 = vunpack.c.l.b16 %v1202
        %v1667 = vunpack.c.l.b16 %v1203
        %v1668 = vunpack.c.l.b16 %v1204
        %v1669 = vunpack.c.l.b16 %v1205
        %v1670 = vunpack.c.l.b16 %v1206
        %v1671 = vunpack.c.l.b16 %v1207
        %v1672 = vunpack.c.l.b16 %v1208
        %v1673 = vunpack.c.l.b16 %v1209
        %v1674 = vunpack.c.l.b16 %v1210
        %v1675 = vunpack.c.l.b16 %v1211
        %v1676 = vunpack.c.l.b16 %v1212
        %v1677 = vunpack.c.l.b16 %v1213
        %v1678 = vunpack.c.l.b16 %v1214
        %v1679 = vunpack.c.l.b16 %v1215
        %v1680 = vunpack.c.l.b16 %v1216
        %v1681 = vunpack.c.l.b16 %v1217
        %v1682 = vunpack.c.l.b16 %v1218
        %v1683 = vunpack.c.l.b16 %v1219
        %v1684 = vunpack.c.l.b16 %v1220
        %v1685 = vunpack.c.l.b16 %v1221
        %v1686 = vunpack.c.l.b16 %v1222
        %v1687 = vunpack.c.l.b16 %v1223
        %v1688 = vunpack.c.l.b16 %v1224
        %v1689 = vunpack.c.l.b16 %v1225
        %v1690 = vunpack.c.l.b16 %v1226
        %v1691 = vunpack.c.l.b16 %v1227
        %v1692 = vunpack.c.l.b16 %v1228
        %v1693 = vunpack.c.l.b16 %v1229
        %v1694 = vunpack.c.l.b16 %v1230
        %v1695 = vunpack.c.l.b16 %v1231
        %v1696 = vunpack.c.l.b16 %v1232
        %v1697 = vunpack.c.l.b16 %v1233
        %v1698 = vunpack.c.l.b16 %v1234
        %v1699 = vunpack.c.l.b16 %v1235
        %v1700 = vunpack.c.l.b16 %v1236
        %v1701 = vunpack.c.l.b16 %v1237
        %v1702 = vunpack.c.l.b16 %v1238
        %v1703 = vunpack.c.l.b16 %v1239
        %v1704 = vunpack.c.l.b16 %v1240
        %v1705 = vunpack.c.l.b16 %v1241
        %v1706 = vunpack.c.l.b16 %v1242
        %v1707 = vunpack.c.l.b16 %v1243
        %v1708 = vunpack.c.l.b16 %v1244
        %v1709 = vunpack.c.l.b16 %v1245
        %v1710 = vunpack.c.l.b16 %v1246
        %v1711 = vunpack.c.l.b16 %v1247
        %v1712 = vunpack.c.l.b16 %v1248
        %v1713 = vunpack.c.l.b16 %v1249
        %v1714 = vunpack.c.l.b16 %v1250
        %v1715 = vunpack.c.l.b16 %v1251
        %v1716 = vunpack.c.l.b16 %v1252
        %v1717 = vunpack.c.l.b16 %v1253
        %v1718 = vunpack.c.l.b16 %v1254
        %v1719 = vunpack.c.l.b16 %v1255
        %v1720 = vunpack.c.l.b16 %v1256
        %v1721 = vunpack.c.l.b16 %v1257
        %v1722 = vunpack.c.l.b16 %v1258
        %v1723 = vunpack.c.l.b16 %v1259
        %v1724 = vunpack.c.l.b16 %v1260
        %v1725 = vunpack.c.l.b16 %v1261
        %v1726 = vunpack.c.l.b16 %v1262
        %v1727 = vunpack.c.l.b16 %v1263
        %v1728 = vunpack.c.l.b16 %v1264
        %v1729 = vunpack.c.l.b16 %v1265
        %v1730 = vunpack.c.l.b16 %v1266
        %v1731 = vunpack.c.l.b16 %v1267
        %v1732 = vunpack.c.l.b16 %v1268
        %v1733 = vunpack.c.l.b16 %v1269
        %v1734 = vunpack.c.l.b16 %v1270
        %v1735 = vunpack.c.l.b16 %v1271
        %v1736 = vunpack.c.l.b16 %v1272
        %v1737 = vunpack.c.l.b16 %v1273
        %v1738 = vunpack.c.l.b16 %v1274
        %v1739 = vunpack.c.l.b16 %v1275
        %v1740 = vunpack.c.l.b16 %v1276
        %v1741 = vunpack.c.l.b16 %v1277
        %v1742 = vunpack.c.l.b16 %v1278
        %v1743 = vunpack.c.l.b16 %v1279
        %v1744 = vunpack.c.l.b16 %v1280
        %v1745 = vunpack.c.l.b16 %v1281
        %v1746 = vunpack.c.l.b16 %v1282
        %v1747 = vunpack.c.l.b16 %v1283
        %v1748 = vunpack.c.l.b16 %v1284
        %v1749 = vunpack.c.l.b16 %v1285
        %v1750 = vunpack.c.l.b16 %v1286
        %v1751 = vunpack.c.l.b16 %v1287
        %v1752 = vunpack.c.l.b16 %v1288
        %v1753 = vunpack.c.l.b16 %v1289
        %v1754 = vunpack.c.l.b16 %v1290
        %v1755 = vunpack.c.l.b16 %v1291
        %v1756 = vunpack.c.l.b16 %v1292
        %v1757 = vunpack.c.l.b16 %v1293
        %v1758 = vunpack.c.l.b16 %v1294
        %v1759 = vunpack.c.l.b16 %v1295
        %v1760 = vunpack.c.l.b16 %v1296
        %v1761 = vunpack.c.l.b16 %v1297
        %v1762 = vunpack.c.l.b16 %v1298
        %v1763 = vunpack.c.l.b16 %v1299
        %v1764 = vunpack.c.l.b16 %v1300
        %v1765 = vunpack.c.l.b16 %v1301
        %v1766 = vunpack.c.l.b16 %v1302
        %v1767 = vunpack.c.l.b16 %v1303
        %v1768 = vunpack.c.l.b16 %v1304
        %v1769 = vunpack.c.l.b16 %v1305
        %v1770 = vunpack.c.l.b16 %v1306
        %v1771 = vunpack.c.l.b16 %v1307
        %v1772 = vunpack.c.l.b16 %v1308
        %v1773 = vunpack.c.l.b16 %v1309
        %v1774 = vunpack.c.l.b16 %v1310
        %v1775 = vunpack.c.l.b16 %v1311
        %v1776 = vunpack.c.l.b16 %v1312
        %v1777 = vunpack.c.l.b16 %v1313
        %v1778 = vunpack.c.l.b16 %v1314
        %v1779 = vunpack.c.l.b16 %v1315
        %v1780 = vunpack.c.l.b16 %v1316
        %v1781 = vunpack.c.l.b16 %v1317
        %v1782 = vunpack.c.l.b16 %v1318
        %v1783 = vunpack.c.l.b16 %v1319
        %v1784 = vunpack.c.l.b16 %v1320
        %v1785 = vunpack.c.l.b16 %v1321
        %v1786 = vunpack.c.l.b16 %v1322
        %v1787 = vunpack.c.l.b16 %v1323
        %v1788 = vunpack.c.l.b16 %v1324
        %v1789 = vunpack.c.l.b16 %v1325
        %v1790 = vunpack.c.l.b16 %v1326
        %v1791 = vunpack.c.l.b16 %v1327
        %v1792 = vunpack.c.l.b16 %v1328
        %v1793 = vunpack.c.l.b16 %v1329
        %v1794 = vunpack.c.l.b16 %v1330
        %v1795 = vunpack.c.l.b16 %v1331
        %v1796 = vunpack.c.l.b16 %v1332
        %v1797 = vpack.c.b16 %v1574, %v1573
        %v1798 = vpack.c.b16 %v1576, %v1575
        %v1799 = vpack.c.b16 %v1578, %v1577
        %v1800 = vpack.c.b16 %v1580, %v1579
        %v1801 = vpack.c.b16 %v1582, %v1581
        %v1802 = vpack.c.b16 %v1584, %v1583
        %v1803 = vpack.c.b16 %v1586, %v1585
        %v1804 = vpack.c.b16 %v1588, %v1587
        %v1805 = vpack.c.b16 %v1590, %v1589
        %v1806 = vpack.c.b16 %v1592, %v1591
        %v1807 = vpack.c.b16 %v1594, %v1593
        %v1808 = vpack.c.b16 %v1596, %v1595
        %v1809 = vpack.c.b16 %v1598, %v1597
        %v1810 = vpack.c.b16 %v1600, %v1599
        %v1811 = vpack.c.b16 %v1602, %v1601
        %v1812 = vpack.c.b16 %v1604, %v1603
        %v1813 = vpack.c.b16 %v1606, %v1605
        %v1814 = vpack.c.b16 %v1608, %v1607
        %v1815 = vpack.c.b16 %v1610, %v1609
        %v1816 = vpack.c.b16 %v1612, %v1611
        %v1817 = vpack.c.b16 %v1614, %v1613
        %v1818 = vpack.c.b16 %v1616, %v1615
        %v1819 = vpack.c.b16 %v1618, %v1617
        %v1820 = vpack.c.b16 %v1620, %v1619
        %v1821 = vpack.c.b16 %v1622, %v1621
        %v1822 = vpack.c.b16 %v1624, %v1623
        %v1823 = vpack.c.b16 %v1626, %v1625
        %v1824 = vpack.c.b16 %v1628, %v1627
        %v1825 = vpack.c.b16 %v1630, %v1629
        %v1826 = vpack.c.b16 %v1632, %v1631
        %v1827 = vpack.c.b16 %v1634, %v1633
        %v1828 = vpack.c.b16 %v1636, %v1635
        %v1829 = vpack.c.b16 %v1638, %v1637
        %v1830 = vpack.c.b16 %v1640, %v1639
        %v1831 = vpack.c.b16 %v1642, %v1641
        %v1832 = vpack.c.b16 %v1644, %v1643
        %v1833 = vpack.c.b16 %v1646, %v1645
        %v1834 = vpack.c.b16 %v1648, %v1647
        %v1835 = vpack.c.b16 %v1650, %v1649
        %v1836 = vpack.c.b16 %v1652, %v1651
        %v1837 = vpack.c.b16 %v1654, %v1653
        %v1838 = vpack.c.b16 %v1656, %v1655
        %v1839 = vpack.c.b16 %v1658, %v1657
        %v1840 = vpack.c.b16 %v1660, %v1659
        %v1841 = vpack.c.b16 %v1662, %v1661
        %v1842 = vpack.c.b16 %v1664, %v1663
        %v1843 = vpack.c.b16 %v1666, %v1665
        %v1844 = vpack.c.b16 %v1668, %v1667
        %v1845 = vpack.c.b16 %v1670, %v1669
        %v1846 = vpack.c.b16 %v1672, %v1671
        %v1847 = vpack.c.b16 %v1674, %v1673
        %v1848 = vpack.c.b16 %v1676, %v1675
        %v1849 = vpack.c.b16 %v1678, %v1677
        %v1850 = vpack.c.b16 %v1680, %v1679
        %v1851 = vpack.c.b16 %v1682, %v1681
        %v1852 = vpack.c.b16 %v1684, %v1683
        %v1853 = vpack.c.b16 %v1686, %v1685
        %v1854 = vpack.c.b16 %v1688, %v1687
        %v1855 = vpack.c.b16 %v1690, %v1689
        %v1856 = vpack.c.b16 %v1692, %v1691
        %v1857 = vpack.c.b16 %v1694, %v1693
        %v1858 = vpack.c.b16 %v1696, %v1695
        %v1859 = vpack.c.b16 %v1698, %v1697
        %v1860 = vpack.c.b16 %v1700, %v1699
        %v1861 = vpack.c.b16 %v1702, %v1701
        %v1862 = vpack.c.b16 %v1704, %v1703
        %v1863 = vpack.c.b16 %v1706, %v1705
        %v1864 = vpack.c.b16 %v1708, %v1707
        %v1865 = vpack.c.b16 %v1710, %v1709
        %v1866 = vpack.c.b16 %v1712, %v1711
        %v1867 = vpack.c.b16 %v1714, %v1713
        %v1868 = vpack.c.b16 %v1716, %v1715
        %v1869 = vpack.c.b16 %v1718, %v1717
        %v1870 = vpack.c.b16 %v1720, %v1719
        %v1871 = vpack.c.b16 %v1722, %v1721
        %v1872 = vpack.c.b16 %v1724, %v1723
        %v1873 = vpack.c.b16 %v1726, %v1725
        %v1874 = vpack.c.b16 %v1728, %v1727
        %v1875 = vpack.c.b16 %v1730, %v1729
        %v1876 = vpack.c.b16 %v1732, %v1731
        %v1877 = vpack.c.b16 %v1734, %v1733
        %v1878 = vpack.c.b16 %v1736, %v1735
        %v1879 = vpack.c.b16 %v1738, %v1737
        %v1880 = vpack.c.b16 %v1740, %v1739
        %v1881 = vpack.c.b16 %v1742, %v1741
        %v1882 = vpack.c.b16 %v1744, %v1743
        %v1883 = vpack.c.b16 %v1746, %v1745
        %v1884 = vpack.c.b16 %v1748, %v1747
        %v1885 = vpack.c.b16 %v1750, %v1749
        %v1886 = vpack.c.b16 %v1752, %v1751
        %v1887 = vpack.c.b16 %v1754, %v1753
        %v1888 = vpack.c.b16 %v1756, %v1755
        %v1889 = vpack.c.b16 %v1758, %v1757
        %v1890 = vpack.c.b16 %v1760, %v1759
        %v1891 = vpack.c.b16 %v1762, %v1761
        %v1892 = vpack.c.b16 %v1764, %v1763
        %v1893 = vpack.c.b16 %v1766, %v1765
        %v1894 = vpack.c.b16 %v1768, %v1767
        %v1895 = vpack.c.b16 %v1770, %v1769
        %v1896 = vpack.c.b16 %v1772, %v1771
        %v1897 = vpack.c.b16 %v1774, %v1773
        %v1898 = vpack.c.b16 %v1776, %v1775
        %v1899 = vpack.c.b16 %v1778, %v1777
        %v1900 = vpack.c.b16 %v1780, %v1779
        %v1901 = vpack.c.b16 %v1782, %v1781
        %v1902 = vpack.c.b16 %v1784, %v1783
        %v1903 = vpack.c.b16 %v1786, %v1785
        %v1904 = vpack.c.b16 %v1788, %v1787
        %v1905 = vpack.c.b16 %v1790, %v1789
        %v1906 = vpack.c.b16 %v1792, %v1791
        %v1907 = vpack.c.b16 %v1794, %v1793
        %v1908 = vpack.c.b16 %v1796, %v1795
        %v2037 = vunpack.c.l.b16 %v1333
        %v2038 = vunpack.c.l.b16 %v1334
        %v2039 = vunpack.c.l.b16 %v1335
        %v2040 = vunpack.c.l.b16 %v1336
        %v2041 = vunpack.c.l.b16 %v1337
        %v2042 = vunpack.c.l.b16 %v1338
        %v2043 = vunpack.c.l.b16 %v1339
        %v2044 = vunpack.c.l.b16 %v1340
        %v2045 = vunpack.c.l.b16 %v1341
        %v2046 = vunpack.c.l.b16 %v1342
        %v2047 = vunpack.c.l.b16 %v1343
        %v2048 = vunpack.c.l.b16 %v1344
        %v2049 = vunpack.c.l.b16 %v1345
        %v2050 = vunpack.c.l.b16 %v1346
        %v2051 = vunpack.c.l.b16 %v1347
        %v2052 = vunpack.c.l.b16 %v1348
        %v2053 = vpack.c.b16 %v2038, %v2037
        %v2054 = vpack.c.b16 %v2040, %v2039
        %v2055 = vpack.c.b16 %v2042, %v2041
        %v2056 = vpack.c.b16 %v2044, %v2043
        %v2057 = vpack.c.b16 %v2046, %v2045
        %v2058 = vpack.c.b16 %v2048, %v2047
        %v2059 = vpack.c.b16 %v2050, %v2049
        %v2060 = vpack.c.b16 %v2052, %v2051
        %2069 = vmatpush.bf16.msra.mxu0 %v2060
        %2070 = vmatpush.bf16.msra.mxu0 %v2059
        %2071 = vmatpush.bf16.msra.mxu0 %v2058
        %2072 = vmatpush.bf16.msra.mxu0 %v2057
        %2073 = vmatpush.bf16.msra.mxu0 %v2056
        %2074 = vmatpush.bf16.msra.mxu0 %v2055
        %2075 = vmatpush.bf16.msra.mxu0 %v2054
        %2076 = vmatpush.bf16.msra.mxu0 %v2053
        %2077 = vmatmul.bf16.gmra.mxu0 %v1797
        %v2078 = vpop.f32.mrf.mxu0
        %v2079 = vadd.f32 0.0, %v2078
        %v2080 = vpop.f32.mrf.mxu0
        %v2081 = vadd.f32 0.0, %v2080
        %2082 = vmatmul.bf16.gmra.mxu0 %v1798
        %v2083 = vpop.f32.mrf.mxu0
        %v2084 = vadd.f32 0.0, %v2083
        %v2085 = vpop.f32.mrf.mxu0
        %v2086 = vadd.f32 0.0, %v2085
        %2087 = vmatmul.bf16.gmra.mxu0 %v1799
        %v2088 = vpop.f32.mrf.mxu0
        %v2089 = vadd.f32 0.0, %v2088
        %v2090 = vpop.f32.mrf.mxu0
        %v2091 = vadd.f32 0.0, %v2090
        %2092 = vmatmul.bf16.gmra.mxu0 %v1800
        %v2093 = vpop.f32.mrf.mxu0
        %v2094 = vadd.f32 0.0, %v2093
        %v2095 = vpop.f32.mrf.mxu0
        %v2096 = vadd.f32 0.0, %v2095
        %2097 = vmatmul.bf16.gmra.mxu0 %v1801
        %v2098 = vpop.f32.mrf.mxu0
        %v2099 = vadd.f32 0.0, %v2098
        %v2100 = vpop.f32.mrf.mxu0
        %v2101 = vadd.f32 0.0, %v2100
        %2102 = vmatmul.bf16.gmra.mxu0 %v1802
        %v2103 = vpop.f32.mrf.mxu0
        %v2104 = vadd.f32 0.0, %v2103
        %v2105 = vpop.f32.mrf.mxu0
        %v2106 = vadd.f32 0.0, %v2105
        %2107 = vmatmul.bf16.gmra.mxu0 %v1803
        %v2108 = vpop.f32.mrf.mxu0
        %v2109 = vadd.f32 0.0, %v2108
        %v2110 = vpop.f32.mrf.mxu0
        %v2111 = vadd.f32 0.0, %v2110
        %2112 = vmatmul.bf16.gmra.mxu0 %v1804
        %v2113 = vpop.f32.mrf.mxu0
        %v2114 = vadd.f32 0.0, %v2113
        %v2115 = vpop.f32.mrf.mxu0
        %v2116 = vadd.f32 0.0, %v2115
        %2117 = vmatmul.bf16.gmra.mxu0 %v1805
        %v2118 = vpop.f32.mrf.mxu0
        %v2119 = vadd.f32 0.0, %v2118
        %v2120 = vpop.f32.mrf.mxu0
        %v2121 = vadd.f32 0.0, %v2120
        %2122 = vmatmul.bf16.gmra.mxu0 %v1806
        %v2123 = vpop.f32.mrf.mxu0
        %v2124 = vadd.f32 0.0, %v2123
        %v2125 = vpop.f32.mrf.mxu0
        %v2126 = vadd.f32 0.0, %v2125
        %2127 = vmatmul.bf16.gmra.mxu0 %v1807
        %v2128 = vpop.f32.mrf.mxu0
        %v2129 = vadd.f32 0.0, %v2128
        %v2130 = vpop.f32.mrf.mxu0
        %v2131 = vadd.f32 0.0, %v2130
        %2132 = vmatmul.bf16.gmra.mxu0 %v1808
        %v2133 = vpop.f32.mrf.mxu0
        %v2134 = vadd.f32 0.0, %v2133
        %v2135 = vpop.f32.mrf.mxu0
        %v2136 = vadd.f32 0.0, %v2135
        %2137 = vmatmul.bf16.gmra.mxu0 %v1809
        %v2138 = vpop.f32.mrf.mxu0
        %v2139 = vadd.f32 0.0, %v2138
        %v2140 = vpop.f32.mrf.mxu0
        %v2141 = vadd.f32 0.0, %v2140
        %2142 = vmatmul.bf16.gmra.mxu0 %v1810
        %v2143 = vpop.f32.mrf.mxu0
        %v2144 = vadd.f32 0.0, %v2143
        %v2145 = vpop.f32.mrf.mxu0
        %v2146 = vadd.f32 0.0, %v2145
        %2147 = vmatmul.bf16.gmra.mxu0 %v1811
        %v2148 = vpop.f32.mrf.mxu0
        %v2149 = vadd.f32 0.0, %v2148
        %v2150 = vpop.f32.mrf.mxu0
        %v2151 = vadd.f32 0.0, %v2150
        %2152 = vmatmul.bf16.gmra.mxu0 %v1812
        %v2153 = vpop.f32.mrf.mxu0
        %v2154 = vadd.f32 0.0, %v2153
        %v2155 = vpop.f32.mrf.mxu0
        %v2156 = vadd.f32 0.0, %v2155
        %2157 = vmatmul.bf16.gmra.mxu0 %v1813
        %v2158 = vpop.f32.mrf.mxu0
        %v2159 = vadd.f32 0.0, %v2158
        %v2160 = vpop.f32.mrf.mxu0
        %v2161 = vadd.f32 0.0, %v2160
        %2162 = vmatmul.bf16.gmra.mxu0 %v1814
        %v2163 = vpop.f32.mrf.mxu0
        %v2164 = vadd.f32 0.0, %v2163
        %v2165 = vpop.f32.mrf.mxu0
        %v2166 = vadd.f32 0.0, %v2165
        %2167 = vmatmul.bf16.gmra.mxu0 %v1815
        %v2168 = vpop.f32.mrf.mxu0
        %v2169 = vadd.f32 0.0, %v2168
        %v2170 = vpop.f32.mrf.mxu0
        %v2171 = vadd.f32 0.0, %v2170
        %2172 = vmatmul.bf16.gmra.mxu0 %v1816
        %v2173 = vpop.f32.mrf.mxu0
        %v2174 = vadd.f32 0.0, %v2173
        %v2175 = vpop.f32.mrf.mxu0
        %v2176 = vadd.f32 0.0, %v2175
        %2177 = vmatmul.bf16.gmra.mxu0 %v1817
        %v2178 = vpop.f32.mrf.mxu0
        %v2179 = vadd.f32 0.0, %v2178
        %v2180 = vpop.f32.mrf.mxu0
        %v2181 = vadd.f32 0.0, %v2180
        %2182 = vmatmul.bf16.gmra.mxu0 %v1818
        %v2183 = vpop.f32.mrf.mxu0
        %v2184 = vadd.f32 0.0, %v2183
        %v2185 = vpop.f32.mrf.mxu0
        %v2186 = vadd.f32 0.0, %v2185
        %2187 = vmatmul.bf16.gmra.mxu0 %v1819
        %v2188 = vpop.f32.mrf.mxu0
        %v2189 = vadd.f32 0.0, %v2188
        %v2190 = vpop.f32.mrf.mxu0
        %v2191 = vadd.f32 0.0, %v2190
        %2192 = vmatmul.bf16.gmra.mxu0 %v1820
        %v2193 = vpop.f32.mrf.mxu0
        %v2194 = vadd.f32 0.0, %v2193
        %v2195 = vpop.f32.mrf.mxu0
        %v2196 = vadd.f32 0.0, %v2195
        %2197 = vmatmul.bf16.gmra.mxu0 %v1821
        %v2198 = vpop.f32.mrf.mxu0
        %v2199 = vadd.f32 0.0, %v2198
        %v2200 = vpop.f32.mrf.mxu0
        %v2201 = vadd.f32 0.0, %v2200
        %2202 = vmatmul.bf16.gmra.mxu0 %v1822
        %v2203 = vpop.f32.mrf.mxu0
        %v2204 = vadd.f32 0.0, %v2203
        %v2205 = vpop.f32.mrf.mxu0
        %v2206 = vadd.f32 0.0, %v2205
        %2207 = vmatmul.bf16.gmra.mxu0 %v1823
        %v2208 = vpop.f32.mrf.mxu0
        %v2209 = vadd.f32 0.0, %v2208
        %v2210 = vpop.f32.mrf.mxu0
        %v2211 = vadd.f32 0.0, %v2210
        %2212 = vmatmul.bf16.gmra.mxu0 %v1824
        %v2213 = vpop.f32.mrf.mxu0
        %v2214 = vadd.f32 0.0, %v2213
        %v2215 = vpop.f32.mrf.mxu0
        %v2216 = vadd.f32 0.0, %v2215
        %2217 = vmatmul.bf16.gmra.mxu0 %v1825
        %v2218 = vpop.f32.mrf.mxu0
        %v2219 = vadd.f32 0.0, %v2218
        %v2220 = vpop.f32.mrf.mxu0
        %v2221 = vadd.f32 0.0, %v2220
        %2222 = vmatmul.bf16.gmra.mxu0 %v1826
        %v2223 = vpop.f32.mrf.mxu0
        %v2224 = vadd.f32 0.0, %v2223
        %v2225 = vpop.f32.mrf.mxu0
        %v2226 = vadd.f32 0.0, %v2225
        %2227 = vmatmul.bf16.gmra.mxu0 %v1827
        %v2228 = vpop.f32.mrf.mxu0
        %v2229 = vadd.f32 0.0, %v2228
        %v2230 = vpop.f32.mrf.mxu0
        %v2231 = vadd.f32 0.0, %v2230
        %2232 = vmatmul.bf16.gmra.mxu0 %v1828
        %v2233 = vpop.f32.mrf.mxu0
        %v2234 = vadd.f32 0.0, %v2233
        %v2235 = vpop.f32.mrf.mxu0
        %v2236 = vadd.f32 0.0, %v2235
        %2237 = vmatmul.bf16.gmra.mxu0 %v1829
        %v2238 = vpop.f32.mrf.mxu0
        %v2239 = vadd.f32 0.0, %v2238
        %v2240 = vpop.f32.mrf.mxu0
        %v2241 = vadd.f32 0.0, %v2240
        %2242 = vmatmul.bf16.gmra.mxu0 %v1830
        %v2243 = vpop.f32.mrf.mxu0
        %v2244 = vadd.f32 0.0, %v2243
        %v2245 = vpop.f32.mrf.mxu0
        %v2246 = vadd.f32 0.0, %v2245
        %2247 = vmatmul.bf16.gmra.mxu0 %v1831
        %v2248 = vpop.f32.mrf.mxu0
        %v2249 = vadd.f32 0.0, %v2248
        %v2250 = vpop.f32.mrf.mxu0
        %v2251 = vadd.f32 0.0, %v2250
        %2252 = vmatmul.bf16.gmra.mxu0 %v1832
        %v2253 = vpop.f32.mrf.mxu0
        %v2254 = vadd.f32 0.0, %v2253
        %v2255 = vpop.f32.mrf.mxu0
        %v2256 = vadd.f32 0.0, %v2255
        %2257 = vmatmul.bf16.gmra.mxu0 %v1833
        %v2258 = vpop.f32.mrf.mxu0
        %v2259 = vadd.f32 0.0, %v2258
        %v2260 = vpop.f32.mrf.mxu0
        %v2261 = vadd.f32 0.0, %v2260
        %2262 = vmatmul.bf16.gmra.mxu0 %v1834
        %v2263 = vpop.f32.mrf.mxu0
        %v2264 = vadd.f32 0.0, %v2263
        %v2265 = vpop.f32.mrf.mxu0
        %v2266 = vadd.f32 0.0, %v2265
        %2267 = vmatmul.bf16.gmra.mxu0 %v1835
        %v2268 = vpop.f32.mrf.mxu0
        %v2269 = vadd.f32 0.0, %v2268
        %v2270 = vpop.f32.mrf.mxu0
        %v2271 = vadd.f32 0.0, %v2270
        %2272 = vmatmul.bf16.gmra.mxu0 %v1836
        %v2273 = vpop.f32.mrf.mxu0
        %v2274 = vadd.f32 0.0, %v2273
        %v2275 = vpop.f32.mrf.mxu0
        %v2276 = vadd.f32 0.0, %v2275
        %2277 = vmatmul.bf16.gmra.mxu0 %v1837
        %v2278 = vpop.f32.mrf.mxu0
        %v2279 = vadd.f32 0.0, %v2278
        %v2280 = vpop.f32.mrf.mxu0
        %v2281 = vadd.f32 0.0, %v2280
        %2282 = vmatmul.bf16.gmra.mxu0 %v1838
        %v2283 = vpop.f32.mrf.mxu0
        %v2284 = vadd.f32 0.0, %v2283
        %v2285 = vpop.f32.mrf.mxu0
        %v2286 = vadd.f32 0.0, %v2285
        %2287 = vmatmul.bf16.gmra.mxu0 %v1839
        %v2288 = vpop.f32.mrf.mxu0
        %v2289 = vadd.f32 0.0, %v2288
        %v2290 = vpop.f32.mrf.mxu0
        %v2291 = vadd.f32 0.0, %v2290
        %2292 = vmatmul.bf16.gmra.mxu0 %v1840
        %v2293 = vpop.f32.mrf.mxu0
        %v2294 = vadd.f32 0.0, %v2293
        %v2295 = vpop.f32.mrf.mxu0
        %v2296 = vadd.f32 0.0, %v2295
        %2297 = vmatmul.bf16.gmra.mxu0 %v1841
        %v2298 = vpop.f32.mrf.mxu0
        %v2299 = vadd.f32 0.0, %v2298
        %v2300 = vpop.f32.mrf.mxu0
        %v2301 = vadd.f32 0.0, %v2300
        %2302 = vmatmul.bf16.gmra.mxu0 %v1842
        %v2303 = vpop.f32.mrf.mxu0
        %v2304 = vadd.f32 0.0, %v2303
        %v2305 = vpop.f32.mrf.mxu0
        %v2306 = vadd.f32 0.0, %v2305
        %2307 = vmatmul.bf16.gmra.mxu0 %v1843
        %v2308 = vpop.f32.mrf.mxu0
        %v2309 = vadd.f32 0.0, %v2308
        %v2310 = vpop.f32.mrf.mxu0
        %v2311 = vadd.f32 0.0, %v2310
        %2312 = vmatmul.bf16.gmra.mxu0 %v1844
        %v2313 = vpop.f32.mrf.mxu0
        %v2314 = vadd.f32 0.0, %v2313
        %v2315 = vpop.f32.mrf.mxu0
        %v2316 = vadd.f32 0.0, %v2315
        %2317 = vmatmul.bf16.gmra.mxu0 %v1845
        %v2318 = vpop.f32.mrf.mxu0
        %v2319 = vadd.f32 0.0, %v2318
        %v2320 = vpop.f32.mrf.mxu0
        %v2321 = vadd.f32 0.0, %v2320
        %2322 = vmatmul.bf16.gmra.mxu0 %v1846
        %v2323 = vpop.f32.mrf.mxu0
        %v2324 = vadd.f32 0.0, %v2323
        %v2325 = vpop.f32.mrf.mxu0
        %v2326 = vadd.f32 0.0, %v2325
        %2327 = vmatmul.bf16.gmra.mxu0 %v1847
        %v2328 = vpop.f32.mrf.mxu0
        %v2329 = vadd.f32 0.0, %v2328
        %v2330 = vpop.f32.mrf.mxu0
        %v2331 = vadd.f32 0.0, %v2330
        %2332 = vmatmul.bf16.gmra.mxu0 %v1848
        %v2333 = vpop.f32.mrf.mxu0
        %v2334 = vadd.f32 0.0, %v2333
        %v2335 = vpop.f32.mrf.mxu0
        %v2336 = vadd.f32 0.0, %v2335
        %2337 = vmatmul.bf16.gmra.mxu0 %v1849
        %v2338 = vpop.f32.mrf.mxu0
        %v2339 = vadd.f32 0.0, %v2338
        %v2340 = vpop.f32.mrf.mxu0
        %v2341 = vadd.f32 0.0, %v2340
        %2342 = vmatmul.bf16.gmra.mxu0 %v1850
        %v2343 = vpop.f32.mrf.mxu0
        %v2344 = vadd.f32 0.0, %v2343
        %v2345 = vpop.f32.mrf.mxu0
        %v2346 = vadd.f32 0.0, %v2345
        %2347 = vmatmul.bf16.gmra.mxu0 %v1851
        %v2348 = vpop.f32.mrf.mxu0
        %v2349 = vadd.f32 0.0, %v2348
        %v2350 = vpop.f32.mrf.mxu0
        %v2351 = vadd.f32 0.0, %v2350
        %2352 = vmatmul.bf16.gmra.mxu0 %v1852
        %v2353 = vpop.f32.mrf.mxu0
        %v2354 = vadd.f32 0.0, %v2353
        %v2355 = vpop.f32.mrf.mxu0
        %v2356 = vadd.f32 0.0, %v2355
        %2357 = vmatmul.bf16.gmra.mxu0 %v1853
        %v2358 = vpop.f32.mrf.mxu0
        %v2359 = vadd.f32 0.0, %v2358
        %v2360 = vpop.f32.mrf.mxu0
        %v2361 = vadd.f32 0.0, %v2360
        %2362 = vmatmul.bf16.gmra.mxu0 %v1854
        %v2363 = vpop.f32.mrf.mxu0
        %v2364 = vadd.f32 0.0, %v2363
        %v2365 = vpop.f32.mrf.mxu0
        %v2366 = vadd.f32 0.0, %v2365
        %2367 = vmatmul.bf16.gmra.mxu0 %v1855
        %v2368 = vpop.f32.mrf.mxu0
        %v2369 = vadd.f32 0.0, %v2368
        %v2370 = vpop.f32.mrf.mxu0
        %v2371 = vadd.f32 0.0, %v2370
        %2372 = vmatmul.bf16.gmra.mxu0 %v1856
        %v2373 = vpop.f32.mrf.mxu0
        %v2374 = vadd.f32 0.0, %v2373
        %v2375 = vpop.f32.mrf.mxu0
        %v2376 = vadd.f32 0.0, %v2375
        %2377 = vmatmul.bf16.gmra.mxu0 %v1857
        %v2378 = vpop.f32.mrf.mxu0
        %v2379 = vadd.f32 0.0, %v2378
        %v2380 = vpop.f32.mrf.mxu0
        %v2381 = vadd.f32 0.0, %v2380
        %2382 = vmatmul.bf16.gmra.mxu0 %v1858
        %v2383 = vpop.f32.mrf.mxu0
        %v2384 = vadd.f32 0.0, %v2383
        %v2385 = vpop.f32.mrf.mxu0
        %v2386 = vadd.f32 0.0, %v2385
        %2387 = vmatmul.bf16.gmra.mxu0 %v1859
        %v2388 = vpop.f32.mrf.mxu0
        %v2389 = vadd.f32 0.0, %v2388
        %v2390 = vpop.f32.mrf.mxu0
        %v2391 = vadd.f32 0.0, %v2390
        %2392 = vmatmul.bf16.gmra.mxu0 %v1860
        %v2393 = vpop.f32.mrf.mxu0
        %v2394 = vadd.f32 0.0, %v2393
        %v2395 = vpop.f32.mrf.mxu0
        %v2396 = vadd.f32 0.0, %v2395
        %2397 = vmatmul.bf16.gmra.mxu0 %v1861
        %v2398 = vpop.f32.mrf.mxu0
        %v2399 = vadd.f32 0.0, %v2398
        %v2400 = vpop.f32.mrf.mxu0
        %v2401 = vadd.f32 0.0, %v2400
        %2402 = vmatmul.bf16.gmra.mxu0 %v1862
        %v2403 = vpop.f32.mrf.mxu0
        %v2404 = vadd.f32 0.0, %v2403
        %v2405 = vpop.f32.mrf.mxu0
        %v2406 = vadd.f32 0.0, %v2405
        %2407 = vmatmul.bf16.gmra.mxu0 %v1863
        %v2408 = vpop.f32.mrf.mxu0
        %v2409 = vadd.f32 0.0, %v2408
        %v2410 = vpop.f32.mrf.mxu0
        %v2411 = vadd.f32 0.0, %v2410
        %2412 = vmatmul.bf16.gmra.mxu0 %v1864
        %v2413 = vpop.f32.mrf.mxu0
        %v2414 = vadd.f32 0.0, %v2413
        %v2415 = vpop.f32.mrf.mxu0
        %v2416 = vadd.f32 0.0, %v2415
        %2417 = vmatmul.bf16.gmra.mxu0 %v1865
        %v2418 = vpop.f32.mrf.mxu0
        %v2419 = vadd.f32 0.0, %v2418
        %v2420 = vpop.f32.mrf.mxu0
        %v2421 = vadd.f32 0.0, %v2420
        %2422 = vmatmul.bf16.gmra.mxu0 %v1866
        %v2423 = vpop.f32.mrf.mxu0
        %v2424 = vadd.f32 0.0, %v2423
        %v2425 = vpop.f32.mrf.mxu0
        %v2426 = vadd.f32 0.0, %v2425
        %2427 = vmatmul.bf16.gmra.mxu0 %v1867
        %v2428 = vpop.f32.mrf.mxu0
        %v2429 = vadd.f32 0.0, %v2428
        %v2430 = vpop.f32.mrf.mxu0
        %v2431 = vadd.f32 0.0, %v2430
        %2432 = vmatmul.bf16.gmra.mxu0 %v1868
        %v2433 = vpop.f32.mrf.mxu0
        %v2434 = vadd.f32 0.0, %v2433
        %v2435 = vpop.f32.mrf.mxu0
        %v2436 = vadd.f32 0.0, %v2435
        %2437 = vmatmul.bf16.gmra.mxu0 %v1869
        %v2438 = vpop.f32.mrf.mxu0
        %v2439 = vadd.f32 0.0, %v2438
        %v2440 = vpop.f32.mrf.mxu0
        %v2441 = vadd.f32 0.0, %v2440
        %2442 = vmatmul.bf16.gmra.mxu0 %v1870
        %v2443 = vpop.f32.mrf.mxu0
        %v2444 = vadd.f32 0.0, %v2443
        %v2445 = vpop.f32.mrf.mxu0
        %v2446 = vadd.f32 0.0, %v2445
        %2447 = vmatmul.bf16.gmra.mxu0 %v1871
        %v2448 = vpop.f32.mrf.mxu0
        %v2449 = vadd.f32 0.0, %v2448
        %v2450 = vpop.f32.mrf.mxu0
        %v2451 = vadd.f32 0.0, %v2450
        %2452 = vmatmul.bf16.gmra.mxu0 %v1872
        %v2453 = vpop.f32.mrf.mxu0
        %v2454 = vadd.f32 0.0, %v2453
        %v2455 = vpop.f32.mrf.mxu0
        %v2456 = vadd.f32 0.0, %v2455
        %2457 = vmatmul.bf16.gmra.mxu0 %v1873
        %v2458 = vpop.f32.mrf.mxu0
        %v2459 = vadd.f32 0.0, %v2458
        %v2460 = vpop.f32.mrf.mxu0
        %v2461 = vadd.f32 0.0, %v2460
        %2462 = vmatmul.bf16.gmra.mxu0 %v1874
        %v2463 = vpop.f32.mrf.mxu0
        %v2464 = vadd.f32 0.0, %v2463
        %v2465 = vpop.f32.mrf.mxu0
        %v2466 = vadd.f32 0.0, %v2465
        %2467 = vmatmul.bf16.gmra.mxu0 %v1875
        %v2468 = vpop.f32.mrf.mxu0
        %v2469 = vadd.f32 0.0, %v2468
        %v2470 = vpop.f32.mrf.mxu0
        %v2471 = vadd.f32 0.0, %v2470
        %2472 = vmatmul.bf16.gmra.mxu0 %v1876
        %v2473 = vpop.f32.mrf.mxu0
        %v2474 = vadd.f32 0.0, %v2473
        %v2475 = vpop.f32.mrf.mxu0
        %v2476 = vadd.f32 0.0, %v2475
        %2477 = vmatmul.bf16.gmra.mxu0 %v1877
        %v2478 = vpop.f32.mrf.mxu0
        %v2479 = vadd.f32 0.0, %v2478
        %v2480 = vpop.f32.mrf.mxu0
        %v2481 = vadd.f32 0.0, %v2480
        %2482 = vmatmul.bf16.gmra.mxu0 %v1878
        %v2483 = vpop.f32.mrf.mxu0
        %v2484 = vadd.f32 0.0, %v2483
        %v2485 = vpop.f32.mrf.mxu0
        %v2486 = vadd.f32 0.0, %v2485
        %2487 = vmatmul.bf16.gmra.mxu0 %v1879
        %v2488 = vpop.f32.mrf.mxu0
        %v2489 = vadd.f32 0.0, %v2488
        %v2490 = vpop.f32.mrf.mxu0
        %v2491 = vadd.f32 0.0, %v2490
        %2492 = vmatmul.bf16.gmra.mxu0 %v1880
        %v2493 = vpop.f32.mrf.mxu0
        %v2494 = vadd.f32 0.0, %v2493
        %v2495 = vpop.f32.mrf.mxu0
        %v2496 = vadd.f32 0.0, %v2495
        %2497 = vmatmul.bf16.gmra.mxu0 %v1881
        %v2498 = vpop.f32.mrf.mxu0
        %v2499 = vadd.f32 0.0, %v2498
        %v2500 = vpop.f32.mrf.mxu0
        %v2501 = vadd.f32 0.0, %v2500
        %2502 = vmatmul.bf16.gmra.mxu0 %v1882
        %v2503 = vpop.f32.mrf.mxu0
        %v2504 = vadd.f32 0.0, %v2503
        %v2505 = vpop.f32.mrf.mxu0
        %v2506 = vadd.f32 0.0, %v2505
        %2507 = vmatmul.bf16.gmra.mxu0 %v1883
        %v2508 = vpop.f32.mrf.mxu0
        %v2509 = vadd.f32 0.0, %v2508
        %v2510 = vpop.f32.mrf.mxu0
        %v2511 = vadd.f32 0.0, %v2510
        %2512 = vmatmul.bf16.gmra.mxu0 %v1884
        %v2513 = vpop.f32.mrf.mxu0
        %v2514 = vadd.f32 0.0, %v2513
        %v2515 = vpop.f32.mrf.mxu0
        %v2516 = vadd.f32 0.0, %v2515
        %2517 = vmatmul.bf16.gmra.mxu0 %v1885
        %v2518 = vpop.f32.mrf.mxu0
        %v2519 = vadd.f32 0.0, %v2518
        %v2520 = vpop.f32.mrf.mxu0
        %v2521 = vadd.f32 0.0, %v2520
        %2522 = vmatmul.bf16.gmra.mxu0 %v1886
        %v2523 = vpop.f32.mrf.mxu0
        %v2524 = vadd.f32 0.0, %v2523
        %v2525 = vpop.f32.mrf.mxu0
        %v2526 = vadd.f32 0.0, %v2525
        %2527 = vmatmul.bf16.gmra.mxu0 %v1887
        %v2528 = vpop.f32.mrf.mxu0
        %v2529 = vadd.f32 0.0, %v2528
        %v2530 = vpop.f32.mrf.mxu0
        %v2531 = vadd.f32 0.0, %v2530
        %2532 = vmatmul.bf16.gmra.mxu0 %v1888
        %v2533 = vpop.f32.mrf.mxu0
        %v2534 = vadd.f32 0.0, %v2533
        %v2535 = vpop.f32.mrf.mxu0
        %v2536 = vadd.f32 0.0, %v2535
        %2537 = vmatmul.bf16.gmra.mxu0 %v1889
        %v2538 = vpop.f32.mrf.mxu0
        %v2539 = vadd.f32 0.0, %v2538
        %v2540 = vpop.f32.mrf.mxu0
        %v2541 = vadd.f32 0.0, %v2540
        %2542 = vmatmul.bf16.gmra.mxu0 %v1890
        %v2543 = vpop.f32.mrf.mxu0
        %v2544 = vadd.f32 0.0, %v2543
        %v2545 = vpop.f32.mrf.mxu0
        %v2546 = vadd.f32 0.0, %v2545
        %2547 = vmatmul.bf16.gmra.mxu0 %v1891
        %v2548 = vpop.f32.mrf.mxu0
        %v2549 = vadd.f32 0.0, %v2548
        %v2550 = vpop.f32.mrf.mxu0
        %v2551 = vadd.f32 0.0, %v2550
        %2552 = vmatmul.bf16.gmra.mxu0 %v1892
        %v2553 = vpop.f32.mrf.mxu0
        %v2554 = vadd.f32 0.0, %v2553
        %v2555 = vpop.f32.mrf.mxu0
        %v2556 = vadd.f32 0.0, %v2555
        %2557 = vmatmul.bf16.gmra.mxu0 %v1893
        %v2558 = vpop.f32.mrf.mxu0
        %v2559 = vadd.f32 0.0, %v2558
        %v2560 = vpop.f32.mrf.mxu0
        %v2561 = vadd.f32 0.0, %v2560
        %2562 = vmatmul.bf16.gmra.mxu0 %v1894
        %v2563 = vpop.f32.mrf.mxu0
        %v2564 = vadd.f32 0.0, %v2563
        %v2565 = vpop.f32.mrf.mxu0
        %v2566 = vadd.f32 0.0, %v2565
        %2567 = vmatmul.bf16.gmra.mxu0 %v1895
        %v2568 = vpop.f32.mrf.mxu0
        %v2569 = vadd.f32 0.0, %v2568
        %v2570 = vpop.f32.mrf.mxu0
        %v2571 = vadd.f32 0.0, %v2570
        %2572 = vmatmul.bf16.gmra.mxu0 %v1896
        %v2573 = vpop.f32.mrf.mxu0
        %v2574 = vadd.f32 0.0, %v2573
        %v2575 = vpop.f32.mrf.mxu0
        %v2576 = vadd.f32 0.0, %v2575
        %2577 = vmatmul.bf16.gmra.mxu0 %v1897
        %v2578 = vpop.f32.mrf.mxu0
        %v2579 = vadd.f32 0.0, %v2578
        %v2580 = vpop.f32.mrf.mxu0
        %v2581 = vadd.f32 0.0, %v2580
        %2582 = vmatmul.bf16.gmra.mxu0 %v1898
        %v2583 = vpop.f32.mrf.mxu0
        %v2584 = vadd.f32 0.0, %v2583
        %v2585 = vpop.f32.mrf.mxu0
        %v2586 = vadd.f32 0.0, %v2585
        %2587 = vmatmul.bf16.gmra.mxu0 %v1899
        %v2588 = vpop.f32.mrf.mxu0
        %v2589 = vadd.f32 0.0, %v2588
        %v2590 = vpop.f32.mrf.mxu0
        %v2591 = vadd.f32 0.0, %v2590
        %2592 = vmatmul.bf16.gmra.mxu0 %v1900
        %v2593 = vpop.f32.mrf.mxu0
        %v2594 = vadd.f32 0.0, %v2593
        %v2595 = vpop.f32.mrf.mxu0
        %v2596 = vadd.f32 0.0, %v2595
        %2597 = vmatmul.bf16.gmra.mxu0 %v1901
        %v2598 = vpop.f32.mrf.mxu0
        %v2599 = vadd.f32 0.0, %v2598
        %v2600 = vpop.f32.mrf.mxu0
        %v2601 = vadd.f32 0.0, %v2600
        %2602 = vmatmul.bf16.gmra.mxu0 %v1902
        %v2603 = vpop.f32.mrf.mxu0
        %v2604 = vadd.f32 0.0, %v2603
        %v2605 = vpop.f32.mrf.mxu0
        %v2606 = vadd.f32 0.0, %v2605
        %2607 = vmatmul.bf16.gmra.mxu0 %v1903
        %v2608 = vpop.f32.mrf.mxu0
        %v2609 = vadd.f32 0.0, %v2608
        %v2610 = vpop.f32.mrf.mxu0
        %v2611 = vadd.f32 0.0, %v2610
        %2612 = vmatmul.bf16.gmra.mxu0 %v1904
        %v2613 = vpop.f32.mrf.mxu0
        %v2614 = vadd.f32 0.0, %v2613
        %v2615 = vpop.f32.mrf.mxu0
        %v2616 = vadd.f32 0.0, %v2615
        %2617 = vmatmul.bf16.gmra.mxu0 %v1905
        %v2618 = vpop.f32.mrf.mxu0
        %v2619 = vadd.f32 0.0, %v2618
        %v2620 = vpop.f32.mrf.mxu0
        %v2621 = vadd.f32 0.0, %v2620
        %2622 = vmatmul.bf16.gmra.mxu0 %v1906
        %v2623 = vpop.f32.mrf.mxu0
        %v2624 = vadd.f32 0.0, %v2623
        %v2625 = vpop.f32.mrf.mxu0
        %v2626 = vadd.f32 0.0, %v2625
        %2627 = vmatmul.bf16.gmra.mxu0 %v1907
        %v2628 = vpop.f32.mrf.mxu0
        %v2629 = vadd.f32 0.0, %v2628
        %v2630 = vpop.f32.mrf.mxu0
        %v2631 = vadd.f32 0.0, %v2630
        %2632 = vmatmul.bf16.gmra.mxu0 %v1908
        %v2633 = vpop.f32.mrf.mxu0
        %v2634 = vadd.f32 0.0, %v2633
        %v2635 = vpop.f32.mrf.mxu0
        %v2636 = vadd.f32 0.0, %v2635
        %2637 = vdwg.mxu0
        %v2638 = vmax.f32 %v2079, %v2219
        %v2639 = vmax.f32 %v2081, %v2221
        %v2640 = vmax.f32 %v2084, %v2224
        %v2641 = vmax.f32 %v2086, %v2226
        %v2642 = vmax.f32 %v2089, %v2229
        %v2643 = vmax.f32 %v2091, %v2231
        %v2644 = vmax.f32 %v2094, %v2234
        %v2645 = vmax.f32 %v2096, %v2236
        %v2646 = vmax.f32 %v2099, %v2239
        %v2647 = vmax.f32 %v2101, %v2241
        %v2648 = vmax.f32 %v2104, %v2244
        %v2649 = vmax.f32 %v2106, %v2246
        %v2650 = vmax.f32 %v2109, %v2249
        %v2651 = vmax.f32 %v2111, %v2251
        %v2652 = vmax.f32 %v2114, %v2254
        %v2653 = vmax.f32 %v2116, %v2256
        %v2654 = vmax.f32 %v2119, %v2259
        %v2655 = vmax.f32 %v2121, %v2261
        %v2656 = vmax.f32 %v2124, %v2264
        %v2657 = vmax.f32 %v2126, %v2266
        %v2658 = vmax.f32 %v2129, %v2269
        %v2659 = vmax.f32 %v2131, %v2271
        %v2660 = vmax.f32 %v2134, %v2274
        %v2661 = vmax.f32 %v2136, %v2276
        %v2662 = vmax.f32 %v2139, %v2279
        %v2663 = vmax.f32 %v2141, %v2281
        %v2664 = vmax.f32 %v2144, %v2284
        %v2665 = vmax.f32 %v2146, %v2286
        %v2666 = vmax.f32 %v2149, %v2289
        %v2667 = vmax.f32 %v2151, %v2291
        %v2668 = vmax.f32 %v2154, %v2294
        %v2669 = vmax.f32 %v2156, %v2296
        %v2670 = vmax.f32 %v2159, %v2299
        %v2671 = vmax.f32 %v2161, %v2301
        %v2672 = vmax.f32 %v2164, %v2304
        %v2673 = vmax.f32 %v2166, %v2306
        %v2674 = vmax.f32 %v2169, %v2309
        %v2675 = vmax.f32 %v2171, %v2311
        %v2676 = vmax.f32 %v2174, %v2314
        %v2677 = vmax.f32 %v2176, %v2316
        %v2678 = vmax.f32 %v2179, %v2319
        %v2679 = vmax.f32 %v2181, %v2321
        %v2680 = vmax.f32 %v2184, %v2324
        %v2681 = vmax.f32 %v2186, %v2326
        %v2682 = vmax.f32 %v2189, %v2329
        %v2683 = vmax.f32 %v2191, %v2331
        %v2684 = vmax.f32 %v2194, %v2334
        %v2685 = vmax.f32 %v2196, %v2336
        %v2686 = vmax.f32 %v2199, %v2339
        %v2687 = vmax.f32 %v2201, %v2341
        %v2688 = vmax.f32 %v2204, %v2344
        %v2689 = vmax.f32 %v2206, %v2346
        %v2690 = vmax.f32 %v2209, %v2349
        %v2691 = vmax.f32 %v2211, %v2351
        %v2692 = vmax.f32 %v2214, %v2354
        %v2693 = vmax.f32 %v2216, %v2356
        %v2694 = vmax.f32 %v2359, %v2499
        %v2695 = vmax.f32 %v2361, %v2501
        %v2696 = vmax.f32 %v2364, %v2504
        %v2697 = vmax.f32 %v2366, %v2506
        %v2698 = vmax.f32 %v2369, %v2509
        %v2699 = vmax.f32 %v2371, %v2511
        %v2700 = vmax.f32 %v2374, %v2514
        %v2701 = vmax.f32 %v2376, %v2516
        %v2702 = vmax.f32 %v2379, %v2519
        %v2703 = vmax.f32 %v2381, %v2521
        %v2704 = vmax.f32 %v2384, %v2524
        %v2705 = vmax.f32 %v2386, %v2526
        %v2706 = vmax.f32 %v2389, %v2529
        %v2707 = vmax.f32 %v2391, %v2531
        %v2708 = vmax.f32 %v2394, %v2534
        %v2709 = vmax.f32 %v2396, %v2536
        %v2710 = vmax.f32 %v2399, %v2539
        %v2711 = vmax.f32 %v2401, %v2541
        %v2712 = vmax.f32 %v2404, %v2544
        %v2713 = vmax.f32 %v2406, %v2546
        %v2714 = vmax.f32 %v2409, %v2549
        %v2715 = vmax.f32 %v2411, %v2551
        %v2716 = vmax.f32 %v2414, %v2554
        %v2717 = vmax.f32 %v2416, %v2556
        %v2718 = vmax.f32 %v2419, %v2559
        %v2719 = vmax.f32 %v2421, %v2561
        %v2720 = vmax.f32 %v2424, %v2564
        %v2721 = vmax.f32 %v2426, %v2566
        %v2722 = vmax.f32 %v2429, %v2569
        %v2723 = vmax.f32 %v2431, %v2571
        %v2724 = vmax.f32 %v2434, %v2574
        %v2725 = vmax.f32 %v2436, %v2576
        %v2726 = vmax.f32 %v2439, %v2579
        %v2727 = vmax.f32 %v2441, %v2581
        %v2728 = vmax.f32 %v2444, %v2584
        %v2729 = vmax.f32 %v2446, %v2586
        %v2730 = vmax.f32 %v2449, %v2589
        %v2731 = vmax.f32 %v2451, %v2591
        %v2732 = vmax.f32 %v2454, %v2594
        %v2733 = vmax.f32 %v2456, %v2596
        %v2734 = vmax.f32 %v2459, %v2599
        %v2735 = vmax.f32 %v2461, %v2601
        %v2736 = vmax.f32 %v2464, %v2604
        %v2737 = vmax.f32 %v2466, %v2606
        %v2738 = vmax.f32 %v2469, %v2609
        %v2739 = vmax.f32 %v2471, %v2611
        %v2740 = vmax.f32 %v2474, %v2614
        %v2741 = vmax.f32 %v2476, %v2616
        %v2742 = vmax.f32 %v2479, %v2619
        %v2743 = vmax.f32 %v2481, %v2621
        %v2744 = vmax.f32 %v2484, %v2624
        %v2745 = vmax.f32 %v2486, %v2626
        %v2746 = vmax.f32 %v2489, %v2629
        %v2747 = vmax.f32 %v2491, %v2631
        %v2748 = vmax.f32 %v2494, %v2634
        %v2749 = vmax.f32 %v2496, %v2636
        %v2750 = vmax.f32 %v2638, %v2694
        %v2751 = vmax.f32 %v2639, %v2695
        %v2752 = vmax.f32 %v2640, %v2696
        %v2753 = vmax.f32 %v2641, %v2697
        %v2754 = vmax.f32 %v2642, %v2698
        %v2755 = vmax.f32 %v2643, %v2699
        %v2756 = vmax.f32 %v2644, %v2700
        %v2757 = vmax.f32 %v2645, %v2701
        %v2758 = vmax.f32 %v2646, %v2702
        %v2759 = vmax.f32 %v2647, %v2703
        %v2760 = vmax.f32 %v2648, %v2704
        %v2761 = vmax.f32 %v2649, %v2705
        %v2762 = vmax.f32 %v2650, %v2706
        %v2763 = vmax.f32 %v2651, %v2707
        %v2764 = vmax.f32 %v2652, %v2708
        %v2765 = vmax.f32 %v2653, %v2709
        %v2766 = vmax.f32 %v2654, %v2710
        %v2767 = vmax.f32 %v2655, %v2711
        %v2768 = vmax.f32 %v2656, %v2712
        %v2769 = vmax.f32 %v2657, %v2713
        %v2770 = vmax.f32 %v2658, %v2714
        %v2771 = vmax.f32 %v2659, %v2715
        %v2772 = vmax.f32 %v2660, %v2716
        %v2773 = vmax.f32 %v2661, %v2717
        %v2774 = vmax.f32 %v2662, %v2718
        %v2775 = vmax.f32 %v2663, %v2719
        %v2776 = vmax.f32 %v2664, %v2720
        %v2777 = vmax.f32 %v2665, %v2721
        %v2778 = vmax.f32 %v2666, %v2722
        %v2779 = vmax.f32 %v2667, %v2723
        %v2780 = vmax.f32 %v2668, %v2724
        %v2781 = vmax.f32 %v2669, %v2725
        %v2782 = vmax.f32 %v2670, %v2726
        %v2783 = vmax.f32 %v2671, %v2727
        %v2784 = vmax.f32 %v2672, %v2728
        %v2785 = vmax.f32 %v2673, %v2729
        %v2786 = vmax.f32 %v2674, %v2730
        %v2787 = vmax.f32 %v2675, %v2731
        %v2788 = vmax.f32 %v2676, %v2732
        %v2789 = vmax.f32 %v2677, %v2733
        %v2790 = vmax.f32 %v2678, %v2734
        %v2791 = vmax.f32 %v2679, %v2735
        %v2792 = vmax.f32 %v2680, %v2736
        %v2793 = vmax.f32 %v2681, %v2737
        %v2794 = vmax.f32 %v2682, %v2738
        %v2795 = vmax.f32 %v2683, %v2739
        %v2796 = vmax.f32 %v2684, %v2740
        %v2797 = vmax.f32 %v2685, %v2741
        %v2798 = vmax.f32 %v2686, %v2742
        %v2799 = vmax.f32 %v2687, %v2743
        %v2800 = vmax.f32 %v2688, %v2744
        %v2801 = vmax.f32 %v2689, %v2745
        %v2802 = vmax.f32 %v2690, %v2746
        %v2803 = vmax.f32 %v2691, %v2747
        %v2804 = vmax.f32 %v2692, %v2748
        %v2805 = vmax.f32 %v2693, %v2749
        %v2806 = vld [vmem:[%s2] sm:$0x1]
        %v2808 = vperm.slane %v2806, 0
        %v2810 = vadd.f32 %v2750, %v2808
        %v2811 = vadd.f32 %v2751, %v2808
        %v2812 = vadd.f32 %v2752, %v2808
        %v2813 = vadd.f32 %v2753, %v2808
        %v2814 = vadd.f32 %v2754, %v2808
        %v2815 = vadd.f32 %v2755, %v2808
        %v2816 = vadd.f32 %v2756, %v2808
        %v2817 = vadd.f32 %v2757, %v2808
        %v2818 = vadd.f32 %v2758, %v2808
        %v2819 = vadd.f32 %v2759, %v2808
        %v2820 = vadd.f32 %v2760, %v2808
        %v2821 = vadd.f32 %v2761, %v2808
        %v2822 = vadd.f32 %v2762, %v2808
        %v2823 = vadd.f32 %v2763, %v2808
        %v2824 = vadd.f32 %v2764, %v2808
        %v2825 = vadd.f32 %v2765, %v2808
        %v2826 = vadd.f32 %v2766, %v2808
        %v2827 = vadd.f32 %v2767, %v2808
        %v2828 = vadd.f32 %v2768, %v2808
        %v2829 = vadd.f32 %v2769, %v2808
        %v2830 = vadd.f32 %v2770, %v2808
        %v2831 = vadd.f32 %v2771, %v2808
        %v2832 = vadd.f32 %v2772, %v2808
        %v2833 = vadd.f32 %v2773, %v2808
        %v2834 = vadd.f32 %v2774, %v2808
        %v2835 = vadd.f32 %v2775, %v2808
        %v2836 = vadd.f32 %v2776, %v2808
        %v2837 = vadd.f32 %v2777, %v2808
        %v2838 = vadd.f32 %v2778, %v2808
        %v2839 = vadd.f32 %v2779, %v2808
        %v2840 = vadd.f32 %v2780, %v2808
        %v2841 = vadd.f32 %v2781, %v2808
        %v2842 = vadd.f32 %v2782, %v2808
        %v2843 = vadd.f32 %v2783, %v2808
        %v2844 = vadd.f32 %v2784, %v2808
        %v2845 = vadd.f32 %v2785, %v2808
        %v2846 = vadd.f32 %v2786, %v2808
        %v2847 = vadd.f32 %v2787, %v2808
        %v2848 = vadd.f32 %v2788, %v2808
        %v2849 = vadd.f32 %v2789, %v2808
        %v2850 = vadd.f32 %v2790, %v2808
        %v2851 = vadd.f32 %v2791, %v2808
        %v2852 = vadd.f32 %v2792, %v2808
        %v2853 = vadd.f32 %v2793, %v2808
        %v2854 = vadd.f32 %v2794, %v2808
        %v2855 = vadd.f32 %v2795, %v2808
        %v2856 = vadd.f32 %v2796, %v2808
        %v2857 = vadd.f32 %v2797, %v2808
        %v2858 = vadd.f32 %v2798, %v2808
        %v2859 = vadd.f32 %v2799, %v2808
        %v2860 = vadd.f32 %v2800, %v2808
        %v2861 = vadd.f32 %v2801, %v2808
        %v2862 = vadd.f32 %v2802, %v2808
        %v2863 = vadd.f32 %v2803, %v2808
        %v2864 = vadd.f32 %v2804, %v2808
        %v2865 = vadd.f32 %v2805, %v2808
        %v2866 = vmax.f32 %v2810, 0.0
        %v2867 = vmax.f32 %v2811, 0.0
        %v2868 = vmax.f32 %v2812, 0.0
        %v2869 = vmax.f32 %v2813, 0.0
        %v2870 = vmax.f32 %v2814, 0.0
        %v2871 = vmax.f32 %v2815, 0.0
        %v2872 = vmax.f32 %v2816, 0.0
        %v2873 = vmax.f32 %v2817, 0.0
        %v2874 = vmax.f32 %v2818, 0.0
        %v2875 = vmax.f32 %v2819, 0.0
        %v2876 = vmax.f32 %v2820, 0.0
        %v2877 = vmax.f32 %v2821, 0.0
        %v2878 = vmax.f32 %v2822, 0.0
        %v2879 = vmax.f32 %v2823, 0.0
        %v2880 = vmax.f32 %v2824, 0.0
        %v2881 = vmax.f32 %v2825, 0.0
        %v2882 = vmax.f32 %v2826, 0.0
        %v2883 = vmax.f32 %v2827, 0.0
        %v2884 = vmax.f32 %v2828, 0.0
        %v2885 = vmax.f32 %v2829, 0.0
        %v2886 = vmax.f32 %v2830, 0.0
        %v2887 = vmax.f32 %v2831, 0.0
        %v2888 = vmax.f32 %v2832, 0.0
        %v2889 = vmax.f32 %v2833, 0.0
        %v2890 = vmax.f32 %v2834, 0.0
        %v2891 = vmax.f32 %v2835, 0.0
        %v2892 = vmax.f32 %v2836, 0.0
        %v2893 = vmax.f32 %v2837, 0.0
        %v2894 = vmax.f32 %v2838, 0.0
        %v2895 = vmax.f32 %v2839, 0.0
        %v2896 = vmax.f32 %v2840, 0.0
        %v2897 = vmax.f32 %v2841, 0.0
        %v2898 = vmax.f32 %v2842, 0.0
        %v2899 = vmax.f32 %v2843, 0.0
        %v2900 = vmax.f32 %v2844, 0.0
        %v2901 = vmax.f32 %v2845, 0.0
        %v2902 = vmax.f32 %v2846, 0.0
        %v2903 = vmax.f32 %v2847, 0.0
        %v2904 = vmax.f32 %v2848, 0.0
        %v2905 = vmax.f32 %v2849, 0.0
        %v2906 = vmax.f32 %v2850, 0.0
        %v2907 = vmax.f32 %v2851, 0.0
        %v2908 = vmax.f32 %v2852, 0.0
        %v2909 = vmax.f32 %v2853, 0.0
        %v2910 = vmax.f32 %v2854, 0.0
        %v2911 = vmax.f32 %v2855, 0.0
        %v2912 = vmax.f32 %v2856, 0.0
        %v2913 = vmax.f32 %v2857, 0.0
        %v2914 = vmax.f32 %v2858, 0.0
        %v2915 = vmax.f32 %v2859, 0.0
        %v2916 = vmax.f32 %v2860, 0.0
        %v2917 = vmax.f32 %v2861, 0.0
        %v2918 = vmax.f32 %v2862, 0.0
        %v2919 = vmax.f32 %v2863, 0.0
        %v2920 = vmax.f32 %v2864, 0.0
        %v2921 = vmax.f32 %v2865, 0.0
        %v2922 = vpack.c.bf16 %v2866, %v2866
        %v2923 = vpack.c.bf16 %v2867, %v2867
        %v2924 = vpack.c.bf16 %v2868, %v2868
        %v2925 = vpack.c.bf16 %v2869, %v2869
        %v2926 = vpack.c.bf16 %v2870, %v2870
        %v2927 = vpack.c.bf16 %v2871, %v2871
        %v2928 = vpack.c.bf16 %v2872, %v2872
        %v2929 = vpack.c.bf16 %v2873, %v2873
        %v2930 = vpack.c.bf16 %v2874, %v2874
        %v2931 = vpack.c.bf16 %v2875, %v2875
        %v2932 = vpack.c.bf16 %v2876, %v2876
        %v2933 = vpack.c.bf16 %v2877, %v2877
        %v2934 = vpack.c.bf16 %v2878, %v2878
        %v2935 = vpack.c.bf16 %v2879, %v2879
        %v2936 = vpack.c.bf16 %v2880, %v2880
        %v2937 = vpack.c.bf16 %v2881, %v2881
        %v2938 = vpack.c.bf16 %v2882, %v2882
        %v2939 = vpack.c.bf16 %v2883, %v2883
        %v2940 = vpack.c.bf16 %v2884, %v2884
        %v2941 = vpack.c.bf16 %v2885, %v2885
        %v2942 = vpack.c.bf16 %v2886, %v2886
        %v2943 = vpack.c.bf16 %v2887, %v2887
        %v2944 = vpack.c.bf16 %v2888, %v2888
        %v2945 = vpack.c.bf16 %v2889, %v2889
        %v2946 = vpack.c.bf16 %v2890, %v2890
        %v2947 = vpack.c.bf16 %v2891, %v2891
        %v2948 = vpack.c.bf16 %v2892, %v2892
        %v2949 = vpack.c.bf16 %v2893, %v2893
        %v2950 = vpack.c.bf16 %v2894, %v2894
        %v2951 = vpack.c.bf16 %v2895, %v2895
        %v2952 = vpack.c.bf16 %v2896, %v2896
        %v2953 = vpack.c.bf16 %v2897, %v2897
        %v2954 = vpack.c.bf16 %v2898, %v2898
        %v2955 = vpack.c.bf16 %v2899, %v2899
        %v2956 = vpack.c.bf16 %v2900, %v2900
        %v2957 = vpack.c.bf16 %v2901, %v2901
        %v2958 = vpack.c.bf16 %v2902, %v2902
        %v2959 = vpack.c.bf16 %v2903, %v2903
        %v2960 = vpack.c.bf16 %v2904, %v2904
        %v2961 = vpack.c.bf16 %v2905, %v2905
        %v2962 = vpack.c.bf16 %v2906, %v2906
        %v2963 = vpack.c.bf16 %v2907, %v2907
        %v2964 = vpack.c.bf16 %v2908, %v2908
        %v2965 = vpack.c.bf16 %v2909, %v2909
        %v2966 = vpack.c.bf16 %v2910, %v2910
        %v2967 = vpack.c.bf16 %v2911, %v2911
        %v2968 = vpack.c.bf16 %v2912, %v2912
        %v2969 = vpack.c.bf16 %v2913, %v2913
        %v2970 = vpack.c.bf16 %v2914, %v2914
        %v2971 = vpack.c.bf16 %v2915, %v2915
        %v2972 = vpack.c.bf16 %v2916, %v2916
        %v2973 = vpack.c.bf16 %v2917, %v2917
        %v2974 = vpack.c.bf16 %v2918, %v2918
        %v2975 = vpack.c.bf16 %v2919, %v2919
        %v2976 = vpack.c.bf16 %v2920, %v2920
        %v2977 = vpack.c.bf16 %v2921, %v2921
        %2978 = vst [vmem:[%s1107] sm:$0xf] %v2922
        %2979 = vst [vmem:[%s1107 + $0x4] sm:$0xf] %v2923
        %2980 = vst [vmem:[%s1107 + $0x8] sm:$0xf] %v2924
        %2981 = vst [vmem:[%s1107 + $0xc] sm:$0xf] %v2925
        %2982 = vst [vmem:[%s1107 + $0x10] sm:$0xf] %v2926
        %2983 = vst [vmem:[%s1107 + $0x14] sm:$0xf] %v2927
        %2984 = vst [vmem:[%s1107 + $0x18] sm:$0xf] %v2928
        %2985 = vst [vmem:[%s1107 + $0x1c] sm:$0xf] %v2929
        %2986 = vst [vmem:[%s1107 + $0x20] sm:$0xf] %v2930
        %2987 = vst [vmem:[%s1107 + $0x24] sm:$0xf] %v2931
        %2988 = vst [vmem:[%s1107 + $0x28] sm:$0xf] %v2932
        %2989 = vst [vmem:[%s1107 + $0x2c] sm:$0xf] %v2933
        %2990 = vst [vmem:[%s1107 + $0x30] sm:$0xf] %v2934
        %2991 = vst [vmem:[%s1107 + $0x34] sm:$0xf] %v2935
        %2992 = vst [vmem:[%s1107 + $0x38] sm:$0xf] %v2936
        %2993 = vst [vmem:[%s1107 + $0x3c] sm:$0xf] %v2937
        %2994 = vst [vmem:[%s1107 + $0x40] sm:$0xf] %v2938
        %2995 = vst [vmem:[%s1107 + $0x44] sm:$0xf] %v2939
        %2996 = vst [vmem:[%s1107 + $0x48] sm:$0xf] %v2940
        %2997 = vst [vmem:[%s1107 + $0x4c] sm:$0xf] %v2941
        %2998 = vst [vmem:[%s1107 + $0x50] sm:$0xf] %v2942
        %2999 = vst [vmem:[%s1107 + $0x54] sm:$0xf] %v2943
        %3000 = vst [vmem:[%s1107 + $0x58] sm:$0xf] %v2944
        %3001 = vst [vmem:[%s1107 + $0x5c] sm:$0xf] %v2945
        %3002 = vst [vmem:[%s1107 + $0x60] sm:$0xf] %v2946
        %3003 = vst [vmem:[%s1107 + $0x64] sm:$0xf] %v2947
        %3004 = vst [vmem:[%s1107 + $0x68] sm:$0xf] %v2948
        %3005 = vst [vmem:[%s1107 + $0x6c] sm:$0xf] %v2949
        %3006 = vst [vmem:[%s1107 + $0x70] sm:$0xf] %v2950
        %3007 = vst [vmem:[%s1107 + $0x74] sm:$0xf] %v2951
        %3008 = vst [vmem:[%s1107 + $0x78] sm:$0xf] %v2952
        %3009 = vst [vmem:[%s1107 + $0x7c] sm:$0xf] %v2953
        %3010 = vst [vmem:[%s1107 + $0x80] sm:$0xf] %v2954
        %3011 = vst [vmem:[%s1107 + $0x84] sm:$0xf] %v2955
        %3012 = vst [vmem:[%s1107 + $0x88] sm:$0xf] %v2956
        %3013 = vst [vmem:[%s1107 + $0x8c] sm:$0xf] %v2957
        %3014 = vst [vmem:[%s1107 + $0x90] sm:$0xf] %v2958
        %3015 = vst [vmem:[%s1107 + $0x94] sm:$0xf] %v2959
        %3016 = vst [vmem:[%s1107 + $0x98] sm:$0xf] %v2960
        %3017 = vst [vmem:[%s1107 + $0x9c] sm:$0xf] %v2961
        %3018 = vst [vmem:[%s1107 + $0xa0] sm:$0xf] %v2962
        %3019 = vst [vmem:[%s1107 + $0xa4] sm:$0xf] %v2963
        %3020 = vst [vmem:[%s1107 + $0xa8] sm:$0xf] %v2964
        %3021 = vst [vmem:[%s1107 + $0xac] sm:$0xf] %v2965
        %3022 = vst [vmem:[%s1107 + $0xb0] sm:$0xf] %v2966
        %3023 = vst [vmem:[%s1107 + $0xb4] sm:$0xf] %v2967
        %3024 = vst [vmem:[%s1107 + $0xb8] sm:$0xf] %v2968
        %3025 = vst [vmem:[%s1107 + $0xbc] sm:$0xf] %v2969
        %3026 = vst [vmem:[%s1107 + $0xc0] sm:$0xf] %v2970
        %3027 = vst [vmem:[%s1107 + $0xc4] sm:$0xf] %v2971
        %3028 = vst [vmem:[%s1107 + $0xc8] sm:$0xf] %v2972
        %3029 = vst [vmem:[%s1107 + $0xcc] sm:$0xf] %v2973
        %3030 = vst [vmem:[%s1107 + $0xd0] sm:$0xf] %v2974
        %3031 = vst [vmem:[%s1107 + $0xd4] sm:$0xf] %v2975
        %3032 = vst [vmem:[%s1107 + $0xd8] sm:$0xf] %v2976
        %3033 = vst [vmem:[%s1107 + $0xdc] sm:$0xf] %v2977
        %s3034 = smul.u32 56, %s14
        %p3035 = scmp.lt.s32.totalorder %s3034, 111
        %s3036 = scalar_select %p3035, %s3034, 111
        %s3037 = smul.addr %s3036, 4
        %s3038 = scalar_lea.vmem %s3, %s3037
        // Predicated region
        $region74: #{triplet_forward.4} parent=68 // pred_check
          %p3039 = pneg %p100
        $region75: #{triplet_forward.4} parent=68 // pred_check_branch
          %3041 = sbr.rel (%p3039) target = $region77
        $region76: #{triplet_forward.4} parent=68 // pred_region
          %s3042 = smul.u32 56, %s14
        $region77: #{triplet_forward.4} parent=68 // pred_fallthru
          _
      $region69: #{triplet_forward.4} parent=5 // pred_fallthru
        _
      %p3043 = scmp.le.s32.totalorder 2, %s9
      // Predicated region
      $region78: #{triplet_forward.4} parent=5 // pred_check
        %p3044 = pneg %p3043
      $region79: #{triplet_forward.4} parent=5 // pred_check_branch
        %3046 = sbr.rel (%p3044) target = $region81
      $region80: #{triplet_forward.4} parent=5 // pred_region
        %s3047 = ssub.s32 %s9, 2
        // Predicated region
        $region82: #{triplet_forward.4} parent=80 // pred_check
          %p3048 = pneg %p106
        $region83: #{triplet_forward.4} parent=80 // pred_check_branch
          %3050 = sbr.rel (%p3048) target = $region85
        $region84: #{triplet_forward.4} parent=80 // pred_region
          %s3051 = smul.u32 56, %s15
          %p3052 = scmp.lt.s32.totalorder %s3051, 111
          %s3053 = scalar_select %p3052, %s3051, 111
          %s3054 = smul.addr %s3053, 4
          %s3055 = scalar_lea.vmem %s3, %s3054
        $region85: #{triplet_forward.4} parent=80 // pred_fallthru
          _
      $region81: #{triplet_forward.4} parent=5 // pred_fallthru
        _
    $region6: #{triplet_forward.4} parent=1 // loop_footer
      %s13 = sadd.s32 1, %s9
    $region7: #{triplet_forward.4} parent=1 // loop_footer_branch
      %8 = sbr.rel target = $region3
    $region8: #{triplet_forward.4} parent=1 // loop_exit
      _

// kernel: triplet_forward.5
$region0: #{triplet_forward.5}
  #allocation0 [shape = 'u32[]', space=smem, size = 0x4, offset = 0x4, fixed_abs, tag = 'smem constant byte address 0x4 - core index']
  #allocation1 [shape = 'u32[72,128]{1,0:T(1,128)}', space=vmem, size = 0x9000, scoped, tag = 'internal scratch']
  %s0 = inlined_call_operand.vmem [shape: bf16[4,192,384], index: 0, kind: input, shape index: {}]
  %s1 = inlined_call_operand.vmem [shape: bf16[384,128], index: 1, kind: input, shape index: {}]
  %s2 = inlined_call_operand.vmem [shape: f32[1,128], index: 2, kind: input, shape index: {}]
  %s3 = inlined_call_operand.vmem [shape: bf16[192,128], index: 3, kind: output, shape index: {}]
  %s4 = sld [smem:[#allocation0]]
  $region71: #{triplet_forward.5} parent=0
    _
  %s6 = ssub.s32 1, %s4
  %s7 = scalar_select 0, %s6, %s4
  $region1: #{triplet_forward.5} parent=0
    #allocation2 [shape = 'u8[589824]{0}', space=vmem, size = 0x90000, scoped, tag = 'input window, operand 0']
    loop: start=0, step=1, limit=4
    $region2: #{triplet_forward.5} parent=1 // loop_pre_header
      _
    $region3: #{triplet_forward.5} parent=1 // loop_header
      %s9 = sphi 0, %s13
      %p10 = scmp.ge.s32.totalorder %s9, 4
      %s19 = sphi 0, %s21
      %s22 = sphi 0, %s19
      %s23 = sphi 0, %s22
      %s39 = sphi 0, %s23
      %s43 = sphi 0, %s43
      %s45 = sphi 0, %s43
      %s46 = sphi 0, %s45
      %s60 = sphi 0, %s46
      %s64 = sphi 0, %s64
      %s66 = sphi 0, %s64
      %s67 = sphi 0, %s66
      %s81 = sphi 0, %s67
      %s87 = sphi 0, %s89
      %s90 = sphi 0, %s87
      %s91 = sphi 0, %s90
      %s107 = sphi 0, %s91
    $region4: #{triplet_forward.5} parent=1 // loop_header_branch
      %12 = sbr.rel (%p10) target = $region8
    $region5: #{triplet_forward.5} parent=1 // loop_body
      %s14 = ssub.s32 %s9, 1
      %s15 = ssub.s32 %s9, 2
      %s16 = sadd.s32 %s9, 1
      %s17 = ssub.s32 %s9, %s16
      %p18 = scmp.eq.s32.totalorder %s17, 0
      %s20 = sadd.s32 %s19, 1
      %s21 = scalar_select %p18, %s19, %s20
      %p24 = pneg %p18
      %p25 = scmp.eq.s32.totalorder %s9, 1
      %p26 = por %p24, %p25
      %p27 = scmp.ne.s32.totalorder %s19, %s22
      %p28 = scmp.eq.s32.totalorder %s9, 0
      %p29 = por %p27, %p28
      %p30 = scmp.ne.s32.totalorder %s19, %s22
      %p31 = scmp.eq.s32.totalorder %s14, 1
      %p32 = por %p30, %p31
      %p33 = scmp.ne.s32.totalorder %s22, %s23
      %p34 = scmp.eq.s32.totalorder %s14, 0
      %p35 = por %p33, %p34
      %p36 = scmp.ne.s32.totalorder %s22, %s23
      %p37 = scmp.eq.s32.totalorder %s15, 1
      %p38 = por %p36, %p37
      %p40 = scmp.ne.s32.totalorder %s23, %s39
      %p41 = scmp.eq.s32.totalorder %s15, 0
      %p42 = por %p40, %p41
      %s44 = sadd.s32 %s43, 1
      %p47 = scmp.eq.s32.totalorder %s9, 1
      %p48 = scmp.ne.s32.totalorder %s43, %s45
      %p49 = scmp.eq.s32.totalorder %s9, 0
      %p50 = por %p48, %p49
      %p51 = scmp.ne.s32.totalorder %s43, %s45
      %p52 = scmp.eq.s32.totalorder %s14, 1
      %p53 = por %p51, %p52
      %p54 = scmp.ne.s32.totalorder %s45, %s46
      %p55 = scmp.eq.s32.totalorder %s14, 0
      %p56 = por %p54, %p55
      %p57 = scmp.ne.s32.totalorder %s45, %s46
      %p58 = scmp.eq.s32.totalorder %s15, 1
      %p59 = por %p57, %p58
      %p61 = scmp.ne.s32.totalorder %s46, %s60
      %p62 = scmp.eq.s32.totalorder %s15, 0
      %p63 = por %p61, %p62
      %s65 = sadd.s32 %s64, 1
      %p68 = scmp.eq.s32.totalorder %s9, 1
      %p69 = scmp.ne.s32.totalorder %s64, %s66
      %p70 = scmp.eq.s32.totalorder %s9, 0
      %p71 = por %p69, %p70
      %p72 = scmp.ne.s32.totalorder %s64, %s66
      %p73 = scmp.eq.s32.totalorder %s14, 1
      %p74 = por %p72, %p73
      %p75 = scmp.ne.s32.totalorder %s66, %s67
      %p76 = scmp.eq.s32.totalorder %s14, 0
      %p77 = por %p75, %p76
      %p78 = scmp.ne.s32.totalorder %s66, %s67
      %p79 = scmp.eq.s32.totalorder %s15, 1
      %p80 = por %p78, %p79
      %p82 = scmp.ne.s32.totalorder %s67, %s81
      %p83 = scmp.eq.s32.totalorder %s15, 0
      %p84 = por %p82, %p83
      %s85 = ssub.s32 %s9, %s16
      %p86 = scmp.eq.s32.totalorder %s85, 0
      %s88 = sadd.s32 %s87, 1
      %s89 = scalar_select %p86, %s87, %s88
      %p92 = pneg %p86
      %p93 = scmp.eq.s32.totalorder %s9, 1
      %p94 = por %p92, %p93
      %p95 = scmp.ne.s32.totalorder %s87, %s90
      %p96 = scmp.eq.s32.totalorder %s9, 0
      %p97 = por %p95, %p96
      %p98 = scmp.ne.s32.totalorder %s87, %s90
      %p99 = scmp.eq.s32.totalorder %s14, 1
      %p100 = por %p98, %p99
      %p101 = scmp.ne.s32.totalorder %s90, %s91
      %p102 = scmp.eq.s32.totalorder %s14, 0
      %p103 = por %p101, %p102
      %p104 = scmp.ne.s32.totalorder %s90, %s91
      %p105 = scmp.eq.s32.totalorder %s15, 1
      %p106 = por %p104, %p105
      %p108 = scmp.ne.s32.totalorder %s91, %s107
      %p109 = scmp.eq.s32.totalorder %s15, 0
      %p110 = por %p108, %p109
      %p111 = scmp.le.s32.totalorder 1, %s9
      %p112 = scmp.lt.s32.totalorder %s9, 3
      %p113 = pnand %p111, %p112
      %p114 = pneg %p113
      // Predicated region
      $region9: #{triplet_forward.5} parent=5 // pred_check
        _
      $region10: #{triplet_forward.5} parent=5 // pred_check_branch
        %116 = sbr.rel (%p113) target = $region12
      $region11: #{triplet_forward.5} parent=5 // pred_region
        %s117 = ssub.s32 %s9, 1
        // Predicated region
        $region13: #{triplet_forward.5} parent=11 // pred_check
          %p118 = pneg %p56
        $region14: #{triplet_forward.5} parent=11 // pred_check_branch
          %120 = sbr.rel (%p118) target = $region16
        $region15: #{triplet_forward.5} parent=11 // pred_region
          _
        $region16: #{triplet_forward.5} parent=11 // pred_fallthru
          _
        // Predicated region
        $region17: #{triplet_forward.5} parent=11 // pred_check
          %p121 = pneg %p77
        $region18: #{triplet_forward.5} parent=11 // pred_check_branch
          %123 = sbr.rel (%p121) target = $region20
        $region19: #{triplet_forward.5} parent=11 // pred_region
          _
        $region20: #{triplet_forward.5} parent=11 // pred_fallthru
          _
      $region12: #{triplet_forward.5} parent=5 // pred_fallthru
        _
      %p124 = scmp.lt.s32.totalorder %s9, 2
      // Predicated region
      $region21: #{triplet_forward.5} parent=5 // pred_check
        %p125 = pneg %p124
      $region22: #{triplet_forward.5} parent=5 // pred_check_branch
        %127 = sbr.rel (%p125) target = $region24
      $region23: #{triplet_forward.5} parent=5 // pred_region
        // Predicated region
        $region25: #{triplet_forward.5} parent=23 // pred_check
          %p128 = pneg %p29
        $region26: #{triplet_forward.5} parent=23 // pred_check_branch
          %130 = sbr.rel (%p128) target = $region28
        $region27: #{triplet_forward.5} parent=23 // pred_region
          %s131 = sand.u32 %s19, 1
          %s132 = sand.u32 %s19, 1
          %s133 = smul.addr %s132, 576
          %s134 = scalar_lea.vmem [#allocation2], %s133
          %s135 = smul.u32 12, %s9
          %s136 = smul.addr %s135, 3
          %s137 = smul.addr %s136, 4
          %s138 = scalar_lea.vmem %s0, %s137
          // Predicated region
          $region29: #{triplet_forward.5} parent=27 // pred_check
            _
          $region30: #{triplet_forward.5} parent=27 // pred_check_branch
            %140 = sbr.rel (0) target = $region32
          $region31: #{triplet_forward.5} parent=27 // pred_region
            // Predicated region
            $region33: #{triplet_forward.5} parent=31 // pred_check
              _
            $region34: #{triplet_forward.5} parent=31 // pred_check_branch
              %142 = sbr.rel (0) target = $region36
            $region35: #{triplet_forward.5} parent=31 // pred_region
              %s143 = scalar_lea.vmem %s138, 8
              %s144 = scalar_lea.vmem %s134, 8 [#allocation2]
              loop: start=0, step=1, limit=1
              $region37: #{triplet_forward.5} parent=35 // loop_pre_header
                _
              $region38: #{triplet_forward.5} parent=35 // loop_header
                %s146 = sphi 0, %s150
                %p147 = scmp.ge.s32.totalorder %s146, 1
                %s151 = sphi %s138, %s138
                %s152 = sphi %s134, %s134
              $region39: #{triplet_forward.5} parent=35 // loop_header_branch
                %149 = sbr.rel (%p147) target = $region43
              $region40: #{triplet_forward.5} parent=35 // loop_body
                %v153 = vld [vmem:[%s151] sm:$0xff]
                %154 = vst [vmem:[%s152] sm:$0xff] %v153
                %v155 = vld [vmem:[%s151 + $0xc] sm:$0xff]
                %156 = vst [vmem:[%s152 + $0xc] sm:$0xff] %v155
                %v157 = vld [vmem:[%s151 + $0x18] sm:$0xff]
                %158 = vst [vmem:[%s152 + $0x18] sm:$0xff] %v157
                %v159 = vld [vmem:[%s151 + $0x24] sm:$0xff]
                %160 = vst [vmem:[%s152 + $0x24] sm:$0xff] %v159
                %v161 = vld [vmem:[%s151 + $0x30] sm:$0xff]
                %162 = vst [vmem:[%s152 + $0x30] sm:$0xff] %v161
                %v163 = vld [vmem:[%s151 + $0x3c] sm:$0xff]
                %164 = vst [vmem:[%s152 + $0x3c] sm:$0xff] %v163
                %v165 = vld [vmem:[%s151 + $0x48] sm:$0xff]
                %166 = vst [vmem:[%s152 + $0x48] sm:$0xff] %v165
                %v167 = vld [vmem:[%s151 + $0x54] sm:$0xff]
                %168 = vst [vmem:[%s152 + $0x54] sm:$0xff] %v167
                %v169 = vld [vmem:[%s151 + $0x60] sm:$0xff]
                %170 = vst [vmem:[%s152 + $0x60] sm:$0xff] %v169
                %v171 = vld [vmem:[%s151 + $0x6c] sm:$0xff]
                %172 = vst [vmem:[%s152 + $0x6c] sm:$0xff] %v171
                %v173 = vld [vmem:[%s151 + $0x78] sm:$0xff]
                %174 = vst [vmem:[%s152 + $0x78] sm:$0xff] %v173
                %v175 = vld [vmem:[%s151 + $0x84] sm:$0xff]
                %176 = vst [vmem:[%s152 + $0x84] sm:$0xff] %v175
                %v177 = vld [vmem:[%s151 + $0x120] sm:$0xff]
                %178 = vst [vmem:[%s152 + $0x90] sm:$0xff] %v177
                %v179 = vld [vmem:[%s151 + $0x12c] sm:$0xff]
                %180 = vst [vmem:[%s152 + $0x9c] sm:$0xff] %v179
                %v181 = vld [vmem:[%s151 + $0x138] sm:$0xff]
                %182 = vst [vmem:[%s152 + $0xa8] sm:$0xff] %v181
                %v183 = vld [vmem:[%s151 + $0x144] sm:$0xff]
                %184 = vst [vmem:[%s152 + $0xb4] sm:$0xff] %v183
                %v185 = vld [vmem:[%s151 + $0x150] sm:$0xff]
                %186 = vst [vmem:[%s152 + $0xc0] sm:$0xff] %v185
                %v187 = vld [vmem:[%s151 + $0x15c] sm:$0xff]
                %188 = vst [vmem:[%s152 + $0xcc] sm:$0xff] %v187
                %v189 = vld [vmem:[%s151 + $0x168] sm:$0xff]
                %190 = vst [vmem:[%s152 + $0xd8] sm:$0xff] %v189
                %v191 = vld [vmem:[%s151 + $0x174] sm:$0xff]
                %192 = vst [vmem:[%s152 + $0xe4] sm:$0xff] %v191
                %v193 = vld [vmem:[%s151 + $0x180] sm:$0xff]
                %194 = vst [vmem:[%s152 + $0xf0] sm:$0xff] %v193
                %v195 = vld [vmem:[%s151 + $0x18c] sm:$0xff]
                %196 = vst [vmem:[%s152 + $0xfc] sm:$0xff] %v195
                %v197 = vld [vmem:[%s151 + $0x198] sm:$0xff]
                %198 = vst [vmem:[%s152 + $0x108] sm:$0xff] %v197
                %v199 = vld [vmem:[%s151 + $0x1a4] sm:$0xff]
                %200 = vst [vmem:[%s152 + $0x114] sm:$0xff] %v199
                %v201 = vld [vmem:[%s151 + $0x240] sm:$0xff]
                %202 = vst [vmem:[%s152 + $0x120] sm:$0xff] %v201
                %v203 = vld [vmem:[%s151 + $0x24c] sm:$0xff]
                %204 = vst [vmem:[%s152 + $0x12c] sm:$0xff] %v203
                %v205 = vld [vmem:[%s151 + $0x258] sm:$0xff]
                %206 = vst [vmem:[%s152 + $0x138] sm:$0xff] %v205
                %v207 = vld [vmem:[%s151 + $0x264] sm:$0xff]
                %208 = vst [vmem:[%s152 + $0x144] sm:$0xff] %v207
                %v209 = vld [vmem:[%s151 + $0x270] sm:$0xff]
                %210 = vst [vmem:[%s152 + $0x150] sm:$0xff] %v209
                %v211 = vld [vmem:[%s151 + $0x27c] sm:$0xff]
                %212 = vst [vmem:[%s152 + $0x15c] sm:$0xff] %v211
                %v213 = vld [vmem:[%s151 + $0x288] sm:$0xff]
                %214 = vst [vmem:[%s152 + $0x168] sm:$0xff] %v213
                %v215 = vld [vmem:[%s151 + $0x294] sm:$0xff]
                %216 = vst [vmem:[%s152 + $0x174] sm:$0xff] %v215
                %v217 = vld [vmem:[%s151 + $0x2a0] sm:$0xff]
                %218 = vst [vmem:[%s152 + $0x180] sm:$0xff] %v217
                %v219 = vld [vmem:[%s151 + $0x2ac] sm:$0xff]
                %220 = vst [vmem:[%s152 + $0x18c] sm:$0xff] %v219
                %v221 = vld [vmem:[%s151 + $0x2b8] sm:$0xff]
                %222 = vst [vmem:[%s152 + $0x198] sm:$0xff] %v221
                %v223 = vld [vmem:[%s151 + $0x2c4] sm:$0xff]
                %224 = vst [vmem:[%s152 + $0x1a4] sm:$0xff] %v223
                %v225 = vld [vmem:[%s151 + $0x360] sm:$0xff]
                %226 = vst [vmem:[%s152 + $0x1b0] sm:$0xff] %v225
                %v227 = vld [vmem:[%s151 + $0x36c] sm:$0xff]
                %228 = vst [vmem:[%s152 + $0x1bc] sm:$0xff] %v227
                %v229 = vld [vmem:[%s151 + $0x378] sm:$0xff]
                %230 = vst [vmem:[%s152 + $0x1c8] sm:$0xff] %v229
                %v231 = vld [vmem:[%s151 + $0x384] sm:$0xff]
                %232 = vst [vmem:[%s152 + $0x1d4] sm:$0xff] %v231
                %v233 = vld [vmem:[%s151 + $0x390] sm:$0xff]
                %234 = vst [vmem:[%s152 + $0x1e0] sm:$0xff] %v233
                %v235 = vld [vmem:[%s151 + $0x39c] sm:$0xff]
                %236 = vst [vmem:[%s152 + $0x1ec] sm:$0xff] %v235
                %v237 = vld [vmem:[%s151 + $0x3a8] sm:$0xff]
                %238 = vst [vmem:[%s152 + $0x1f8] sm:$0xff] %v237
                %v239 = vld [vmem:[%s151 + $0x3b4] sm:$0xff]
                %240 = vst [vmem:[%s152 + $0x204] sm:$0xff] %v239
                %v241 = vld [vmem:[%s151 + $0x3c0] sm:$0xff]
                %242 = vst [vmem:[%s152 + $0x210] sm:$0xff] %v241
                %v243 = vld [vmem:[%s151 + $0x3cc] sm:$0xff]
                %244 = vst [vmem:[%s152 + $0x21c] sm:$0xff] %v243
                %v245 = vld [vmem:[%s151 + $0x3d8] sm:$0xff]
                %246 = vst [vmem:[%s152 + $0x228] sm:$0xff] %v245
                %v247 = vld [vmem:[%s151 + $0x3e4] sm:$0xff]
                %248 = vst [vmem:[%s152 + $0x234] sm:$0xff] %v247
              $region41: #{triplet_forward.5} parent=35 // loop_footer
                %s150 = sadd.s32 1, %s146
              $region42: #{triplet_forward.5} parent=35 // loop_footer_branch
                %145 = sbr.rel target = $region38
              $region43: #{triplet_forward.5} parent=35 // loop_exit
                _
              %s250 = ssub.s32 16, 1
              loop: start=0, step=1, limit=1
              $region44: #{triplet_forward.5} parent=35 // loop_pre_header
                _
              $region45: #{triplet_forward.5} parent=35 // loop_header
                %s252 = sphi 0, %s256
                %p253 = scmp.ge.s32.totalorder %s252, 1
                %s257 = sphi %s143, %s143
                %s258 = sphi %s144, %s144
              $region46: #{triplet_forward.5} parent=35 // loop_header_branch
                %255 = sbr.rel (%p253) target = $region50
              $region47: #{triplet_forward.5} parent=35 // loop_body
                %v259 = vld [vmem:[%s257] sm:%s250]
                %260 = vst [vmem:[%s258] sm:%s250] %v259
                %v261 = vld [vmem:[%s257 + $0xc] sm:%s250]
                %262 = vst [vmem:[%s258 + $0xc] sm:%s250] %v261
                %v263 = vld [vmem:[%s257 + $0x18] sm:%s250]
                %264 = vst [vmem:[%s258 + $0x18] sm:%s250] %v263
                %v265 = vld [vmem:[%s257 + $0x24] sm:%s250]
                %266 = vst [vmem:[%s258 + $0x24] sm:%s250] %v265
                %v267 = vld [vmem:[%s257 + $0x30] sm:%s250]
                %268 = vst [vmem:[%s258 + $0x30] sm:%s250] %v267
                %v269 = vld [vmem:[%s257 + $0x3c] sm:%s250]
                %270 = vst [vmem:[%s258 + $0x3c] sm:%s250] %v269
                %v271 = vld [vmem:[%s257 + $0x48] sm:%s250]
                %272 = vst [vmem:[%s258 + $0x48] sm:%s250] %v271
                %v273 = vld [vmem:[%s257 + $0x54] sm:%s250]
                %274 = vst [vmem:[%s258 + $0x54] sm:%s250] %v273
                %v275 = vld [vmem:[%s257 + $0x60] sm:%s250]
                %276 = vst [vmem:[%s258 + $0x60] sm:%s250] %v275
                %v277 = vld [vmem:[%s257 + $0x6c] sm:%s250]
                %278 = vst [vmem:[%s258 + $0x6c] sm:%s250] %v277
                %v279 = vld [vmem:[%s257 + $0x78] sm:%s250]
                %280 = vst [vmem:[%s258 + $0x78] sm:%s250] %v279
                %v281 = vld [vmem:[%s257 + $0x84] sm:%s250]
                %282 = vst [vmem:[%s258 + $0x84] sm:%s250] %v281
                %v283 = vld [vmem:[%s257 + $0x120] sm:%s250]
                %284 = vst [vmem:[%s258 + $0x90] sm:%s250] %v283
                %v285 = vld [vmem:[%s257 + $0x12c] sm:%s250]
                %286 = vst [vmem:[%s258 + $0x9c] sm:%s250] %v285
                %v287 = vld [vmem:[%s257 + $0x138] sm:%s250]
                %288 = vst [vmem:[%s258 + $0xa8] sm:%s250] %v287
                %v289 = vld [vmem:[%s257 + $0x144] sm:%s250]
                %290 = vst [vmem:[%s258 + $0xb4] sm:%s250] %v289
                %v291 = vld [vmem:[%s257 + $0x150] sm:%s250]
                %292 = vst [vmem:[%s258 + $0xc0] sm:%s250] %v291
                %v293 = vld [vmem:[%s257 + $0x15c] sm:%s250]
                %294 = vst [vmem:[%s258 + $0xcc] sm:%s250] %v293
                %v295 = vld [vmem:[%s257 + $0x168] sm:%s250]
                %296 = vst [vmem:[%s258 + $0xd8] sm:%s250] %v295
                %v297 = vld [vmem:[%s257 + $0x174] sm:%s250]
                %298 = vst [vmem:[%s258 + $0xe4] sm:%s250] %v297
                %v299 = vld [vmem:[%s257 + $0x180] sm:%s250]
                %300 = vst [vmem:[%s258 + $0xf0] sm:%s250] %v299
                %v301 = vld [vmem:[%s257 + $0x18c] sm:%s250]
                %302 = vst [vmem:[%s258 + $0xfc] sm:%s250] %v301
                %v303 = vld [vmem:[%s257 + $0x198] sm:%s250]
                %304 = vst [vmem:[%s258 + $0x108] sm:%s250] %v303
                %v305 = vld [vmem:[%s257 + $0x1a4] sm:%s250]
                %306 = vst [vmem:[%s258 + $0x114] sm:%s250] %v305
                %v307 = vld [vmem:[%s257 + $0x240] sm:%s250]
                %308 = vst [vmem:[%s258 + $0x120] sm:%s250] %v307
                %v309 = vld [vmem:[%s257 + $0x24c] sm:%s250]
                %310 = vst [vmem:[%s258 + $0x12c] sm:%s250] %v309
                %v311 = vld [vmem:[%s257 + $0x258] sm:%s250]
                %312 = vst [vmem:[%s258 + $0x138] sm:%s250] %v311
                %v313 = vld [vmem:[%s257 + $0x264] sm:%s250]
                %314 = vst [vmem:[%s258 + $0x144] sm:%s250] %v313
                %v315 = vld [vmem:[%s257 + $0x270] sm:%s250]
                %316 = vst [vmem:[%s258 + $0x150] sm:%s250] %v315
                %v317 = vld [vmem:[%s257 + $0x27c] sm:%s250]
                %318 = vst [vmem:[%s258 + $0x15c] sm:%s250] %v317
                %v319 = vld [vmem:[%s257 + $0x288] sm:%s250]
                %320 = vst [vmem:[%s258 + $0x168] sm:%s250] %v319
                %v321 = vld [vmem:[%s257 + $0x294] sm:%s250]
                %322 = vst [vmem:[%s258 + $0x174] sm:%s250] %v321
                %v323 = vld [vmem:[%s257 + $0x2a0] sm:%s250]
                %324 = vst [vmem:[%s258 + $0x180] sm:%s250] %v323
                %v325 = vld [vmem:[%s257 + $0x2ac] sm:%s250]
                %326 = vst [vmem:[%s258 + $0x18c] sm:%s250] %v325
                %v327 = vld [vmem:[%s257 + $0x2b8] sm:%s250]
                %328 = vst [vmem:[%s258 + $0x198] sm:%s250] %v327
                %v329 = vld [vmem:[%s257 + $0x2c4] sm:%s250]
                %330 = vst [vmem:[%s258 + $0x1a4] sm:%s250] %v329
                %v331 = vld [vmem:[%s257 + $0x360] sm:%s250]
                %332 = vst [vmem:[%s258 + $0x1b0] sm:%s250] %v331
                %v333 = vld [vmem:[%s257 + $0x36c] sm:%s250]
                %334 = vst [vmem:[%s258 + $0x1bc] sm:%s250] %v333
                %v335 = vld [vmem:[%s257 + $0x378] sm:%s250]
                %336 = vst [vmem:[%s258 + $0x1c8] sm:%s250] %v335
                %v337 = vld [vmem:[%s257 + $0x384] sm:%s250]
                %338 = vst [vmem:[%s258 + $0x1d4] sm:%s250] %v337
                %v339 = vld [vmem:[%s257 + $0x390] sm:%s250]
                %340 = vst [vmem:[%s258 + $0x1e0] sm:%s250] %v339
                %v341 = vld [vmem:[%s257 + $0x39c] sm:%s250]
                %342 = vst [vmem:[%s258 + $0x1ec] sm:%s250] %v341
                %v343 = vld [vmem:[%s257 + $0x3a8] sm:%s250]
                %344 = vst [vmem:[%s258 + $0x1f8] sm:%s250] %v343
                %v345 = vld [vmem:[%s257 + $0x3b4] sm:%s250]
                %346 = vst [vmem:[%s258 + $0x204] sm:%s250] %v345
                %v347 = vld [vmem:[%s257 + $0x3c0] sm:%s250]
                %348 = vst [vmem:[%s258 + $0x210] sm:%s250] %v347
                %v349 = vld [vmem:[%s257 + $0x3cc] sm:%s250]
                %350 = vst [vmem:[%s258 + $0x21c] sm:%s250] %v349
                %v351 = vld [vmem:[%s257 + $0x3d8] sm:%s250]
                %352 = vst [vmem:[%s258 + $0x228] sm:%s250] %v351
                %v353 = vld [vmem:[%s257 + $0x3e4] sm:%s250]
                %354 = vst [vmem:[%s258 + $0x234] sm:%s250] %v353
              $region48: #{triplet_forward.5} parent=35 // loop_footer
                %s256 = sadd.s32 1, %s252
              $region49: #{triplet_forward.5} parent=35 // loop_footer_branch
                %251 = sbr.rel target = $region45
              $region50: #{triplet_forward.5} parent=35 // loop_exit
                _
            $region36: #{triplet_forward.5} parent=31 // pred_fallthru
              _
          $region32: #{triplet_forward.5} parent=27 // pred_fallthru
            _
          %355 = vnop
        $region28: #{triplet_forward.5} parent=23 // pred_fallthru
          _
      $region24: #{triplet_forward.5} parent=5 // pred_fallthru
        _
      %p356 = scmp.le.s32.totalorder 1, %s9
      %p357 = scmp.lt.s32.totalorder %s9, 3
      %p358 = pnand %p356, %p357
      %p359 = pneg %p358
      // Predicated region
      $region51: #{triplet_forward.5} parent=5 // pred_check
        _
      $region52: #{triplet_forward.5} parent=5 // pred_check_branch
        %361 = sbr.rel (%p358) target = $region54
      $region53: #{triplet_forward.5} parent=5 // pred_region
        %s362 = ssub.s32 %s9, 1
        %s363 = sand.u32 %s22, 1
        %s364 = sand.u32 %s22, 1
        %s365 = smul.addr %s364, 576
        %s366 = scalar_lea.vmem [#allocation2], %s365
        // Predicated region
        $region55: #{triplet_forward.5} parent=53 // pred_check
          %p367 = pneg %p35
        $region56: #{triplet_forward.5} parent=53 // pred_check_branch
          %369 = sbr.rel (%p367) target = $region58
        $region57: #{triplet_forward.5} parent=53 // pred_region
          _
        $region58: #{triplet_forward.5} parent=53 // pred_fallthru
          _
        %s370 = sand.u32 %s22, 1
        %s371 = sand.u32 %s22, 1
        %s372 = smul.addr %s371, 576
        %s373 = scalar_lea.vmem [#allocation2], %s372
        %p374 = pneg %p35
        %p375 = pneg %p32
        %p376 = pneg %p56
        %p377 = pneg %p53
        %p378 = pneg %p77
        %p379 = pneg %p74
        %p380 = pneg %p103
        %p381 = pneg %p100
        %s382 = smul.u32 12, %s14
        %p383 = scmp.lt.s32.totalorder %s382, 23
        %s384 = scalar_select %p383, %s382, 23
        %s385 = smul.addr %s384, 4
        %s386 = scalar_lea.vmem %s3, %s385
        %s387 = smul.u32 12, %s14
        %s388 = smul.u32 12, %s14
        %p389 = scmp.lt.s32.totalorder %s388, 23
        %s390 = scalar_select %p389, %s388, 23
        %s391 = smul.addr %s390, 4
        %s392 = scalar_lea.vmem %s3, %s391
        %s393 = smul.u32 12, %s14
        %v394 = vld [vmem:[%s366] sm:$0xff]
        %v395 = vld [vmem:[%s366 + $0x8] sm:$0xf]
        %v396 = vld [vmem:[%s366 + $0xc] sm:$0xff]
        %v397 = vld [vmem:[%s366 + $0x14] sm:$0xf]
        %v398 = vld [vmem:[%s366 + $0x18] sm:$0xff]
        %v399 = vld [vmem:[%s366 + $0x20] sm:$0xf]
        %v400 = vld [vmem:[%s366 + $0x24] sm:$0xff]
        %v401 = vld [vmem:[%s366 + $0x2c] sm:$0xf]
        %v402 = vld [vmem:[%s366 + $0x30] sm:$0xff]
        %v403 = vld [vmem:[%s366 + $0x38] sm:$0xf]
        %v404 = vld [vmem:[%s366 + $0x3c] sm:$0xff]
        %v405 = vld [vmem:[%s366 + $0x44] sm:$0xf]
        %v406 = vld [vmem:[%s366 + $0x48] sm:$0xff]
        %v407 = vld [vmem:[%s366 + $0x50] sm:$0xf]
        %v408 = vld [vmem:[%s366 + $0x54] sm:$0xff]
        %v409 = vld [vmem:[%s366 + $0x5c] sm:$0xf]
        %v410 = vld [vmem:[%s366 + $0x60] sm:$0xff]
        %v411 = vld [vmem:[%s366 + $0x68] sm:$0xf]
        %v412 = vld [vmem:[%s366 + $0x6c] sm:$0xff]
        %v413 = vld [vmem:[%s366 + $0x74] sm:$0xf]
        %v414 = vld [vmem:[%s366 + $0x78] sm:$0xff]
        %v415 = vld [vmem:[%s366 + $0x80] sm:$0xf]
        %v416 = vld [vmem:[%s366 + $0x84] sm:$0xff]
        %v417 = vld [vmem:[%s366 + $0x8c] sm:$0xf]
        %v418 = vld [vmem:[%s366 + $0x90] sm:$0xff]
        %v419 = vld [vmem:[%s366 + $0x98] sm:$0xf]
        %v420 = vld [vmem:[%s366 + $0x9c] sm:$0xff]
        %v421 = vld [vmem:[%s366 + $0xa4] sm:$0xf]
        %v422 = vld [vmem:[%s366 + $0xa8] sm:$0xff]
        %v423 = vld [vmem:[%s366 + $0xb0] sm:$0xf]
        %v424 = vld [vmem:[%s366 + $0xb4] sm:$0xff]
        %v425 = vld [vmem:[%s366 + $0xbc] sm:$0xf]
        %v426 = vld [vmem:[%s366 + $0xc0] sm:$0xff]
        %v427 = vld [vmem:[%s366 + $0xc8] sm:$0xf]
        %v428 = vld [vmem:[%s366 + $0xcc] sm:$0xff]
        %v429 = vld [vmem:[%s366 + $0xd4] sm:$0xf]
        %v430 = vld [vmem:[%s366 + $0xd8] sm:$0xff]
        %v431 = vld [vmem:[%s366 + $0xe0] sm:$0xf]
        %v432 = vld [vmem:[%s366 + $0xe4] sm:$0xff]
        %v433 = vld [vmem:[%s366 + $0xec] sm:$0xf]
        %v434 = vld [vmem:[%s366 + $0xf0] sm:$0xff]
        %v435 = vld [vmem:[%s366 + $0xf8] sm:$0xf]
        %v436 = vld [vmem:[%s366 + $0xfc] sm:$0xff]
        %v437 = vld [vmem:[%s366 + $0x104] sm:$0xf]
        %v438 = vld [vmem:[%s366 + $0x108] sm:$0xff]
        %v439 = vld [vmem:[%s366 + $0x110] sm:$0xf]
        %v440 = vld [vmem:[%s366 + $0x114] sm:$0xff]
        %v441 = vld [vmem:[%s366 + $0x11c] sm:$0xf]
        %v442 = vld [vmem:[%s366 + $0x120] sm:$0xff]
        %v443 = vld [vmem:[%s366 + $0x128] sm:$0xf]
        %v444 = vld [vmem:[%s366 + $0x12c] sm:$0xff]
        %v445 = vld [vmem:[%s366 + $0x134] sm:$0xf]
        %v446 = vld [vmem:[%s366 + $0x138] sm:$0xff]
        %v447 = vld [vmem:[%s366 + $0x140] sm:$0xf]
        %v448 = vld [vmem:[%s366 + $0x144] sm:$0xff]
        %v449 = vld [vmem:[%s366 + $0x14c] sm:$0xf]
        %v450 = vld [vmem:[%s366 + $0x150] sm:$0xff]
        %v451 = vld [vmem:[%s366 + $0x158] sm:$0xf]
        %v452 = vld [vmem:[%s366 + $0x15c] sm:$0xff]
        %v453 = vld [vmem:[%s366 + $0x164] sm:$0xf]
        %v454 = vld [vmem:[%s366 + $0x168] sm:$0xff]
        %v455 = vld [vmem:[%s366 + $0x170] sm:$0xf]
        %v456 = vld [vmem:[%s366 + $0x174] sm:$0xff]
        %v457 = vld [vmem:[%s366 + $0x17c] sm:$0xf]
        %v458 = vld [vmem:[%s366 + $0x180] sm:$0xff]
        %v459 = vld [vmem:[%s366 + $0x188] sm:$0xf]
        %v460 = vld [vmem:[%s366 + $0x18c] sm:$0xff]
        %v461 = vld [vmem:[%s366 + $0x194] sm:$0xf]
        %v462 = vld [vmem:[%s366 + $0x198] sm:$0xff]
        %v463 = vld [vmem:[%s366 + $0x1a0] sm:$0xf]
        %v464 = vld [vmem:[%s366 + $0x1a4] sm:$0xff]
        %v465 = vld [vmem:[%s366 + $0x1ac] sm:$0xf]
        %v466 = vld [vmem:[%s366 + $0x1b0] sm:$0xff]
        %v467 = vld [vmem:[%s366 + $0x1b8] sm:$0xf]
        %v468 = vld [vmem:[%s366 + $0x1bc] sm:$0xff]
        %v469 = vld [vmem:[%s366 + $0x1c4] sm:$0xf]
        %v470 = vld [vmem:[%s366 + $0x1c8] sm:$0xff]
        %v471 = vld [vmem:[%s366 + $0x1d0] sm:$0xf]
        %v472 = vld [vmem:[%s366 + $0x1d4] sm:$0xff]
        %v473 = vld [vmem:[%s366 + $0x1dc] sm:$0xf]
        %v474 = vld [vmem:[%s366 + $0x1e0] sm:$0xff]
        %v475 = vld [vmem:[%s366 + $0x1e8] sm:$0xf]
        %v476 = vld [vmem:[%s366 + $0x1ec] sm:$0xff]
        %v477 = vld [vmem:[%s366 + $0x1f4] sm:$0xf]
        %v478 = vld [vmem:[%s366 + $0x1f8] sm:$0xff]
        %v479 = vld [vmem:[%s366 + $0x200] sm:$0xf]
        %v480 = vld [vmem:[%s366 + $0x204] sm:$0xff]
        %v481 = vld [vmem:[%s366 + $0x20c] sm:$0xf]
        %v482 = vld [vmem:[%s366 + $0x210] sm:$0xff]
        %v483 = vld [vmem:[%s366 + $0x218] sm:$0xf]
        %v484 = vld [vmem:[%s366 + $0x21c] sm:$0xff]
        %v485 = vld [vmem:[%s366 + $0x224] sm:$0xf]
        %v486 = vld [vmem:[%s366 + $0x228] sm:$0xff]
        %v487 = vld [vmem:[%s366 + $0x230] sm:$0xf]
        %v488 = vld [vmem:[%s366 + $0x234] sm:$0xff]
        %v489 = vld [vmem:[%s366 + $0x23c] sm:$0xf]
        %v490 = vld [vmem:[%s1] sm:$0xf]
        %v491 = vld [vmem:[%s1 + $0x4] sm:$0xf]
        %v492 = vld [vmem:[%s1 + $0x8] sm:$0xf]
        %v493 = vld [vmem:[%s1 + $0xc] sm:$0xf]
        %v494 = vld [vmem:[%s1 + $0x10] sm:$0xf]
        %v495 = vld [vmem:[%s1 + $0x14] sm:$0xf]
        %v496 = vld [vmem:[%s1 + $0x18] sm:$0xf]
        %v497 = vld [vmem:[%s1 + $0x1c] sm:$0xf]
        %v498 = vld [vmem:[%s1 + $0x20] sm:$0xf]
        %v499 = vld [vmem:[%s1 + $0x24] sm:$0xf]
        %v500 = vld [vmem:[%s1 + $0x28] sm:$0xf]
        %v501 = vld [vmem:[%s1 + $0x2c] sm:$0xf]
        %v502 = vld [vmem:[%s1 + $0x30] sm:$0xf]
        %v503 = vld [vmem:[%s1 + $0x34] sm:$0xf]
        %v504 = vld [vmem:[%s1 + $0x38] sm:$0xf]
        %v505 = vld [vmem:[%s1 + $0x3c] sm:$0xf]
        %v506 = vld [vmem:[%s1 + $0x40] sm:$0xf]
        %v507 = vld [vmem:[%s1 + $0x44] sm:$0xf]
        %v508 = vld [vmem:[%s1 + $0x48] sm:$0xf]
        %v509 = vld [vmem:[%s1 + $0x4c] sm:$0xf]
        %v510 = vld [vmem:[%s1 + $0x50] sm:$0xf]
        %v511 = vld [vmem:[%s1 + $0x54] sm:$0xf]
        %v512 = vld [vmem:[%s1 + $0x58] sm:$0xf]
        %v513 = vld [vmem:[%s1 + $0x5c] sm:$0xf]
        %v514 = vld [vmem:[%s1 + $0x60] sm:$0xf]
        %v515 = vld [vmem:[%s1 + $0x64] sm:$0xf]
        %v516 = vld [vmem:[%s1 + $0x68] sm:$0xf]
        %v517 = vld [vmem:[%s1 + $0x6c] sm:$0xf]
        %v518 = vld [vmem:[%s1 + $0x70] sm:$0xf]
        %v519 = vld [vmem:[%s1 + $0x74] sm:$0xf]
        %v520 = vld [vmem:[%s1 + $0x78] sm:$0xf]
        %v521 = vld [vmem:[%s1 + $0x7c] sm:$0xf]
        %v522 = vld [vmem:[%s1 + $0x80] sm:$0xf]
        %v523 = vld [vmem:[%s1 + $0x84] sm:$0xf]
        %v524 = vld [vmem:[%s1 + $0x88] sm:$0xf]
        %v525 = vld [vmem:[%s1 + $0x8c] sm:$0xf]
        %v526 = vld [vmem:[%s1 + $0x90] sm:$0xf]
        %v527 = vld [vmem:[%s1 + $0x94] sm:$0xf]
        %v528 = vld [vmem:[%s1 + $0x98] sm:$0xf]
        %v529 = vld [vmem:[%s1 + $0x9c] sm:$0xf]
        %v530 = vld [vmem:[%s1 + $0xa0] sm:$0xf]
        %v531 = vld [vmem:[%s1 + $0xa4] sm:$0xf]
        %v532 = vld [vmem:[%s1 + $0xa8] sm:$0xf]
        %v533 = vld [vmem:[%s1 + $0xac] sm:$0xf]
        %v534 = vld [vmem:[%s1 + $0xb0] sm:$0xf]
        %v535 = vld [vmem:[%s1 + $0xb4] sm:$0xf]
        %v536 = vld [vmem:[%s1 + $0xb8] sm:$0xf]
        %v537 = vld [vmem:[%s1 + $0xbc] sm:$0xf]
        %v634 = vunpack.c.l.b16 %v394
        %v635 = vunpack.c.h.b16 %v394
        %v636 = vunpack.c.l.b16 %v395
        %v637 = vunpack.c.l.b16 %v396
        %v638 = vunpack.c.h.b16 %v396
        %v639 = vunpack.c.l.b16 %v397
        %v640 = vunpack.c.l.b16 %v398
        %v641 = vunpack.c.h.b16 %v398
        %v642 = vunpack.c.l.b16 %v399
        %v643 = vunpack.c.l.b16 %v400
        %v644 = vunpack.c.h.b16 %v400
        %v645 = vunpack.c.l.b16 %v401
        %v646 = vunpack.c.l.b16 %v402
        %v647 = vunpack.c.h.b16 %v402
        %v648 = vunpack.c.l.b16 %v403
        %v649 = vunpack.c.l.b16 %v404
        %v650 = vunpack.c.h.b16 %v404
        %v651 = vunpack.c.l.b16 %v405
        %v652 = vunpack.c.l.b16 %v406
        %v653 = vunpack.c.h.b16 %v406
        %v654 = vunpack.c.l.b16 %v407
        %v655 = vunpack.c.l.b16 %v408
        %v656 = vunpack.c.h.b16 %v408
        %v657 = vunpack.c.l.b16 %v409
        %v658 = vunpack.c.l.b16 %v410
        %v659 = vunpack.c.h.b16 %v410
        %v660 = vunpack.c.l.b16 %v411
        %v661 = vunpack.c.l.b16 %v412
        %v662 = vunpack.c.h.b16 %v412
        %v663 = vunpack.c.l.b16 %v413
        %v664 = vunpack.c.l.b16 %v414
        %v665 = vunpack.c.h.b16 %v414
        %v666 = vunpack.c.l.b16 %v415
        %v667 = vunpack.c.l.b16 %v416
        %v668 = vunpack.c.h.b16 %v416
        %v669 = vunpack.c.l.b16 %v417
        %v670 = vunpack.c.l.b16 %v418
        %v671 = vunpack.c.h.b16 %v418
        %v672 = vunpack.c.l.b16 %v419
        %v673 = vunpack.c.l.b16 %v420
        %v674 = vunpack.c.h.b16 %v420
        %v675 = vunpack.c.l.b16 %v421
        %v676 = vunpack.c.l.b16 %v422
        %v677 = vunpack.c.h.b16 %v422
        %v678 = vunpack.c.l.b16 %v423
        %v679 = vunpack.c.l.b16 %v424
        %v680 = vunpack.c.h.b16 %v424
        %v681 = vunpack.c.l.b16 %v425
        %v682 = vunpack.c.l.b16 %v426
        %v683 = vunpack.c.h.b16 %v426
        %v684 = vunpack.c.l.b16 %v427
        %v685 = vunpack.c.l.b16 %v428
        %v686 = vunpack.c.h.b16 %v428
        %v687 = vunpack.c.l.b16 %v429
        %v688 = vunpack.c.l.b16 %v430
        %v689 = vunpack.c.h.b16 %v430
        %v690 = vunpack.c.l.b16 %v431
        %v691 = vunpack.c.l.b16 %v432
        %v692 = vunpack.c.h.b16 %v432
        %v693 = vunpack.c.l.b16 %v433
        %v694 = vunpack.c.l.b16 %v434
        %v695 = vunpack.c.h.b16 %v434
        %v696 = vunpack.c.l.b16 %v435
        %v697 = vunpack.c.l.b16 %v436
        %v698 = vunpack.c.h.b16 %v436
        %v699 = vunpack.c.l.b16 %v437
        %v700 = vunpack.c.l.b16 %v438
        %v701 = vunpack.c.h.b16 %v438
        %v702 = vunpack.c.l.b16 %v439
        %v703 = vunpack.c.l.b16 %v440
        %v704 = vunpack.c.h.b16 %v440
        %v705 = vunpack.c.l.b16 %v441
        %v706 = vunpack.c.l.b16 %v442
        %v707 = vunpack.c.h.b16 %v442
        %v708 = vunpack.c.l.b16 %v443
        %v709 = vunpack.c.l.b16 %v444
        %v710 = vunpack.c.h.b16 %v444
        %v711 = vunpack.c.l.b16 %v445
        %v712 = vunpack.c.l.b16 %v446
        %v713 = vunpack.c.h.b16 %v446
        %v714 = vunpack.c.l.b16 %v447
        %v715 = vunpack.c.l.b16 %v448
        %v716 = vunpack.c.h.b16 %v448
        %v717 = vunpack.c.l.b16 %v449
        %v718 = vunpack.c.l.b16 %v450
        %v719 = vunpack.c.h.b16 %v450
        %v720 = vunpack.c.l.b16 %v451
        %v721 = vunpack.c.l.b16 %v452
        %v722 = vunpack.c.h.b16 %v452
        %v723 = vunpack.c.l.b16 %v453
        %v724 = vunpack.c.l.b16 %v454
        %v725 = vunpack.c.h.b16 %v454
        %v726 = vunpack.c.l.b16 %v455
        %v727 = vunpack.c.l.b16 %v456
        %v728 = vunpack.c.h.b16 %v456
        %v729 = vunpack.c.l.b16 %v457
        %v730 = vunpack.c.l.b16 %v458
        %v731 = vunpack.c.h.b16 %v458
        %v732 = vunpack.c.l.b16 %v459
        %v733 = vunpack.c.l.b16 %v460
        %v734 = vunpack.c.h.b16 %v460
        %v735 = vunpack.c.l.b16 %v461
        %v736 = vunpack.c.l.b16 %v462
        %v737 = vunpack.c.h.b16 %v462
        %v738 = vunpack.c.l.b16 %v463
        %v739 = vunpack.c.l.b16 %v464
        %v740 = vunpack.c.h.b16 %v464
        %v741 = vunpack.c.l.b16 %v465
        %v742 = vunpack.c.l.b16 %v466
        %v743 = vunpack.c.h.b16 %v466
        %v744 = vunpack.c.l.b16 %v467
        %v745 = vunpack.c.l.b16 %v468
        %v746 = vunpack.c.h.b16 %v468
        %v747 = vunpack.c.l.b16 %v469
        %v748 = vunpack.c.l.b16 %v470
        %v749 = vunpack.c.h.b16 %v470
        %v750 = vunpack.c.l.b16 %v471
        %v751 = vunpack.c.l.b16 %v472
        %v752 = vunpack.c.h.b16 %v472
        %v753 = vunpack.c.l.b16 %v473
        %v754 = vunpack.c.l.b16 %v474
        %v755 = vunpack.c.h.b16 %v474
        %v756 = vunpack.c.l.b16 %v475
        %v757 = vunpack.c.l.b16 %v476
        %v758 = vunpack.c.h.b16 %v476
        %v759 = vunpack.c.l.b16 %v477
        %v760 = vunpack.c.l.b16 %v478
        %v761 = vunpack.c.h.b16 %v478
        %v762 = vunpack.c.l.b16 %v479
        %v763 = vunpack.c.l.b16 %v480
        %v764 = vunpack.c.h.b16 %v480
        %v765 = vunpack.c.l.b16 %v481
        %v766 = vunpack.c.l.b16 %v482
        %v767 = vunpack.c.h.b16 %v482
        %v768 = vunpack.c.l.b16 %v483
        %v769 = vunpack.c.l.b16 %v484
        %v770 = vunpack.c.h.b16 %v484
        %v771 = vunpack.c.l.b16 %v485
        %v772 = vunpack.c.l.b16 %v486
        %v773 = vunpack.c.h.b16 %v486
        %v774 = vunpack.c.l.b16 %v487
        %v775 = vunpack.c.l.b16 %v488
        %v776 = vunpack.c.h.b16 %v488
        %v777 = vunpack.c.l.b16 %v489
        %v778 = vpack.c.b16 %v637, %v634
        %v779 = vpack.c.b16 %v638, %v635
        %v780 = vpack.c.b16 %v639, %v636
        %v781 = vpack.c.b16 %v643, %v640
        %v782 = vpack.c.b16 %v644, %v641
        %v783 = vpack.c.b16 %v645, %v642
        %v784 = vpack.c.b16 %v649, %v646
        %v785 = vpack.c.b16 %v650, %v647
        %v786 = vpack.c.b16 %v651, %v648
        %v787 = vpack.c.b16 %v655, %v652
        %v788 = vpack.c.b16 %v656, %v653
        %v789 = vpack.c.b16 %v657, %v654
        %v790 = vpack.c.b16 %v661, %v658
        %v791 = vpack.c.b16 %v662, %v659
        %v792 = vpack.c.b16 %v663, %v660
        %v793 = vpack.c.b16 %v667, %v664
        %v794 = vpack.c.b16 %v668, %v665
        %v795 = vpack.c.b16 %v669, %v666
        %v796 = vpack.c.b16 %v673, %v670
        %v797 = vpack.c.b16 %v674, %v671
        %v798 = vpack.c.b16 %v675, %v672
        %v799 = vpack.c.b16 %v679, %v676
        %v800 = vpack.c.b16 %v680, %v677
        %v801 = vpack.c.b16 %v681, %v678
        %v802 = vpack.c.b16 %v685, %v682
        %v803 = vpack.c.b16 %v686, %v683
        %v804 = vpack.c.b16 %v687, %v684
        %v805 = vpack.c.b16 %v691, %v688
        %v806 = vpack.c.b16 %v692, %v689
        %v807 = vpack.c.b16 %v693, %v690
        %v808 = vpack.c.b16 %v697, %v694
        %v809 = vpack.c.b16 %v698, %v695
        %v810 = vpack.c.b16 %v699, %v696
        %v811 = vpack.c.b16 %v703, %v700
        %v812 = vpack.c.b16 %v704, %v701
        %v813 = vpack.c.b16 %v705, %v702
        %v814 = vpack.c.b16 %v709, %v706
        %v815 = vpack.c.b16 %v710, %v707
        %v816 = vpack.c.b16 %v711, %v708
        %v817 = vpack.c.b16 %v715, %v712
        %v818 = vpack.c.b16 %v716, %v713
        %v819 = vpack.c.b16 %v717, %v714
        %v820 = vpack.c.b16 %v721, %v718
        %v821 = vpack.c.b16 %v722, %v719
        %v822 = vpack.c.b16 %v723, %v720
        %v823 = vpack.c.b16 %v727, %v724
        %v824 = vpack.c.b16 %v728, %v725
        %v825 = vpack.c.b16 %v729, %v726
        %v826 = vpack.c.b16 %v733, %v730
        %v827 = vpack.c.b16 %v734, %v731
        %v828 = vpack.c.b16 %v735, %v732
        %v829 = vpack.c.b16 %v739, %v736
        %v830 = vpack.c.b16 %v740, %v737
        %v831 = vpack.c.b16 %v741, %v738
        %v832 = vpack.c.b16 %v745, %v742
        %v833 = vpack.c.b16 %v746, %v743
        %v834 = vpack.c.b16 %v747, %v744
        %v835 = vpack.c.b16 %v751, %v748
        %v836 = vpack.c.b16 %v752, %v749
        %v837 = vpack.c.b16 %v753, %v750
        %v838 = vpack.c.b16 %v757, %v754
        %v839 = vpack.c.b16 %v758, %v755
        %v840 = vpack.c.b16 %v759, %v756
        %v841 = vpack.c.b16 %v763, %v760
        %v842 = vpack.c.b16 %v764, %v761
        %v843 = vpack.c.b16 %v765, %v762
        %v844 = vpack.c.b16 %v769, %v766
        %v845 = vpack.c.b16 %v770, %v767
        %v846 = vpack.c.b16 %v771, %v768
        %v847 = vpack.c.b16 %v775, %v772
        %v848 = vpack.c.b16 %v776, %v773
        %v849 = vpack.c.b16 %v777, %v774
        %v970 = vunpack.c.l.b16 %v490
        %v971 = vunpack.c.l.b16 %v491
        %v972 = vunpack.c.l.b16 %v492
        %v973 = vunpack.c.l.b16 %v493
        %v974 = vunpack.c.l.b16 %v494
        %v975 = vunpack.c.l.b16 %v495
        %v976 = vunpack.c.l.b16 %v496
        %v977 = vunpack.c.l.b16 %v497
        %v978 = vunpack.c.l.b16 %v498
        %v979 = vunpack.c.l.b16 %v499
        %v980 = vunpack.c.l.b16 %v500
        %v981 = vunpack.c.l.b16 %v501
        %v982 = vunpack.c.l.b16 %v502
        %v983 = vunpack.c.l.b16 %v503
        %v984 = vunpack.c.l.b16 %v504
        %v985 = vunpack.c.l.b16 %v505
        %v986 = vunpack.c.l.b16 %v506
        %v987 = vunpack.c.l.b16 %v507
        %v988 = vunpack.c.l.b16 %v508
        %v989 = vunpack.c.l.b16 %v509
        %v990 = vunpack.c.l.b16 %v510
        %v991 = vunpack.c.l.b16 %v511
        %v992 = vunpack.c.l.b16 %v512
        %v993 = vunpack.c.l.b16 %v513
        %v994 = vunpack.c.l.b16 %v514
        %v995 = vunpack.c.l.b16 %v515
        %v996 = vunpack.c.l.b16 %v516
        %v997 = vunpack.c.l.b16 %v517
        %v998 = vunpack.c.l.b16 %v518
        %v999 = vunpack.c.l.b16 %v519
        %v1000 = vunpack.c.l.b16 %v520
        %v1001 = vunpack.c.l.b16 %v521
        %v1002 = vunpack.c.l.b16 %v522
        %v1003 = vunpack.c.l.b16 %v523
        %v1004 = vunpack.c.l.b16 %v524
        %v1005 = vunpack.c.l.b16 %v525
        %v1006 = vunpack.c.l.b16 %v526
        %v1007 = vunpack.c.l.b16 %v527
        %v1008 = vunpack.c.l.b16 %v528
        %v1009 = vunpack.c.l.b16 %v529
        %v1010 = vunpack.c.l.b16 %v530
        %v1011 = vunpack.c.l.b16 %v531
        %v1012 = vunpack.c.l.b16 %v532
        %v1013 = vunpack.c.l.b16 %v533
        %v1014 = vunpack.c.l.b16 %v534
        %v1015 = vunpack.c.l.b16 %v535
        %v1016 = vunpack.c.l.b16 %v536
        %v1017 = vunpack.c.l.b16 %v537
        %v1018 = vpack.c.b16 %v971, %v970
        %v1019 = vpack.c.b16 %v973, %v972
        %v1020 = vpack.c.b16 %v975, %v974
        %v1021 = vpack.c.b16 %v977, %v976
        %v1022 = vpack.c.b16 %v979, %v978
        %v1023 = vpack.c.b16 %v981, %v980
        %v1024 = vpack.c.b16 %v983, %v982
        %v1025 = vpack.c.b16 %v985, %v984
        %v1026 = vpack.c.b16 %v987, %v986
        %v1027 = vpack.c.b16 %v989, %v988
        %v1028 = vpack.c.b16 %v991, %v990
        %v1029 = vpack.c.b16 %v993, %v992
        %v1030 = vpack.c.b16 %v995, %v994
        %v1031 = vpack.c.b16 %v997, %v996
        %v1032 = vpack.c.b16 %v999, %v998
        %v1033 = vpack.c.b16 %v1001, %v1000
        %v1034 = vpack.c.b16 %v1003, %v1002
        %v1035 = vpack.c.b16 %v1005, %v1004
        %v1036 = vpack.c.b16 %v1007, %v1006
        %v1037 = vpack.c.b16 %v1009, %v1008
        %v1038 = vpack.c.b16 %v1011, %v1010
        %v1039 = vpack.c.b16 %v1013, %v1012
        %v1040 = vpack.c.b16 %v1015, %v1014
        %v1041 = vpack.c.b16 %v1017, %v1016
        %1066 = vmatpush.bf16.msra.mxu0 %v1025
        %1067 = vmatpush.bf16.msra.mxu0 %v1024
        %1068 = vmatpush.bf16.msra.mxu0 %v1023
        %1069 = vmatpush.bf16.msra.mxu0 %v1022
        %1070 = vmatpush.bf16.msra.mxu0 %v1021
        %1071 = vmatpush.bf16.msra.mxu0 %v1020
        %1072 = vmatpush.bf16.msra.mxu0 %v1019
        %1073 = vmatpush.bf16.msra.mxu0 %v1018
        %1074 = vmatmul.bf16.gmra.mxu0 %v778
        %v1075 = vpop.f32.mrf.mxu0
        %v1076 = vadd.f32 0.0, %v1075
        %v1077 = vpop.f32.mrf.mxu0
        %v1078 = vadd.f32 0.0, %v1077
        %1079 = vmatmul.bf16.gmra.mxu0 %v781
        %v1080 = vpop.f32.mrf.mxu0
        %v1081 = vadd.f32 0.0, %v1080
        %v1082 = vpop.f32.mrf.mxu0
        %v1083 = vadd.f32 0.0, %v1082
        %1084 = vmatmul.bf16.gmra.mxu0 %v784
        %v1085 = vpop.f32.mrf.mxu0
        %v1086 = vadd.f32 0.0, %v1085
        %v1087 = vpop.f32.mrf.mxu0
        %v1088 = vadd.f32 0.0, %v1087
        %1089 = vmatmul.bf16.gmra.mxu0 %v787
        %v1090 = vpop.f32.mrf.mxu0
        %v1091 = vadd.f32 0.0, %v1090
        %v1092 = vpop.f32.mrf.mxu0
        %v1093 = vadd.f32 0.0, %v1092
        %1094 = vmatmul.bf16.gmra.mxu0 %v790
        %v1095 = vpop.f32.mrf.mxu0
        %v1096 = vadd.f32 0.0, %v1095
        %v1097 = vpop.f32.mrf.mxu0
        %v1098 = vadd.f32 0.0, %v1097
        %1099 = vmatmul.bf16.gmra.mxu0 %v793
        %v1100 = vpop.f32.mrf.mxu0
        %v1101 = vadd.f32 0.0, %v1100
        %v1102 = vpop.f32.mrf.mxu0
        %v1103 = vadd.f32 0.0, %v1102
        %1104 = vmatmul.bf16.gmra.mxu0 %v796
        %v1105 = vpop.f32.mrf.mxu0
        %v1106 = vadd.f32 0.0, %v1105
        %v1107 = vpop.f32.mrf.mxu0
        %v1108 = vadd.f32 0.0, %v1107
        %1109 = vmatmul.bf16.gmra.mxu0 %v799
        %v1110 = vpop.f32.mrf.mxu0
        %v1111 = vadd.f32 0.0, %v1110
        %v1112 = vpop.f32.mrf.mxu0
        %v1113 = vadd.f32 0.0, %v1112
        %1114 = vmatmul.bf16.gmra.mxu0 %v802
        %v1115 = vpop.f32.mrf.mxu0
        %v1116 = vadd.f32 0.0, %v1115
        %v1117 = vpop.f32.mrf.mxu0
        %v1118 = vadd.f32 0.0, %v1117
        %1119 = vmatmul.bf16.gmra.mxu0 %v805
        %v1120 = vpop.f32.mrf.mxu0
        %v1121 = vadd.f32 0.0, %v1120
        %v1122 = vpop.f32.mrf.mxu0
        %v1123 = vadd.f32 0.0, %v1122
        %1124 = vmatmul.bf16.gmra.mxu0 %v808
        %v1125 = vpop.f32.mrf.mxu0
        %v1126 = vadd.f32 0.0, %v1125
        %v1127 = vpop.f32.mrf.mxu0
        %v1128 = vadd.f32 0.0, %v1127
        %1129 = vmatmul.bf16.gmra.mxu0 %v811
        %v1130 = vpop.f32.mrf.mxu0
        %v1131 = vadd.f32 0.0, %v1130
        %v1132 = vpop.f32.mrf.mxu0
        %v1133 = vadd.f32 0.0, %v1132
        %1134 = vmatmul.bf16.gmra.mxu0 %v814
        %v1135 = vpop.f32.mrf.mxu0
        %v1136 = vadd.f32 0.0, %v1135
        %v1137 = vpop.f32.mrf.mxu0
        %v1138 = vadd.f32 0.0, %v1137
        %1139 = vmatmul.bf16.gmra.mxu0 %v817
        %v1140 = vpop.f32.mrf.mxu0
        %v1141 = vadd.f32 0.0, %v1140
        %v1142 = vpop.f32.mrf.mxu0
        %v1143 = vadd.f32 0.0, %v1142
        %1144 = vmatmul.bf16.gmra.mxu0 %v820
        %v1145 = vpop.f32.mrf.mxu0
        %v1146 = vadd.f32 0.0, %v1145
        %v1147 = vpop.f32.mrf.mxu0
        %v1148 = vadd.f32 0.0, %v1147
        %1149 = vmatmul.bf16.gmra.mxu0 %v823
        %v1150 = vpop.f32.mrf.mxu0
        %v1151 = vadd.f32 0.0, %v1150
        %v1152 = vpop.f32.mrf.mxu0
        %v1153 = vadd.f32 0.0, %v1152
        %1154 = vmatmul.bf16.gmra.mxu0 %v826
        %v1155 = vpop.f32.mrf.mxu0
        %v1156 = vadd.f32 0.0, %v1155
        %v1157 = vpop.f32.mrf.mxu0
        %v1158 = vadd.f32 0.0, %v1157
        %1159 = vmatmul.bf16.gmra.mxu0 %v829
        %v1160 = vpop.f32.mrf.mxu0
        %v1161 = vadd.f32 0.0, %v1160
        %v1162 = vpop.f32.mrf.mxu0
        %v1163 = vadd.f32 0.0, %v1162
        %1164 = vmatmul.bf16.gmra.mxu0 %v832
        %v1165 = vpop.f32.mrf.mxu0
        %v1166 = vadd.f32 0.0, %v1165
        %v1167 = vpop.f32.mrf.mxu0
        %v1168 = vadd.f32 0.0, %v1167
        %1169 = vmatmul.bf16.gmra.mxu0 %v835
        %v1170 = vpop.f32.mrf.mxu0
        %v1171 = vadd.f32 0.0, %v1170
        %v1172 = vpop.f32.mrf.mxu0
        %v1173 = vadd.f32 0.0, %v1172
        %1174 = vmatmul.bf16.gmra.mxu0 %v838
        %v1175 = vpop.f32.mrf.mxu0
        %v1176 = vadd.f32 0.0, %v1175
        %v1177 = vpop.f32.mrf.mxu0
        %v1178 = vadd.f32 0.0, %v1177
        %1179 = vmatmul.bf16.gmra.mxu0 %v841
        %v1180 = vpop.f32.mrf.mxu0
        %v1181 = vadd.f32 0.0, %v1180
        %v1182 = vpop.f32.mrf.mxu0
        %v1183 = vadd.f32 0.0, %v1182
        %1184 = vmatmul.bf16.gmra.mxu0 %v844
        %v1185 = vpop.f32.mrf.mxu0
        %v1186 = vadd.f32 0.0, %v1185
        %v1187 = vpop.f32.mrf.mxu0
        %v1188 = vadd.f32 0.0, %v1187
        %1189 = vmatmul.bf16.gmra.mxu0 %v847
        %v1190 = vpop.f32.mrf.mxu0
        %v1191 = vadd.f32 0.0, %v1190
        %v1192 = vpop.f32.mrf.mxu0
        %v1193 = vadd.f32 0.0, %v1192
        %1194 = vdwg.mxu0
        %1195 = vmatpush.bf16.msra.mxu0 %v1033
        %1196 = vmatpush.bf16.msra.mxu0 %v1032
        %1197 = vmatpush.bf16.msra.mxu0 %v1031
        %1198 = vmatpush.bf16.msra.mxu0 %v1030
        %1199 = vmatpush.bf16.msra.mxu0 %v1029
        %1200 = vmatpush.bf16.msra.mxu0 %v1028
        %1201 = vmatpush.bf16.msra.mxu0 %v1027
        %1202 = vmatpush.bf16.msra.mxu0 %v1026
        %1203 = vmatmul.bf16.gmra.mxu0 %v779
        %v1204 = vpop.f32.mrf.mxu0
        %v1205 = vadd.f32 %v1076, %v1204
        %v1206 = vpop.f32.mrf.mxu0
        %v1207 = vadd.f32 %v1078, %v1206
        %1208 = vmatmul.bf16.gmra.mxu0 %v782
        %v1209 = vpop.f32.mrf.mxu0
        %v1210 = vadd.f32 %v1081, %v1209
        %v1211 = vpop.f32.mrf.mxu0
        %v1212 = vadd.f32 %v1083, %v1211
        %1213 = vmatmul.bf16.gmra.mxu0 %v785
        %v1214 = vpop.f32.mrf.mxu0
        %v1215 = vadd.f32 %v1086, %v1214
        %v1216 = vpop.f32.mrf.mxu0
        %v1217 = vadd.f32 %v1088, %v1216
        %1218 = vmatmul.bf16.gmra.mxu0 %v788
        %v1219 = vpop.f32.mrf.mxu0
        %v1220 = vadd.f32 %v1091, %v1219
        %v1221 = vpop.f32.mrf.mxu0
        %v1222 = vadd.f32 %v1093, %v1221
        %1223 = vmatmul.bf16.gmra.mxu0 %v791
        %v1224 = vpop.f32.mrf.mxu0
        %v1225 = vadd.f32 %v1096, %v1224
        %v1226 = vpop.f32.mrf.mxu0
        %v1227 = vadd.f32 %v1098, %v1226
        %1228 = vmatmul.bf16.gmra.mxu0 %v794
        %v1229 = vpop.f32.mrf.mxu0
        %v1230 = vadd.f32 %v1101, %v1229
        %v1231 = vpop.f32.mrf.mxu0
        %v1232 = vadd.f32 %v1103, %v1231
        %1233 = vmatmul.bf16.gmra.mxu0 %v797
        %v1234 = vpop.f32.mrf.mxu0
        %v1235 = vadd.f32 %v1106, %v1234
        %v1236 = vpop.f32.mrf.mxu0
        %v1237 = vadd.f32 %v1108, %v1236
        %1238 = vmatmul.bf16.gmra.mxu0 %v800
        %v1239 = vpop.f32.mrf.mxu0
        %v1240 = vadd.f32 %v1111, %v1239
        %v1241 = vpop.f32.mrf.mxu0
        %v1242 = vadd.f32 %v1113, %v1241
        %1243 = vmatmul.bf16.gmra.mxu0 %v803
        %v1244 = vpop.f32.mrf.mxu0
        %v1245 = vadd.f32 %v1116, %v1244
        %v1246 = vpop.f32.mrf.mxu0
        %v1247 = vadd.f32 %v1118, %v1246
        %1248 = vmatmul.bf16.gmra.mxu0 %v806
        %v1249 = vpop.f32.mrf.mxu0
        %v1250 = vadd.f32 %v1121, %v1249
        %v1251 = vpop.f32.mrf.mxu0
        %v1252 = vadd.f32 %v1123, %v1251
        %1253 = vmatmul.bf16.gmra.mxu0 %v809
        %v1254 = vpop.f32.mrf.mxu0
        %v1255 = vadd.f32 %v1126, %v1254
        %v1256 = vpop.f32.mrf.mxu0
        %v1257 = vadd.f32 %v1128, %v1256
        %1258 = vmatmul.bf16.gmra.mxu0 %v812
        %v1259 = vpop.f32.mrf.mxu0
        %v1260 = vadd.f32 %v1131, %v1259
        %v1261 = vpop.f32.mrf.mxu0
        %v1262 = vadd.f32 %v1133, %v1261
        %1263 = vmatmul.bf16.gmra.mxu0 %v815
        %v1264 = vpop.f32.mrf.mxu0
        %v1265 = vadd.f32 %v1136, %v1264
        %v1266 = vpop.f32.mrf.mxu0
        %v1267 = vadd.f32 %v1138, %v1266
        %1268 = vmatmul.bf16.gmra.mxu0 %v818
        %v1269 = vpop.f32.mrf.mxu0
        %v1270 = vadd.f32 %v1141, %v1269
        %v1271 = vpop.f32.mrf.mxu0
        %v1272 = vadd.f32 %v1143, %v1271
        %1273 = vmatmul.bf16.gmra.mxu0 %v821
        %v1274 = vpop.f32.mrf.mxu0
        %v1275 = vadd.f32 %v1146, %v1274
        %v1276 = vpop.f32.mrf.mxu0
        %v1277 = vadd.f32 %v1148, %v1276
        %1278 = vmatmul.bf16.gmra.mxu0 %v824
        %v1279 = vpop.f32.mrf.mxu0
        %v1280 = vadd.f32 %v1151, %v1279
        %v1281 = vpop.f32.mrf.mxu0
        %v1282 = vadd.f32 %v1153, %v1281
        %1283 = vmatmul.bf16.gmra.mxu0 %v827
        %v1284 = vpop.f32.mrf.mxu0
        %v1285 = vadd.f32 %v1156, %v1284
        %v1286 = vpop.f32.mrf.mxu0
        %v1287 = vadd.f32 %v1158, %v1286
        %1288 = vmatmul.bf16.gmra.mxu0 %v830
        %v1289 = vpop.f32.mrf.mxu0
        %v1290 = vadd.f32 %v1161, %v1289
        %v1291 = vpop.f32.mrf.mxu0
        %v1292 = vadd.f32 %v1163, %v1291
        %1293 = vmatmul.bf16.gmra.mxu0 %v833
        %v1294 = vpop.f32.mrf.mxu0
        %v1295 = vadd.f32 %v1166, %v1294
        %v1296 = vpop.f32.mrf.mxu0
        %v1297 = vadd.f32 %v1168, %v1296
        %1298 = vmatmul.bf16.gmra.mxu0 %v836
        %v1299 = vpop.f32.mrf.mxu0
        %v1300 = vadd.f32 %v1171, %v1299
        %v1301 = vpop.f32.mrf.mxu0
        %v1302 = vadd.f32 %v1173, %v1301
        %1303 = vmatmul.bf16.gmra.mxu0 %v839
        %v1304 = vpop.f32.mrf.mxu0
        %v1305 = vadd.f32 %v1176, %v1304
        %v1306 = vpop.f32.mrf.mxu0
        %v1307 = vadd.f32 %v1178, %v1306
        %1308 = vmatmul.bf16.gmra.mxu0 %v842
        %v1309 = vpop.f32.mrf.mxu0
        %v1310 = vadd.f32 %v1181, %v1309
        %v1311 = vpop.f32.mrf.mxu0
        %v1312 = vadd.f32 %v1183, %v1311
        %1313 = vmatmul.bf16.gmra.mxu0 %v845
        %v1314 = vpop.f32.mrf.mxu0
        %v1315 = vadd.f32 %v1186, %v1314
        %v1316 = vpop.f32.mrf.mxu0
        %v1317 = vadd.f32 %v1188, %v1316
        %1318 = vmatmul.bf16.gmra.mxu0 %v848
        %v1319 = vpop.f32.mrf.mxu0
        %v1320 = vadd.f32 %v1191, %v1319
        %v1321 = vpop.f32.mrf.mxu0
        %v1322 = vadd.f32 %v1193, %v1321
        %1323 = vdwg.mxu0
        %1324 = vmatpush.bf16.msra.mxu0 %v1041
        %1325 = vmatpush.bf16.msra.mxu0 %v1040
        %1326 = vmatpush.bf16.msra.mxu0 %v1039
        %1327 = vmatpush.bf16.msra.mxu0 %v1038
        %1328 = vmatpush.bf16.msra.mxu0 %v1037
        %1329 = vmatpush.bf16.msra.mxu0 %v1036
        %1330 = vmatpush.bf16.msra.mxu0 %v1035
        %1331 = vmatpush.bf16.msra.mxu0 %v1034
        %1332 = vmatmul.bf16.gmra.mxu0 %v780
        %v1333 = vpop.f32.mrf.mxu0
        %v1334 = vadd.f32 %v1205, %v1333
        %v1335 = vpop.f32.mrf.mxu0
        %v1336 = vadd.f32 %v1207, %v1335
        %1337 = vmatmul.bf16.gmra.mxu0 %v783
        %v1338 = vpop.f32.mrf.mxu0
        %v1339 = vadd.f32 %v1210, %v1338
        %v1340 = vpop.f32.mrf.mxu0
        %v1341 = vadd.f32 %v1212, %v1340
        %1342 = vmatmul.bf16.gmra.mxu0 %v786
        %v1343 = vpop.f32.mrf.mxu0
        %v1344 = vadd.f32 %v1215, %v1343
        %v1345 = vpop.f32.mrf.mxu0
        %v1346 = vadd.f32 %v1217, %v1345
        %1347 = vmatmul.bf16.gmra.mxu0 %v789
        %v1348 = vpop.f32.mrf.mxu0
        %v1349 = vadd.f32 %v1220, %v1348
        %v1350 = vpop.f32.mrf.mxu0
        %v1351 = vadd.f32 %v1222, %v1350
        %1352 = vmatmul.bf16.gmra.mxu0 %v792
        %v1353 = vpop.f32.mrf.mxu0
        %v1354 = vadd.f32 %v1225, %v1353
        %v1355 = vpop.f32.mrf.mxu0
        %v1356 = vadd.f32 %v1227, %v1355
        %1357 = vmatmul.bf16.gmra.mxu0 %v795
        %v1358 = vpop.f32.mrf.mxu0
        %v1359 = vadd.f32 %v1230, %v1358
        %v1360 = vpop.f32.mrf.mxu0
        %v1361 = vadd.f32 %v1232, %v1360
        %1362 = vmatmul.bf16.gmra.mxu0 %v798
        %v1363 = vpop.f32.mrf.mxu0
        %v1364 = vadd.f32 %v1235, %v1363
        %v1365 = vpop.f32.mrf.mxu0
        %v1366 = vadd.f32 %v1237, %v1365
        %1367 = vmatmul.bf16.gmra.mxu0 %v801
        %v1368 = vpop.f32.mrf.mxu0
        %v1369 = vadd.f32 %v1240, %v1368
        %v1370 = vpop.f32.mrf.mxu0
        %v1371 = vadd.f32 %v1242, %v1370
        %1372 = vmatmul.bf16.gmra.mxu0 %v804
        %v1373 = vpop.f32.mrf.mxu0
        %v1374 = vadd.f32 %v1245, %v1373
        %v1375 = vpop.f32.mrf.mxu0
        %v1376 = vadd.f32 %v1247, %v1375
        %1377 = vmatmul.bf16.gmra.mxu0 %v807
        %v1378 = vpop.f32.mrf.mxu0
        %v1379 = vadd.f32 %v1250, %v1378
        %v1380 = vpop.f32.mrf.mxu0
        %v1381 = vadd.f32 %v1252, %v1380
        %1382 = vmatmul.bf16.gmra.mxu0 %v810
        %v1383 = vpop.f32.mrf.mxu0
        %v1384 = vadd.f32 %v1255, %v1383
        %v1385 = vpop.f32.mrf.mxu0
        %v1386 = vadd.f32 %v1257, %v1385
        %1387 = vmatmul.bf16.gmra.mxu0 %v813
        %v1388 = vpop.f32.mrf.mxu0
        %v1389 = vadd.f32 %v1260, %v1388
        %v1390 = vpop.f32.mrf.mxu0
        %v1391 = vadd.f32 %v1262, %v1390
        %1392 = vmatmul.bf16.gmra.mxu0 %v816
        %v1393 = vpop.f32.mrf.mxu0
        %v1394 = vadd.f32 %v1265, %v1393
        %v1395 = vpop.f32.mrf.mxu0
        %v1396 = vadd.f32 %v1267, %v1395
        %1397 = vmatmul.bf16.gmra.mxu0 %v819
        %v1398 = vpop.f32.mrf.mxu0
        %v1399 = vadd.f32 %v1270, %v1398
        %v1400 = vpop.f32.mrf.mxu0
        %v1401 = vadd.f32 %v1272, %v1400
        %1402 = vmatmul.bf16.gmra.mxu0 %v822
        %v1403 = vpop.f32.mrf.mxu0
        %v1404 = vadd.f32 %v1275, %v1403
        %v1405 = vpop.f32.mrf.mxu0
        %v1406 = vadd.f32 %v1277, %v1405
        %1407 = vmatmul.bf16.gmra.mxu0 %v825
        %v1408 = vpop.f32.mrf.mxu0
        %v1409 = vadd.f32 %v1280, %v1408
        %v1410 = vpop.f32.mrf.mxu0
        %v1411 = vadd.f32 %v1282, %v1410
        %1412 = vmatmul.bf16.gmra.mxu0 %v828
        %v1413 = vpop.f32.mrf.mxu0
        %v1414 = vadd.f32 %v1285, %v1413
        %v1415 = vpop.f32.mrf.mxu0
        %v1416 = vadd.f32 %v1287, %v1415
        %1417 = vmatmul.bf16.gmra.mxu0 %v831
        %v1418 = vpop.f32.mrf.mxu0
        %v1419 = vadd.f32 %v1290, %v1418
        %v1420 = vpop.f32.mrf.mxu0
        %v1421 = vadd.f32 %v1292, %v1420
        %1422 = vmatmul.bf16.gmra.mxu0 %v834
        %v1423 = vpop.f32.mrf.mxu0
        %v1424 = vadd.f32 %v1295, %v1423
        %v1425 = vpop.f32.mrf.mxu0
        %v1426 = vadd.f32 %v1297, %v1425
        %1427 = vmatmul.bf16.gmra.mxu0 %v837
        %v1428 = vpop.f32.mrf.mxu0
        %v1429 = vadd.f32 %v1300, %v1428
        %v1430 = vpop.f32.mrf.mxu0
        %v1431 = vadd.f32 %v1302, %v1430
        %1432 = vmatmul.bf16.gmra.mxu0 %v840
        %v1433 = vpop.f32.mrf.mxu0
        %v1434 = vadd.f32 %v1305, %v1433
        %v1435 = vpop.f32.mrf.mxu0
        %v1436 = vadd.f32 %v1307, %v1435
        %1437 = vmatmul.bf16.gmra.mxu0 %v843
        %v1438 = vpop.f32.mrf.mxu0
        %v1439 = vadd.f32 %v1310, %v1438
        %v1440 = vpop.f32.mrf.mxu0
        %v1441 = vadd.f32 %v1312, %v1440
        %1442 = vmatmul.bf16.gmra.mxu0 %v846
        %v1443 = vpop.f32.mrf.mxu0
        %v1444 = vadd.f32 %v1315, %v1443
        %v1445 = vpop.f32.mrf.mxu0
        %v1446 = vadd.f32 %v1317, %v1445
        %1447 = vmatmul.bf16.gmra.mxu0 %v849
        %v1448 = vpop.f32.mrf.mxu0
        %v1449 = vadd.f32 %v1320, %v1448
        %v1450 = vpop.f32.mrf.mxu0
        %v1451 = vadd.f32 %v1322, %v1450
        %1452 = vdwg.mxu0
        %v1453 = vmax.f32 %v1334, %v1364
        %v1454 = vmax.f32 %v1336, %v1366
        %v1455 = vmax.f32 %v1339, %v1369
        %v1456 = vmax.f32 %v1341, %v1371
        %v1457 = vmax.f32 %v1344, %v1374
        %v1458 = vmax.f32 %v1346, %v1376
        %v1459 = vmax.f32 %v1349, %v1379
        %v1460 = vmax.f32 %v1351, %v1381
        %v1461 = vmax.f32 %v1354, %v1384
        %v1462 = vmax.f32 %v1356, %v1386
        %v1463 = vmax.f32 %v1359, %v1389
        %v1464 = vmax.f32 %v1361, %v1391
        %v1465 = vmax.f32 %v1394, %v1424
        %v1466 = vmax.f32 %v1396, %v1426
        %v1467 = vmax.f32 %v1399, %v1429
        %v1468 = vmax.f32 %v1401, %v1431
        %v1469 = vmax.f32 %v1404, %v1434
        %v1470 = vmax.f32 %v1406, %v1436
        %v1471 = vmax.f32 %v1409, %v1439
        %v1472 = vmax.f32 %v1411, %v1441
        %v1473 = vmax.f32 %v1414, %v1444
        %v1474 = vmax.f32 %v1416, %v1446
        %v1475 = vmax.f32 %v1419, %v1449
        %v1476 = vmax.f32 %v1421, %v1451
        %v1477 = vmax.f32 %v1453, %v1465
        %v1478 = vmax.f32 %v1454, %v1466
        %v1479 = vmax.f32 %v1455, %v1467
        %v1480 = vmax.f32 %v1456, %v1468
        %v1481 = vmax.f32 %v1457, %v1469
        %v1482 = vmax.f32 %v1458, %v1470
        %v1483 = vmax.f32 %v1459, %v1471
        %v1484 = vmax.f32 %v1460, %v1472
        %v1485 = vmax.f32 %v1461, %v1473
        %v1486 = vmax.f32 %v1462, %v1474
        %v1487 = vmax.f32 %v1463, %v1475
        %v1488 = vmax.f32 %v1464, %v1476
        %v1489 = vld [vmem:[%s2] sm:$0x1]
        %v1491 = vperm.slane %v1489, 0
        %v1493 = vadd.f32 %v1477, %v1491
        %v1494 = vadd.f32 %v1478, %v1491
        %v1495 = vadd.f32 %v1479, %v1491
        %v1496 = vadd.f32 %v1480, %v1491
        %v1497 = vadd.f32 %v1481, %v1491
        %v1498 = vadd.f32 %v1482, %v1491
        %v1499 = vadd.f32 %v1483, %v1491
        %v1500 = vadd.f32 %v1484, %v1491
        %v1501 = vadd.f32 %v1485, %v1491
        %v1502 = vadd.f32 %v1486, %v1491
        %v1503 = vadd.f32 %v1487, %v1491
        %v1504 = vadd.f32 %v1488, %v1491
        %v1505 = vmax.f32 %v1493, 0.0
        %v1506 = vmax.f32 %v1494, 0.0
        %v1507 = vmax.f32 %v1495, 0.0
        %v1508 = vmax.f32 %v1496, 0.0
        %v1509 = vmax.f32 %v1497, 0.0
        %v1510 = vmax.f32 %v1498, 0.0
        %v1511 = vmax.f32 %v1499, 0.0
        %v1512 = vmax.f32 %v1500, 0.0
        %v1513 = vmax.f32 %v1501, 0.0
        %v1514 = vmax.f32 %v1502, 0.0
        %v1515 = vmax.f32 %v1503, 0.0
        %v1516 = vmax.f32 %v1504, 0.0
        %v1517 = vpack.c.bf16 %v1505, %v1505
        %v1518 = vpack.c.bf16 %v1506, %v1506
        %v1519 = vpack.c.bf16 %v1507, %v1507
        %v1520 = vpack.c.bf16 %v1508, %v1508
        %v1521 = vpack.c.bf16 %v1509, %v1509
        %v1522 = vpack.c.bf16 %v1510, %v1510
        %v1523 = vpack.c.bf16 %v1511, %v1511
        %v1524 = vpack.c.bf16 %v1512, %v1512
        %v1525 = vpack.c.bf16 %v1513, %v1513
        %v1526 = vpack.c.bf16 %v1514, %v1514
        %v1527 = vpack.c.bf16 %v1515, %v1515
        %v1528 = vpack.c.bf16 %v1516, %v1516
        %1529 = vst [vmem:[%s392] sm:$0xf] %v1517
        %1530 = vst [vmem:[%s392 + $0x4] sm:$0xf] %v1518
        %1531 = vst [vmem:[%s392 + $0x8] sm:$0xf] %v1519
        %1532 = vst [vmem:[%s392 + $0xc] sm:$0xf] %v1520
        %1533 = vst [vmem:[%s392 + $0x10] sm:$0xf] %v1521
        %1534 = vst [vmem:[%s392 + $0x14] sm:$0xf] %v1522
        %1535 = vst [vmem:[%s392 + $0x18] sm:$0xf] %v1523
        %1536 = vst [vmem:[%s392 + $0x1c] sm:$0xf] %v1524
        %1537 = vst [vmem:[%s392 + $0x20] sm:$0xf] %v1525
        %1538 = vst [vmem:[%s392 + $0x24] sm:$0xf] %v1526
        %1539 = vst [vmem:[%s392 + $0x28] sm:$0xf] %v1527
        %1540 = vst [vmem:[%s392 + $0x2c] sm:$0xf] %v1528
        %s1541 = smul.u32 12, %s14
        %p1542 = scmp.lt.s32.totalorder %s1541, 23
        %s1543 = scalar_select %p1542, %s1541, 23
        %s1544 = smul.addr %s1543, 4
        %s1545 = scalar_lea.vmem %s3, %s1544
        // Predicated region
        $region59: #{triplet_forward.5} parent=53 // pred_check
          %p1546 = pneg %p100
        $region60: #{triplet_forward.5} parent=53 // pred_check_branch
          %1548 = sbr.rel (%p1546) target = $region62
        $region61: #{triplet_forward.5} parent=53 // pred_region
          %s1549 = smul.u32 12, %s14
        $region62: #{triplet_forward.5} parent=53 // pred_fallthru
          _
      $region54: #{triplet_forward.5} parent=5 // pred_fallthru
        _
      %p1550 = scmp.le.s32.totalorder 2, %s9
      // Predicated region
      $region63: #{triplet_forward.5} parent=5 // pred_check
        %p1551 = pneg %p1550
      $region64: #{triplet_forward.5} parent=5 // pred_check_branch
        %1553 = sbr.rel (%p1551) target = $region66
      $region65: #{triplet_forward.5} parent=5 // pred_region
        %s1554 = ssub.s32 %s9, 2
        // Predicated region
        $region67: #{triplet_forward.5} parent=65 // pred_check
          %p1555 = pneg %p106
        $region68: #{triplet_forward.5} parent=65 // pred_check_branch
          %1557 = sbr.rel (%p1555) target = $region70
        $region69: #{triplet_forward.5} parent=65 // pred_region
          %s1558 = smul.u32 12, %s15
          %p1559 = scmp.lt.s32.totalorder %s1558, 23
          %s1560 = scalar_select %p1559, %s1558, 23
          %s1561 = smul.addr %s1560, 4
          %s1562 = scalar_lea.vmem %s3, %s1561
        $region70: #{triplet_forward.5} parent=65 // pred_fallthru
          _
      $region66: #{triplet_forward.5} parent=5 // pred_fallthru
        _
    $region6: #{triplet_forward.5} parent=1 // loop_footer
      %s13 = sadd.s32 1, %s9
    $region7: #{triplet_forward.5} parent=1 // loop_footer_branch
      %8 = sbr.rel target = $region3
    $region8: #{triplet_forward.5} parent=1 // loop_exit
      _

// kernel: triplet_forward.6
$region0: #{triplet_forward.6}
  #allocation0 [shape = 'u32[]', space=smem, size = 0x4, offset = 0x4, fixed_abs, tag = 'smem constant byte address 0x4 - core index']
  #allocation1 [shape = 'u32[72,128]{1,0:T(1,128)}', space=vmem, size = 0x9000, scoped, tag = 'internal scratch']
  %s0 = inlined_call_operand.vmem [shape: bf16[4,64,256], index: 0, kind: input, shape index: {}]
  %s1 = inlined_call_operand.vmem [shape: bf16[256,128], index: 1, kind: input, shape index: {}]
  %s2 = inlined_call_operand.vmem [shape: f32[1,128], index: 2, kind: input, shape index: {}]
  %s3 = inlined_call_operand.vmem [shape: bf16[64,128], index: 3, kind: output, shape index: {}]
  %s4 = sld [smem:[#allocation0]]
  $region83: #{triplet_forward.6} parent=0
    _
  %s6 = ssub.s32 1, %s4
  %s7 = scalar_select 0, %s6, %s4
  $region1: #{triplet_forward.6} parent=0
    #allocation2 [shape = 'u8[131072]{0}', space=vmem, size = 0x20000, scoped, tag = 'input window, operand 0']
    loop: start=0, step=1, limit=4
    $region2: #{triplet_forward.6} parent=1 // loop_pre_header
      _
    $region3: #{triplet_forward.6} parent=1 // loop_header
      %s9 = sphi 0, %s13
      %p10 = scmp.ge.s32.totalorder %s9, 4
      %s19 = sphi 0, %s21
      %s22 = sphi 0, %s19
      %s23 = sphi 0, %s22
      %s39 = sphi 0, %s23
      %s43 = sphi 0, %s43
      %s45 = sphi 0, %s43
      %s46 = sphi 0, %s45
      %s60 = sphi 0, %s46
      %s64 = sphi 0, %s64
      %s66 = sphi 0, %s64
      %s67 = sphi 0, %s66
      %s81 = sphi 0, %s67
      %s87 = sphi 0, %s89
      %s90 = sphi 0, %s87
      %s91 = sphi 0, %s90
      %s107 = sphi 0, %s91
    $region4: #{triplet_forward.6} parent=1 // loop_header_branch
      %12 = sbr.rel (%p10) target = $region8
    $region5: #{triplet_forward.6} parent=1 // loop_body
      %s14 = ssub.s32 %s9, 1
      %s15 = ssub.s32 %s9, 2
      %s16 = sadd.s32 %s9, 1
      %s17 = ssub.s32 %s9, %s16
      %p18 = scmp.eq.s32.totalorder %s17, 0
      %s20 = sadd.s32 %s19, 1
      %s21 = scalar_select %p18, %s19, %s20
      %p24 = pneg %p18
      %p25 = scmp.eq.s32.totalorder %s9, 1
      %p26 = por %p24, %p25
      %p27 = scmp.ne.s32.totalorder %s19, %s22
      %p28 = scmp.eq.s32.totalorder %s9, 0
      %p29 = por %p27, %p28
      %p30 = scmp.ne.s32.totalorder %s19, %s22
      %p31 = scmp.eq.s32.totalorder %s14, 1
      %p32 = por %p30, %p31
      %p33 = scmp.ne.s32.totalorder %s22, %s23
      %p34 = scmp.eq.s32.totalorder %s14, 0
      %p35 = por %p33, %p34
      %p36 = scmp.ne.s32.totalorder %s22, %s23
      %p37 = scmp.eq.s32.totalorder %s15, 1
      %p38 = por %p36, %p37
      %p40 = scmp.ne.s32.totalorder %s23, %s39
      %p41 = scmp.eq.s32.totalorder %s15, 0
      %p42 = por %p40, %p41
      %s44 = sadd.s32 %s43, 1
      %p47 = scmp.eq.s32.totalorder %s9, 1
      %p48 = scmp.ne.s32.totalorder %s43, %s45
      %p49 = scmp.eq.s32.totalorder %s9, 0
      %p50 = por %p48, %p49
      %p51 = scmp.ne.s32.totalorder %s43, %s45
      %p52 = scmp.eq.s32.totalorder %s14, 1
      %p53 = por %p51, %p52
      %p54 = scmp.ne.s32.totalorder %s45, %s46
      %p55 = scmp.eq.s32.totalorder %s14, 0
      %p56 = por %p54, %p55
      %p57 = scmp.ne.s32.totalorder %s45, %s46
      %p58 = scmp.eq.s32.totalorder %s15, 1
      %p59 = por %p57, %p58
      %p61 = scmp.ne.s32.totalorder %s46, %s60
      %p62 = scmp.eq.s32.totalorder %s15, 0
      %p63 = por %p61, %p62
      %s65 = sadd.s32 %s64, 1
      %p68 = scmp.eq.s32.totalorder %s9, 1
      %p69 = scmp.ne.s32.totalorder %s64, %s66
      %p70 = scmp.eq.s32.totalorder %s9, 0
      %p71 = por %p69, %p70
      %p72 = scmp.ne.s32.totalorder %s64, %s66
      %p73 = scmp.eq.s32.totalorder %s14, 1
      %p74 = por %p72, %p73
      %p75 = scmp.ne.s32.totalorder %s66, %s67
      %p76 = scmp.eq.s32.totalorder %s14, 0
      %p77 = por %p75, %p76
      %p78 = scmp.ne.s32.totalorder %s66, %s67
      %p79 = scmp.eq.s32.totalorder %s15, 1
      %p80 = por %p78, %p79
      %p82 = scmp.ne.s32.totalorder %s67, %s81
      %p83 = scmp.eq.s32.totalorder %s15, 0
      %p84 = por %p82, %p83
      %s85 = ssub.s32 %s9, %s16
      %p86 = scmp.eq.s32.totalorder %s85, 0
      %s88 = sadd.s32 %s87, 1
      %s89 = scalar_select %p86, %s87, %s88
      %p92 = pneg %p86
      %p93 = scmp.eq.s32.totalorder %s9, 1
      %p94 = por %p92, %p93
      %p95 = scmp.ne.s32.totalorder %s87, %s90
      %p96 = scmp.eq.s32.totalorder %s9, 0
      %p97 = por %p95, %p96
      %p98 = scmp.ne.s32.totalorder %s87, %s90
      %p99 = scmp.eq.s32.totalorder %s14, 1
      %p100 = por %p98, %p99
      %p101 = scmp.ne.s32.totalorder %s90, %s91
      %p102 = scmp.eq.s32.totalorder %s14, 0
      %p103 = por %p101, %p102
      %p104 = scmp.ne.s32.totalorder %s90, %s91
      %p105 = scmp.eq.s32.totalorder %s15, 1
      %p106 = por %p104, %p105
      %p108 = scmp.ne.s32.totalorder %s91, %s107
      %p109 = scmp.eq.s32.totalorder %s15, 0
      %p110 = por %p108, %p109
      %p111 = scmp.le.s32.totalorder 1, %s9
      %p112 = scmp.lt.s32.totalorder %s9, 3
      %p113 = pnand %p111, %p112
      %p114 = pneg %p113
      // Predicated region
      $region9: #{triplet_forward.6} parent=5 // pred_check
        _
      $region10: #{triplet_forward.6} parent=5 // pred_check_branch
        %116 = sbr.rel (%p113) target = $region12
      $region11: #{triplet_forward.6} parent=5 // pred_region
        %s117 = ssub.s32 %s9, 1
        // Predicated region
        $region13: #{triplet_forward.6} parent=11 // pred_check
          %p118 = pneg %p56
        $region14: #{triplet_forward.6} parent=11 // pred_check_branch
          %120 = sbr.rel (%p118) target = $region16
        $region15: #{triplet_forward.6} parent=11 // pred_region
          _
        $region16: #{triplet_forward.6} parent=11 // pred_fallthru
          _
        // Predicated region
        $region17: #{triplet_forward.6} parent=11 // pred_check
          %p121 = pneg %p77
        $region18: #{triplet_forward.6} parent=11 // pred_check_branch
          %123 = sbr.rel (%p121) target = $region20
        $region19: #{triplet_forward.6} parent=11 // pred_region
          _
        $region20: #{triplet_forward.6} parent=11 // pred_fallthru
          _
      $region12: #{triplet_forward.6} parent=5 // pred_fallthru
        _
      %p124 = scmp.lt.s32.totalorder %s9, 2
      // Predicated region
      $region21: #{triplet_forward.6} parent=5 // pred_check
        %p125 = pneg %p124
      $region22: #{triplet_forward.6} parent=5 // pred_check_branch
        %127 = sbr.rel (%p125) target = $region24
      $region23: #{triplet_forward.6} parent=5 // pred_region
        // Predicated region
        $region25: #{triplet_forward.6} parent=23 // pred_check
          %p128 = pneg %p29
        $region26: #{triplet_forward.6} parent=23 // pred_check_branch
          %130 = sbr.rel (%p128) target = $region28
        $region27: #{triplet_forward.6} parent=23 // pred_region
          %s131 = sand.u32 %s19, 1
          %s132 = sand.u32 %s19, 1
          %s133 = smul.addr %s132, 128
          %s134 = scalar_lea.vmem [#allocation2], %s133
          %s135 = smul.u32 4, %s9
          %s136 = smul.addr %s135, 2
          %s137 = smul.addr %s136, 4
          %s138 = scalar_lea.vmem %s0, %s137
          // Predicated region
          $region29: #{triplet_forward.6} parent=27 // pred_check
            _
          $region30: #{triplet_forward.6} parent=27 // pred_check_branch
            %140 = sbr.rel (0) target = $region32
          $region31: #{triplet_forward.6} parent=27 // pred_region
            // Predicated region
            $region33: #{triplet_forward.6} parent=31 // pred_check
              _
            $region34: #{triplet_forward.6} parent=31 // pred_check_branch
              %142 = sbr.rel (0) target = $region36
            $region35: #{triplet_forward.6} parent=31 // pred_region
              // Predicated region
              $region48: #{triplet_forward.6} parent=35 // pred_check
                _
              $region49: #{triplet_forward.6} parent=35 // pred_check_branch
                %188 = sbr.rel (0) target = $region51
              $region50: #{triplet_forward.6} parent=35 // pred_region
                loop: start=0, step=1, limit=1
                $region52: #{triplet_forward.6} parent=50 // loop_pre_header
                  _
                $region53: #{triplet_forward.6} parent=50 // loop_header
                  %s190 = sphi 0, %s194
                  %p191 = scmp.ge.s32.totalorder %s190, 1
                  %s195 = sphi %s138, %s138
                  %s196 = sphi %s134, %s134
                $region54: #{triplet_forward.6} parent=50 // loop_header_branch
                  %193 = sbr.rel (%p191) target = $region58
                $region55: #{triplet_forward.6} parent=50 // loop_body
                  %v197 = vld [vmem:[%s195] sm:$0xff]
                  %198 = vst [vmem:[%s196] sm:$0xff] %v197
                  %v199 = vld [vmem:[%s195 + $0x8] sm:$0xff]
                  %200 = vst [vmem:[%s196 + $0x8] sm:$0xff] %v199
                  %v201 = vld [vmem:[%s195 + $0x10] sm:$0xff]
                  %202 = vst [vmem:[%s196 + $0x10] sm:$0xff] %v201
                  %v203 = vld [vmem:[%s195 + $0x18] sm:$0xff]
                  %204 = vst [vmem:[%s196 + $0x18] sm:$0xff] %v203
                  %v205 = vld [vmem:[%s195 + $0x40] sm:$0xff]
                  %206 = vst [vmem:[%s196 + $0x20] sm:$0xff] %v205
                  %v207 = vld [vmem:[%s195 + $0x48] sm:$0xff]
                  %208 = vst [vmem:[%s196 + $0x28] sm:$0xff] %v207
                  %v209 = vld [vmem:[%s195 + $0x50] sm:$0xff]
                  %210 = vst [vmem:[%s196 + $0x30] sm:$0xff] %v209
                  %v211 = vld [vmem:[%s195 + $0x58] sm:$0xff]
                  %212 = vst [vmem:[%s196 + $0x38] sm:$0xff] %v211
                  %v213 = vld [vmem:[%s195 + $0x80] sm:$0xff]
                  %214 = vst [vmem:[%s196 + $0x40] sm:$0xff] %v213
                  %v215 = vld [vmem:[%s195 + $0x88] sm:$0xff]
                  %216 = vst [vmem:[%s196 + $0x48] sm:$0xff] %v215
                  %v217 = vld [vmem:[%s195 + $0x90] sm:$0xff]
                  %218 = vst [vmem:[%s196 + $0x50] sm:$0xff] %v217
                  %v219 = vld [vmem:[%s195 + $0x98] sm:$0xff]
                  %220 = vst [vmem:[%s196 + $0x58] sm:$0xff] %v219
                  %v221 = vld [vmem:[%s195 + $0xc0] sm:$0xff]
                  %222 = vst [vmem:[%s196 + $0x60] sm:$0xff] %v221
                  %v223 = vld [vmem:[%s195 + $0xc8] sm:$0xff]
                  %224 = vst [vmem:[%s196 + $0x68] sm:$0xff] %v223
                  %v225 = vld [vmem:[%s195 + $0xd0] sm:$0xff]
                  %226 = vst [vmem:[%s196 + $0x70] sm:$0xff] %v225
                  %v227 = vld [vmem:[%s195 + $0xd8] sm:$0xff]
                  %228 = vst [vmem:[%s196 + $0x78] sm:$0xff] %v227
                $region56: #{triplet_forward.6} parent=50 // loop_footer
                  %s194 = sadd.s32 1, %s190
                $region57: #{triplet_forward.6} parent=50 // loop_footer_branch
                  %189 = sbr.rel target = $region53
                $region58: #{triplet_forward.6} parent=50 // loop_exit
                  _
              $region51: #{triplet_forward.6} parent=35 // pred_fallthru
                _
              // Predicated region
              $region59: #{triplet_forward.6} parent=35 // pred_check
                _
              $region60: #{triplet_forward.6} parent=35 // pred_check_branch
                %230 = sbr.rel target = $region62
              $region61: #{triplet_forward.6} parent=35 // pred_region
                _
              $region62: #{triplet_forward.6} parent=35 // pred_fallthru
                _
            $region36: #{triplet_forward.6} parent=31 // pred_fallthru
              _
            // Predicated region
            $region37: #{triplet_forward.6} parent=31 // pred_check
              _
            $region38: #{triplet_forward.6} parent=31 // pred_check_branch
              %144 = sbr.rel target = $region40
            $region39: #{triplet_forward.6} parent=31 // pred_region
              %s146 = ssub.s32 256, 1
              loop: start=0, step=1, limit=1
              $region41: #{triplet_forward.6} parent=39 // loop_pre_header
                _
              $region42: #{triplet_forward.6} parent=39 // loop_header
                %s148 = sphi 0, %s152
                %p149 = scmp.ge.s32.totalorder %s148, 1
                %s153 = sphi %s138, %s138
                %s154 = sphi %s134, %s134
              $region43: #{triplet_forward.6} parent=39 // loop_header_branch
                %151 = sbr.rel (%p149) target = $region47
              $region44: #{triplet_forward.6} parent=39 // loop_body
                %v155 = vld [vmem:[%s153] sm:%s146]
                %156 = vst [vmem:[%s154] sm:%s146] %v155
                %v157 = vld [vmem:[%s153 + $0x8] sm:%s146]
                %158 = vst [vmem:[%s154 + $0x8] sm:%s146] %v157
                %v159 = vld [vmem:[%s153 + $0x10] sm:%s146]
                %160 = vst [vmem:[%s154 + $0x10] sm:%s146] %v159
                %v161 = vld [vmem:[%s153 + $0x18] sm:%s146]
                %162 = vst [vmem:[%s154 + $0x18] sm:%s146] %v161
                %v163 = vld [vmem:[%s153 + $0x40] sm:%s146]
                %164 = vst [vmem:[%s154 + $0x20] sm:%s146] %v163
                %v165 = vld [vmem:[%s153 + $0x48] sm:%s146]
                %166 = vst [vmem:[%s154 + $0x28] sm:%s146] %v165
                %v167 = vld [vmem:[%s153 + $0x50] sm:%s146]
                %168 = vst [vmem:[%s154 + $0x30] sm:%s146] %v167
                %v169 = vld [vmem:[%s153 + $0x58] sm:%s146]
                %170 = vst [vmem:[%s154 + $0x38] sm:%s146] %v169
                %v171 = vld [vmem:[%s153 + $0x80] sm:%s146]
                %172 = vst [vmem:[%s154 + $0x40] sm:%s146] %v171
                %v173 = vld [vmem:[%s153 + $0x88] sm:%s146]
                %174 = vst [vmem:[%s154 + $0x48] sm:%s146] %v173
                %v175 = vld [vmem:[%s153 + $0x90] sm:%s146]
                %176 = vst [vmem:[%s154 + $0x50] sm:%s146] %v175
                %v177 = vld [vmem:[%s153 + $0x98] sm:%s146]
                %178 = vst [vmem:[%s154 + $0x58] sm:%s146] %v177
                %v179 = vld [vmem:[%s153 + $0xc0] sm:%s146]
                %180 = vst [vmem:[%s154 + $0x60] sm:%s146] %v179
                %v181 = vld [vmem:[%s153 + $0xc8] sm:%s146]
                %182 = vst [vmem:[%s154 + $0x68] sm:%s146] %v181
                %v183 = vld [vmem:[%s153 + $0xd0] sm:%s146]
                %184 = vst [vmem:[%s154 + $0x70] sm:%s146] %v183
                %v185 = vld [vmem:[%s153 + $0xd8] sm:%s146]
                %186 = vst [vmem:[%s154 + $0x78] sm:%s146] %v185
              $region45: #{triplet_forward.6} parent=39 // loop_footer
                %s152 = sadd.s32 1, %s148
              $region46: #{triplet_forward.6} parent=39 // loop_footer_branch
                %147 = sbr.rel target = $region42
              $region47: #{triplet_forward.6} parent=39 // loop_exit
                _
            $region40: #{triplet_forward.6} parent=31 // pred_fallthru
              _
          $region32: #{triplet_forward.6} parent=27 // pred_fallthru
            _
          %231 = vnop
        $region28: #{triplet_forward.6} parent=23 // pred_fallthru
          _
      $region24: #{triplet_forward.6} parent=5 // pred_fallthru
        _
      %p232 = scmp.le.s32.totalorder 1, %s9
      %p233 = scmp.lt.s32.totalorder %s9, 3
      %p234 = pnand %p232, %p233
      %p235 = pneg %p234
      // Predicated region
      $region63: #{triplet_forward.6} parent=5 // pred_check
        _
      $region64: #{triplet_forward.6} parent=5 // pred_check_branch
        %237 = sbr.rel (%p234) target = $region66
      $region65: #{triplet_forward.6} parent=5 // pred_region
        %s238 = ssub.s32 %s9, 1
        %s239 = sand.u32 %s22, 1
        %s240 = sand.u32 %s22, 1
        %s241 = smul.addr %s240, 128
        %s242 = scalar_lea.vmem [#allocation2], %s241
        // Predicated region
        $region67: #{triplet_forward.6} parent=65 // pred_check
          %p243 = pneg %p35
        $region68: #{triplet_forward.6} parent=65 // pred_check_branch
          %245 = sbr.rel (%p243) target = $region70
        $region69: #{triplet_forward.6} parent=65 // pred_region
          _
        $region70: #{triplet_forward.6} parent=65 // pred_fallthru
          _
        %s246 = sand.u32 %s22, 1
        %s247 = sand.u32 %s22, 1
        %s248 = smul.addr %s247, 128
        %s249 = scalar_lea.vmem [#allocation2], %s248
        %p250 = pneg %p35
        %p251 = pneg %p32
        %p252 = pneg %p56
        %p253 = pneg %p53
        %p254 = pneg %p77
        %p255 = pneg %p74
        %p256 = pneg %p103
        %p257 = pneg %p100
        %s258 = smul.u32 4, %s14
        %p259 = scmp.lt.s32.totalorder %s258, 7
        %s260 = scalar_select %p259, %s258, 7
        %s261 = smul.addr %s260, 4
        %s262 = scalar_lea.vmem %s3, %s261
        %s263 = smul.u32 4, %s14
        %s264 = smul.u32 4, %s14
        %p265 = scmp.lt.s32.totalorder %s264, 7
        %s266 = scalar_select %p265, %s264, 7
        %s267 = smul.addr %s266, 4
        %s268 = scalar_lea.vmem %s3, %s267
        %s269 = smul.u32 4, %s14
        %v270 = vld [vmem:[%s242] sm:$0xff]
        %v271 = vld [vmem:[%s242 + $0x8] sm:$0xff]
        %v272 = vld [vmem:[%s242 + $0x10] sm:$0xff]
        %v273 = vld [vmem:[%s242 + $0x18] sm:$0xff]
        %v274 = vld [vmem:[%s242 + $0x20] sm:$0xff]
        %v275 = vld [vmem:[%s242 + $0x28] sm:$0xff]
        %v276 = vld [vmem:[%s242 + $0x30] sm:$0xff]
        %v277 = vld [vmem:[%s242 + $0x38] sm:$0xff]
        %v278 = vld [vmem:[%s242 + $0x40] sm:$0xff]
        %v279 = vld [vmem:[%s242 + $0x48] sm:$0xff]
        %v280 = vld [vmem:[%s242 + $0x50] sm:$0xff]
        %v281 = vld [vmem:[%s242 + $0x58] sm:$0xff]
        %v282 = vld [vmem:[%s242 + $0x60] sm:$0xff]
        %v283 = vld [vmem:[%s242 + $0x68] sm:$0xff]
        %v284 = vld [vmem:[%s242 + $0x70] sm:$0xff]
        %v285 = vld [vmem:[%s242 + $0x78] sm:$0xff]
        %v286 = vld [vmem:[%s1] sm:$0xf]
        %v287 = vld [vmem:[%s1 + $0x4] sm:$0xf]
        %v288 = vld [vmem:[%s1 + $0x8] sm:$0xf]
        %v289 = vld [vmem:[%s1 + $0xc] sm:$0xf]
        %v290 = vld [vmem:[%s1 + $0x10] sm:$0xf]
        %v291 = vld [vmem:[%s1 + $0x14] sm:$0xf]
        %v292 = vld [vmem:[%s1 + $0x18] sm:$0xf]
        %v293 = vld [vmem:[%s1 + $0x1c] sm:$0xf]
        %v294 = vld [vmem:[%s1 + $0x20] sm:$0xf]
        %v295 = vld [vmem:[%s1 + $0x24] sm:$0xf]
        %v296 = vld [vmem:[%s1 + $0x28] sm:$0xf]
        %v297 = vld [vmem:[%s1 + $0x2c] sm:$0xf]
        %v298 = vld [vmem:[%s1 + $0x30] sm:$0xf]
        %v299 = vld [vmem:[%s1 + $0x34] sm:$0xf]
        %v300 = vld [vmem:[%s1 + $0x38] sm:$0xf]
        %v301 = vld [vmem:[%s1 + $0x3c] sm:$0xf]
        %v302 = vld [vmem:[%s1 + $0x40] sm:$0xf]
        %v303 = vld [vmem:[%s1 + $0x44] sm:$0xf]
        %v304 = vld [vmem:[%s1 + $0x48] sm:$0xf]
        %v305 = vld [vmem:[%s1 + $0x4c] sm:$0xf]
        %v306 = vld [vmem:[%s1 + $0x50] sm:$0xf]
        %v307 = vld [vmem:[%s1 + $0x54] sm:$0xf]
        %v308 = vld [vmem:[%s1 + $0x58] sm:$0xf]
        %v309 = vld [vmem:[%s1 + $0x5c] sm:$0xf]
        %v310 = vld [vmem:[%s1 + $0x60] sm:$0xf]
        %v311 = vld [vmem:[%s1 + $0x64] sm:$0xf]
        %v312 = vld [vmem:[%s1 + $0x68] sm:$0xf]
        %v313 = vld [vmem:[%s1 + $0x6c] sm:$0xf]
        %v314 = vld [vmem:[%s1 + $0x70] sm:$0xf]
        %v315 = vld [vmem:[%s1 + $0x74] sm:$0xf]
        %v316 = vld [vmem:[%s1 + $0x78] sm:$0xf]
        %v317 = vld [vmem:[%s1 + $0x7c] sm:$0xf]
        %v334 = vunpack.c.l.b16 %v270
        %v335 = vunpack.c.h.b16 %v270
        %v336 = vunpack.c.l.b16 %v271
        %v337 = vunpack.c.h.b16 %v271
        %v338 = vunpack.c.l.b16 %v272
        %v339 = vunpack.c.h.b16 %v272
        %v340 = vunpack.c.l.b16 %v273
        %v341 = vunpack.c.h.b16 %v273
        %v342 = vunpack.c.l.b16 %v274
        %v343 = vunpack.c.h.b16 %v274
        %v344 = vunpack.c.l.b16 %v275
        %v345 = vunpack.c.h.b16 %v275
        %v346 = vunpack.c.l.b16 %v276
        %v347 = vunpack.c.h.b16 %v276
        %v348 = vunpack.c.l.b16 %v277
        %v349 = vunpack.c.h.b16 %v277
        %v350 = vunpack.c.l.b16 %v278
        %v351 = vunpack.c.h.b16 %v278
        %v352 = vunpack.c.l.b16 %v279
        %v353 = vunpack.c.h.b16 %v279
        %v354 = vunpack.c.l.b16 %v280
        %v355 = vunpack.c.h.b16 %v280
        %v356 = vunpack.c.l.b16 %v281
        %v357 = vunpack.c.h.b16 %v281
        %v358 = vunpack.c.l.b16 %v282
        %v359 = vunpack.c.h.b16 %v282
        %v360 = vunpack.c.l.b16 %v283
        %v361 = vunpack.c.h.b16 %v283
        %v362 = vunpack.c.l.b16 %v284
        %v363 = vunpack.c.h.b16 %v284
        %v364 = vunpack.c.l.b16 %v285
        %v365 = vunpack.c.h.b16 %v285
        %v366 = vpack.c.b16 %v336, %v334
        %v367 = vpack.c.b16 %v337, %v335
        %v368 = vpack.c.b16 %v340, %v338
        %v369 = vpack.c.b16 %v341, %v339
        %v370 = vpack.c.b16 %v344, %v342
        %v371 = vpack.c.b16 %v345, %v343
        %v372 = vpack.c.b16 %v348, %v346
        %v373 = vpack.c.b16 %v349, %v347
        %v374 = vpack.c.b16 %v352, %v350
        %v375 = vpack.c.b16 %v353, %v351
        %v376 = vpack.c.b16 %v356, %v354
        %v377 = vpack.c.b16 %v357, %v355
        %v378 = vpack.c.b16 %v360, %v358
        %v379 = vpack.c.b16 %v361, %v359
        %v380 = vpack.c.b16 %v364, %v362
        %v381 = vpack.c.b16 %v365, %v363
        %v430 = vunpack.c.l.b16 %v286
        %v431 = vunpack.c.l.b16 %v287
        %v432 = vunpack.c.l.b16 %v288
        %v433 = vunpack.c.l.b16 %v289
        %v434 = vunpack.c.l.b16 %v290
        %v435 = vunpack.c.l.b16 %v291
        %v436 = vunpack.c.l.b16 %v292
        %v437 = vunpack.c.l.b16 %v293
        %v438 = vunpack.c.l.b16 %v294
        %v439 = vunpack.c.l.b16 %v295
        %v440 = vunpack.c.l.b16 %v296
        %v441 = vunpack.c.l.b16 %v297
        %v442 = vunpack.c.l.b16 %v298
        %v443 = vunpack.c.l.b16 %v299
        %v444 = vunpack.c.l.b16 %v300
        %v445 = vunpack.c.l.b16 %v301
        %v446 = vunpack.c.l.b16 %v302
        %v447 = vunpack.c.l.b16 %v303
        %v448 = vunpack.c.l.b16 %v304
        %v449 = vunpack.c.l.b16 %v305
        %v450 = vunpack.c.l.b16 %v306
        %v451 = vunpack.c.l.b16 %v307
        %v452 = vunpack.c.l.b16 %v308
        %v453 = vunpack.c.l.b16 %v309
        %v454 = vunpack.c.l.b16 %v310
        %v455 = vunpack.c.l.b16 %v311
        %v456 = vunpack.c.l.b16 %v312
        %v457 = vunpack.c.l.b16 %v313
        %v458 = vunpack.c.l.b16 %v314
        %v459 = vunpack.c.l.b16 %v315
        %v460 = vunpack.c.l.b16 %v316
        %v461 = vunpack.c.l.b16 %v317
        %v462 = vpack.c.b16 %v431, %v430
        %v463 = vpack.c.b16 %v433, %v432
        %v464 = vpack.c.b16 %v435, %v434
        %v465 = vpack.c.b16 %v437, %v436
        %v466 = vpack.c.b16 %v439, %v438
        %v467 = vpack.c.b16 %v441, %v440
        %v468 = vpack.c.b16 %v443, %v442
        %v469 = vpack.c.b16 %v445, %v444
        %v470 = vpack.c.b16 %v447, %v446
        %v471 = vpack.c.b16 %v449, %v448
        %v472 = vpack.c.b16 %v451, %v450
        %v473 = vpack.c.b16 %v453, %v452
        %v474 = vpack.c.b16 %v455, %v454
        %v475 = vpack.c.b16 %v457, %v456
        %v476 = vpack.c.b16 %v459, %v458
        %v477 = vpack.c.b16 %v461, %v460
        %494 = vmatpush.bf16.msra.mxu0 %v469
        %495 = vmatpush.bf16.msra.mxu0 %v468
        %496 = vmatpush.bf16.msra.mxu0 %v467
        %497 = vmatpush.bf16.msra.mxu0 %v466
        %498 = vmatpush.bf16.msra.mxu0 %v465
        %499 = vmatpush.bf16.msra.mxu0 %v464
        %500 = vmatpush.bf16.msra.mxu0 %v463
        %501 = vmatpush.bf16.msra.mxu0 %v462
        %502 = vmatmul.bf16.gmra.mxu0 %v366
        %v503 = vpop.f32.mrf.mxu0
        %v504 = vadd.f32 0.0, %v503
        %v505 = vpop.f32.mrf.mxu0
        %v506 = vadd.f32 0.0, %v505
        %507 = vmatmul.bf16.gmra.mxu0 %v368
        %v508 = vpop.f32.mrf.mxu0
        %v509 = vadd.f32 0.0, %v508
        %v510 = vpop.f32.mrf.mxu0
        %v511 = vadd.f32 0.0, %v510
        %512 = vmatmul.bf16.gmra.mxu0 %v370
        %v513 = vpop.f32.mrf.mxu0
        %v514 = vadd.f32 0.0, %v513
        %v515 = vpop.f32.mrf.mxu0
        %v516 = vadd.f32 0.0, %v515
        %517 = vmatmul.bf16.gmra.mxu0 %v372
        %v518 = vpop.f32.mrf.mxu0
        %v519 = vadd.f32 0.0, %v518
        %v520 = vpop.f32.mrf.mxu0
        %v521 = vadd.f32 0.0, %v520
        %522 = vmatmul.bf16.gmra.mxu0 %v374
        %v523 = vpop.f32.mrf.mxu0
        %v524 = vadd.f32 0.0, %v523
        %v525 = vpop.f32.mrf.mxu0
        %v526 = vadd.f32 0.0, %v525
        %527 = vmatmul.bf16.gmra.mxu0 %v376
        %v528 = vpop.f32.mrf.mxu0
        %v529 = vadd.f32 0.0, %v528
        %v530 = vpop.f32.mrf.mxu0
        %v531 = vadd.f32 0.0, %v530
        %532 = vmatmul.bf16.gmra.mxu0 %v378
        %v533 = vpop.f32.mrf.mxu0
        %v534 = vadd.f32 0.0, %v533
        %v535 = vpop.f32.mrf.mxu0
        %v536 = vadd.f32 0.0, %v535
        %537 = vmatmul.bf16.gmra.mxu0 %v380
        %v538 = vpop.f32.mrf.mxu0
        %v539 = vadd.f32 0.0, %v538
        %v540 = vpop.f32.mrf.mxu0
        %v541 = vadd.f32 0.0, %v540
        %542 = vdwg.mxu0
        %543 = vmatpush.bf16.msra.mxu0 %v477
        %544 = vmatpush.bf16.msra.mxu0 %v476
        %545 = vmatpush.bf16.msra.mxu0 %v475
        %546 = vmatpush.bf16.msra.mxu0 %v474
        %547 = vmatpush.bf16.msra.mxu0 %v473
        %548 = vmatpush.bf16.msra.mxu0 %v472
        %549 = vmatpush.bf16.msra.mxu0 %v471
        %550 = vmatpush.bf16.msra.mxu0 %v470
        %551 = vmatmul.bf16.gmra.mxu0 %v367
        %v552 = vpop.f32.mrf.mxu0
        %v553 = vadd.f32 %v504, %v552
        %v554 = vpop.f32.mrf.mxu0
        %v555 = vadd.f32 %v506, %v554
        %556 = vmatmul.bf16.gmra.mxu0 %v369
        %v557 = vpop.f32.mrf.mxu0
        %v558 = vadd.f32 %v509, %v557
        %v559 = vpop.f32.mrf.mxu0
        %v560 = vadd.f32 %v511, %v559
        %561 = vmatmul.bf16.gmra.mxu0 %v371
        %v562 = vpop.f32.mrf.mxu0
        %v563 = vadd.f32 %v514, %v562
        %v564 = vpop.f32.mrf.mxu0
        %v565 = vadd.f32 %v516, %v564
        %566 = vmatmul.bf16.gmra.mxu0 %v373
        %v567 = vpop.f32.mrf.mxu0
        %v568 = vadd.f32 %v519, %v567
        %v569 = vpop.f32.mrf.mxu0
        %v570 = vadd.f32 %v521, %v569
        %571 = vmatmul.bf16.gmra.mxu0 %v375
        %v572 = vpop.f32.mrf.mxu0
        %v573 = vadd.f32 %v524, %v572
        %v574 = vpop.f32.mrf.mxu0
        %v575 = vadd.f32 %v526, %v574
        %576 = vmatmul.bf16.gmra.mxu0 %v377
        %v577 = vpop.f32.mrf.mxu0
        %v578 = vadd.f32 %v529, %v577
        %v579 = vpop.f32.mrf.mxu0
        %v580 = vadd.f32 %v531, %v579
        %581 = vmatmul.bf16.gmra.mxu0 %v379
        %v582 = vpop.f32.mrf.mxu0
        %v583 = vadd.f32 %v534, %v582
        %v584 = vpop.f32.mrf.mxu0
        %v585 = vadd.f32 %v536, %v584
        %586 = vmatmul.bf16.gmra.mxu0 %v381
        %v587 = vpop.f32.mrf.mxu0
        %v588 = vadd.f32 %v539, %v587
        %v589 = vpop.f32.mrf.mxu0
        %v590 = vadd.f32 %v541, %v589
        %591 = vdwg.mxu0
        %v592 = vmax.f32 %v553, %v563
        %v593 = vmax.f32 %v555, %v565
        %v594 = vmax.f32 %v558, %v568
        %v595 = vmax.f32 %v560, %v570
        %v596 = vmax.f32 %v573, %v583
        %v597 = vmax.f32 %v575, %v585
        %v598 = vmax.f32 %v578, %v588
        %v599 = vmax.f32 %v580, %v590
        %v600 = vmax.f32 %v592, %v596
        %v601 = vmax.f32 %v593, %v597
        %v602 = vmax.f32 %v594, %v598
        %v603 = vmax.f32 %v595, %v599
        %v604 = vld [vmem:[%s2] sm:$0x1]
        %v606 = vperm.slane %v604, 0
        %v608 = vadd.f32 %v600, %v606
        %v609 = vadd.f32 %v601, %v606
        %v610 = vadd.f32 %v602, %v606
        %v611 = vadd.f32 %v603, %v606
        %v612 = vmax.f32 %v608, 0.0
        %v613 = vmax.f32 %v609, 0.0
        %v614 = vmax.f32 %v610, 0.0
        %v615 = vmax.f32 %v611, 0.0
        %v616 = vpack.c.bf16 %v612, %v612
        %v617 = vpack.c.bf16 %v613, %v613
        %v618 = vpack.c.bf16 %v614, %v614
        %v619 = vpack.c.bf16 %v615, %v615
        %620 = vst [vmem:[%s268] sm:$0xf] %v616
        %621 = vst [vmem:[%s268 + $0x4] sm:$0xf] %v617
        %622 = vst [vmem:[%s268 + $0x8] sm:$0xf] %v618
        %623 = vst [vmem:[%s268 + $0xc] sm:$0xf] %v619
        %s624 = smul.u32 4, %s14
        %p625 = scmp.lt.s32.totalorder %s624, 7
        %s626 = scalar_select %p625, %s624, 7
        %s627 = smul.addr %s626, 4
        %s628 = scalar_lea.vmem %s3, %s627
        // Predicated region
        $region71: #{triplet_forward.6} parent=65 // pred_check
          %p629 = pneg %p100
        $region72: #{triplet_forward.6} parent=65 // pred_check_branch
          %631 = sbr.rel (%p629) target = $region74
        $region73: #{triplet_forward.6} parent=65 // pred_region
          %s632 = smul.u32 4, %s14
        $region74: #{triplet_forward.6} parent=65 // pred_fallthru
          _
      $region66: #{triplet_forward.6} parent=5 // pred_fallthru
        _
      %p633 = scmp.le.s32.totalorder 2, %s9
      // Predicated region
      $region75: #{triplet_forward.6} parent=5 // pred_check
        %p634 = pneg %p633
      $region76: #{triplet_forward.6} parent=5 // pred_check_branch
        %636 = sbr.rel (%p634) target = $region78
      $region77: #{triplet_forward.6} parent=5 // pred_region
        %s637 = ssub.s32 %s9, 2
        // Predicated region
        $region79: #{triplet_forward.6} parent=77 // pred_check
          %p638 = pneg %p106
        $region80: #{triplet_forward.6} parent=77 // pred_check_branch
          %640 = sbr.rel (%p638) target = $region82
        $region81: #{triplet_forward.6} parent=77 // pred_region
          %s641 = smul.u32 4, %s15
          %p642 = scmp.lt.s32.totalorder %s641, 7
          %s643 = scalar_select %p642, %s641, 7
          %s644 = smul.addr %s643, 4
          %s645 = scalar_lea.vmem %s3, %s644
        $region82: #{triplet_forward.6} parent=77 // pred_fallthru
          _
      $region78: #{triplet_forward.6} parent=5 // pred_fallthru
        _
    $region6: #{triplet_forward.6} parent=1 // loop_footer
      %s13 = sadd.s32 1, %s9
    $region7: #{triplet_forward.6} parent=1 // loop_footer_branch
      %8 = sbr.rel target = $region3
    $region8: #{triplet_forward.6} parent=1 // loop_exit
      _

// kernel: triplet_forward.7
$region0: #{triplet_forward.7}
  #allocation0 [shape = 'u32[]', space=smem, size = 0x4, offset = 0x4, fixed_abs, tag = 'smem constant byte address 0x4 - core index']
  #allocation1 [shape = 'u32[72,128]{1,0:T(1,128)}', space=vmem, size = 0x9000, scoped, tag = 'internal scratch']
  %s0 = inlined_call_operand.vmem [shape: bf16[3,2,512], index: 0, kind: input, shape index: {}]
  %s1 = inlined_call_operand.vmem [shape: bf16[512,128], index: 1, kind: input, shape index: {}]
  %s2 = inlined_call_operand.vmem [shape: f32[1,128], index: 2, kind: input, shape index: {}]
  %s3 = inlined_call_operand.vmem [shape: f32[2,2], index: 3, kind: output, shape index: {}]
  %s4 = sld [smem:[#allocation0]]
  $region22: #{triplet_forward.7} parent=0
    _
  %s6 = ssub.s32 1, %s4
  %s7 = scalar_select 0, %s6, %s4
  // Predicated region
  $region2: #{triplet_forward.7} parent=0 // pred_check
    _
  $region3: #{triplet_forward.7} parent=0 // pred_check_branch
    %9 = sbr.rel (0) target = $region5
  $region4: #{triplet_forward.7} parent=0 // pred_region
    _
  $region5: #{triplet_forward.7} parent=0 // pred_fallthru
    _
  // Predicated region
  $region6: #{triplet_forward.7} parent=0 // pred_check
    _
  $region7: #{triplet_forward.7} parent=0 // pred_check_branch
    %11 = sbr.rel (0) target = $region9
  $region8: #{triplet_forward.7} parent=0 // pred_region
    _
  $region9: #{triplet_forward.7} parent=0 // pred_fallthru
    _
  // Predicated region
  $region10: #{triplet_forward.7} parent=0 // pred_check
    _
  $region11: #{triplet_forward.7} parent=0 // pred_check_branch
    %13 = sbr.rel (0) target = $region13
  $region12: #{triplet_forward.7} parent=0 // pred_region
    _
  $region13: #{triplet_forward.7} parent=0 // pred_fallthru
    _
  %v14 = vld [vmem:[%s1] sm:$0xf]
  %v15 = vld [vmem:[%s1 + $0x4] sm:$0xf]
  %v16 = vld [vmem:[%s1 + $0x8] sm:$0xf]
  %v17 = vld [vmem:[%s1 + $0xc] sm:$0xf]
  %v18 = vld [vmem:[%s1 + $0x10] sm:$0xf]
  %v19 = vld [vmem:[%s1 + $0x14] sm:$0xf]
  %v20 = vld [vmem:[%s1 + $0x18] sm:$0xf]
  %v21 = vld [vmem:[%s1 + $0x1c] sm:$0xf]
  %v22 = vld [vmem:[%s1 + $0x20] sm:$0xf]
  %v23 = vld [vmem:[%s1 + $0x24] sm:$0xf]
  %v24 = vld [vmem:[%s1 + $0x28] sm:$0xf]
  %v25 = vld [vmem:[%s1 + $0x2c] sm:$0xf]
  %v26 = vld [vmem:[%s1 + $0x30] sm:$0xf]
  %v27 = vld [vmem:[%s1 + $0x34] sm:$0xf]
  %v28 = vld [vmem:[%s1 + $0x38] sm:$0xf]
  %v29 = vld [vmem:[%s1 + $0x3c] sm:$0xf]
  %v30 = vld [vmem:[%s1 + $0x40] sm:$0xf]
  %v31 = vld [vmem:[%s1 + $0x44] sm:$0xf]
  %v32 = vld [vmem:[%s1 + $0x48] sm:$0xf]
  %v33 = vld [vmem:[%s1 + $0x4c] sm:$0xf]
  %v34 = vld [vmem:[%s1 + $0x50] sm:$0xf]
  %v35 = vld [vmem:[%s1 + $0x54] sm:$0xf]
  %v36 = vld [vmem:[%s1 + $0x58] sm:$0xf]
  %v37 = vld [vmem:[%s1 + $0x5c] sm:$0xf]
  %v38 = vld [vmem:[%s1 + $0x60] sm:$0xf]
  %v39 = vld [vmem:[%s1 + $0x64] sm:$0xf]
  %v40 = vld [vmem:[%s1 + $0x68] sm:$0xf]
  %v41 = vld [vmem:[%s1 + $0x6c] sm:$0xf]
  %v42 = vld [vmem:[%s1 + $0x70] sm:$0xf]
  %v43 = vld [vmem:[%s1 + $0x74] sm:$0xf]
  %v44 = vld [vmem:[%s1 + $0x78] sm:$0xf]
  %v45 = vld [vmem:[%s1 + $0x7c] sm:$0xf]
  %v46 = vld [vmem:[%s1 + $0x80] sm:$0xf]
  %v47 = vld [vmem:[%s1 + $0x84] sm:$0xf]
  %v48 = vld [vmem:[%s1 + $0x88] sm:$0xf]
  %v49 = vld [vmem:[%s1 + $0x8c] sm:$0xf]
  %v50 = vld [vmem:[%s1 + $0x90] sm:$0xf]
  %v51 = vld [vmem:[%s1 + $0x94] sm:$0xf]
  %v52 = vld [vmem:[%s1 + $0x98] sm:$0xf]
  %v53 = vld [vmem:[%s1 + $0x9c] sm:$0xf]
  %v54 = vld [vmem:[%s1 + $0xa0] sm:$0xf]
  %v55 = vld [vmem:[%s1 + $0xa4] sm:$0xf]
  %v56 = vld [vmem:[%s1 + $0xa8] sm:$0xf]
  %v57 = vld [vmem:[%s1 + $0xac] sm:$0xf]
  %v58 = vld [vmem:[%s1 + $0xb0] sm:$0xf]
  %v59 = vld [vmem:[%s1 + $0xb4] sm:$0xf]
  %v60 = vld [vmem:[%s1 + $0xb8] sm:$0xf]
  %v61 = vld [vmem:[%s1 + $0xbc] sm:$0xf]
  %v62 = vld [vmem:[%s1 + $0xc0] sm:$0xf]
  %v63 = vld [vmem:[%s1 + $0xc4] sm:$0xf]
  %v64 = vld [vmem:[%s1 + $0xc8] sm:$0xf]
  %v65 = vld [vmem:[%s1 + $0xcc] sm:$0xf]
  %v66 = vld [vmem:[%s1 + $0xd0] sm:$0xf]
  %v67 = vld [vmem:[%s1 + $0xd4] sm:$0xf]
  %v68 = vld [vmem:[%s1 + $0xd8] sm:$0xf]
  %v69 = vld [vmem:[%s1 + $0xdc] sm:$0xf]
  %v70 = vld [vmem:[%s1 + $0xe0] sm:$0xf]
  %v71 = vld [vmem:[%s1 + $0xe4] sm:$0xf]
  %v72 = vld [vmem:[%s1 + $0xe8] sm:$0xf]
  %v73 = vld [vmem:[%s1 + $0xec] sm:$0xf]
  %v74 = vld [vmem:[%s1 + $0xf0] sm:$0xf]
  %v75 = vld [vmem:[%s1 + $0xf4] sm:$0xf]
  %v76 = vld [vmem:[%s1 + $0xf8] sm:$0xf]
  %v77 = vld [vmem:[%s1 + $0xfc] sm:$0xf]
  %v78 = vld [vmem:[%s2] sm:$0x1]
  %v79 = vld [vmem:[%s0] sm:$0xf]
  %v81 = vperm.slane %v78, 0
  %84 = vst [vmem:[#allocation1] ss:$9 sm:$0xff] %v79
  %v85 = vld [vmem:[#allocation1] sm:$0xff]
  %v86 = vld [vmem:[#allocation1 + $0x9] sm:$0xff]
  %v87 = vld [vmem:[#allocation1 + $0x12] sm:$0xff]
  %v88 = vld [vmem:[#allocation1 + $0x1b] sm:$0xff]
  %v157 = vunpack.c.l.b16 %v14
  %v158 = vunpack.c.l.b16 %v15
  %v159 = vunpack.c.l.b16 %v16
  %v160 = vunpack.c.l.b16 %v17
  %v161 = vunpack.c.l.b16 %v18
  %v162 = vunpack.c.l.b16 %v19
  %v163 = vunpack.c.l.b16 %v20
  %v164 = vunpack.c.l.b16 %v21
  %v165 = vunpack.c.l.b16 %v22
  %v166 = vunpack.c.l.b16 %v23
  %v167 = vunpack.c.l.b16 %v24
  %v168 = vunpack.c.l.b16 %v25
  %v169 = vunpack.c.l.b16 %v26
  %v170 = vunpack.c.l.b16 %v27
  %v171 = vunpack.c.l.b16 %v28
  %v172 = vunpack.c.l.b16 %v29
  %v173 = vunpack.c.l.b16 %v30
  %v174 = vunpack.c.l.b16 %v31
  %v175 = vunpack.c.l.b16 %v32
  %v176 = vunpack.c.l.b16 %v33
  %v177 = vunpack.c.l.b16 %v34
  %v178 = vunpack.c.l.b16 %v35
  %v179 = vunpack.c.l.b16 %v36
  %v180 = vunpack.c.l.b16 %v37
  %v181 = vunpack.c.l.b16 %v38
  %v182 = vunpack.c.l.b16 %v39
  %v183 = vunpack.c.l.b16 %v40
  %v184 = vunpack.c.l.b16 %v41
  %v185 = vunpack.c.l.b16 %v42
  %v186 = vunpack.c.l.b16 %v43
  %v187 = vunpack.c.l.b16 %v44
  %v188 = vunpack.c.l.b16 %v45
  %v189 = vunpack.c.l.b16 %v46
  %v190 = vunpack.c.l.b16 %v47
  %v191 = vunpack.c.l.b16 %v48
  %v192 = vunpack.c.l.b16 %v49
  %v193 = vunpack.c.l.b16 %v50
  %v194 = vunpack.c.l.b16 %v51
  %v195 = vunpack.c.l.b16 %v52
  %v196 = vunpack.c.l.b16 %v53
  %v197 = vunpack.c.l.b16 %v54
  %v198 = vunpack.c.l.b16 %v55
  %v199 = vunpack.c.l.b16 %v56
  %v200 = vunpack.c.l.b16 %v57
  %v201 = vunpack.c.l.b16 %v58
  %v202 = vunpack.c.l.b16 %v59
  %v203 = vunpack.c.l.b16 %v60
  %v204 = vunpack.c.l.b16 %v61
  %v205 = vunpack.c.l.b16 %v62
  %v206 = vunpack.c.l.b16 %v63
  %v207 = vunpack.c.l.b16 %v64
  %v208 = vunpack.c.l.b16 %v65
  %v209 = vunpack.c.l.b16 %v66
  %v210 = vunpack.c.l.b16 %v67
  %v211 = vunpack.c.l.b16 %v68
  %v212 = vunpack.c.l.b16 %v69
  %v213 = vunpack.c.l.b16 %v70
  %v214 = vunpack.c.l.b16 %v71
  %v215 = vunpack.c.l.b16 %v72
  %v216 = vunpack.c.l.b16 %v73
  %v217 = vunpack.c.l.b16 %v74
  %v218 = vunpack.c.l.b16 %v75
  %v219 = vunpack.c.l.b16 %v76
  %v220 = vunpack.c.l.b16 %v77
  %v221 = vpack.c.b16 %v158, %v157
  %v222 = vpack.c.b16 %v160, %v159
  %v223 = vpack.c.b16 %v162, %v161
  %v224 = vpack.c.b16 %v164, %v163
  %v225 = vpack.c.b16 %v166, %v165
  %v226 = vpack.c.b16 %v168, %v167
  %v227 = vpack.c.b16 %v170, %v169
  %v228 = vpack.c.b16 %v172, %v171
  %v229 = vpack.c.b16 %v174, %v173
  %v230 = vpack.c.b16 %v176, %v175
  %v231 = vpack.c.b16 %v178, %v177
  %v232 = vpack.c.b16 %v180, %v179
  %v233 = vpack.c.b16 %v182, %v181
  %v234 = vpack.c.b16 %v184, %v183
  %v235 = vpack.c.b16 %v186, %v185
  %v236 = vpack.c.b16 %v188, %v187
  %v237 = vpack.c.b16 %v190, %v189
  %v238 = vpack.c.b16 %v192, %v191
  %v239 = vpack.c.b16 %v194, %v193
  %v240 = vpack.c.b16 %v196, %v195
  %v241 = vpack.c.b16 %v198, %v197
  %v242 = vpack.c.b16 %v200, %v199
  %v243 = vpack.c.b16 %v202, %v201
  %v244 = vpack.c.b16 %v204, %v203
  %v245 = vpack.c.b16 %v206, %v205
  %v246 = vpack.c.b16 %v208, %v207
  %v247 = vpack.c.b16 %v210, %v209
  %v248 = vpack.c.b16 %v212, %v211
  %v249 = vpack.c.b16 %v214, %v213
  %v250 = vpack.c.b16 %v216, %v215
  %v251 = vpack.c.b16 %v218, %v217
  %v252 = vpack.c.b16 %v220, %v219
  %285 = vmatpush.bf16.msra.mxu0 %v228
  %286 = vmatpush.bf16.msra.mxu0 %v227
  %287 = vmatpush.bf16.msra.mxu0 %v226
  %288 = vmatpush.bf16.msra.mxu0 %v225
  %289 = vmatpush.bf16.msra.mxu0 %v224
  %290 = vmatpush.bf16.msra.mxu0 %v223
  %291 = vmatpush.bf16.msra.mxu0 %v222
  %292 = vmatpush.bf16.msra.mxu0 %v221
  %293 = vmatmul.bf16.gmra.mxu0 %v85
  %v294 = vpop.f32.mrf.mxu0
  %v295 = vadd.f32 %v81, %v294
  %v296 = vpop.f32.mrf.mxu0
  %297 = vdwg.mxu0
  %298 = vmatpush.bf16.msra.mxu0 %v236
  %299 = vmatpush.bf16.msra.mxu0 %v235
  %300 = vmatpush.bf16.msra.mxu0 %v234
  %301 = vmatpush.bf16.msra.mxu0 %v233
  %302 = vmatpush.bf16.msra.mxu0 %v232
  %303 = vmatpush.bf16.msra.mxu0 %v231
  %304 = vmatpush.bf16.msra.mxu0 %v230
  %305 = vmatpush.bf16.msra.mxu0 %v229
  %306 = vmatmul.bf16.gmra.mxu0 %v86
  %v307 = vpop.f32.mrf.mxu0
  %v308 = vadd.f32 %v295, %v307
  %v309 = vpop.f32.mrf.mxu0
  %310 = vdwg.mxu0
  %311 = vmatpush.bf16.msra.mxu0 %v244
  %312 = vmatpush.bf16.msra.mxu0 %v243
  %313 = vmatpush.bf16.msra.mxu0 %v242
  %314 = vmatpush.bf16.msra.mxu0 %v241
  %315 = vmatpush.bf16.msra.mxu0 %v240
  %316 = vmatpush.bf16.msra.mxu0 %v239
  %317 = vmatpush.bf16.msra.mxu0 %v238
  %318 = vmatpush.bf16.msra.mxu0 %v237
  %319 = vmatmul.bf16.gmra.mxu0 %v87
  %v320 = vpop.f32.mrf.mxu0
  %v321 = vadd.f32 %v308, %v320
  %v322 = vpop.f32.mrf.mxu0
  %323 = vdwg.mxu0
  %324 = vmatpush.bf16.msra.mxu0 %v252
  %325 = vmatpush.bf16.msra.mxu0 %v251
  %326 = vmatpush.bf16.msra.mxu0 %v250
  %327 = vmatpush.bf16.msra.mxu0 %v249
  %328 = vmatpush.bf16.msra.mxu0 %v248
  %329 = vmatpush.bf16.msra.mxu0 %v247
  %330 = vmatpush.bf16.msra.mxu0 %v246
  %331 = vmatpush.bf16.msra.mxu0 %v245
  %332 = vmatmul.bf16.gmra.mxu0 %v88
  %v333 = vpop.f32.mrf.mxu0
  %v334 = vadd.f32 %v321, %v333
  %v335 = vpop.f32.mrf.mxu0
  %336 = vdwg.mxu0
  %s337 = scalar_lea.vmem %s0, 4
  %v338 = vld [vmem:[%s337] sm:$0xf]
  %340 = vst [vmem:[#allocation1] ss:$9 sm:$0xff] %v338
  %v341 = vld [vmem:[#allocation1] sm:$0xff]
  %v342 = vld [vmem:[#allocation1 + $0x9] sm:$0xff]
  %v343 = vld [vmem:[#allocation1 + $0x12] sm:$0xff]
  %v344 = vld [vmem:[#allocation1 + $0x1b] sm:$0xff]
  %349 = vmatpush.bf16.msra.mxu0 %v228
  %350 = vmatpush.bf16.msra.mxu0 %v227
  %351 = vmatpush.bf16.msra.mxu0 %v226
  %352 = vmatpush.bf16.msra.mxu0 %v225
  %353 = vmatpush.bf16.msra.mxu0 %v224
  %354 = vmatpush.bf16.msra.mxu0 %v223
  %355 = vmatpush.bf16.msra.mxu0 %v222
  %356 = vmatpush.bf16.msra.mxu0 %v221
  %357 = vmatmul.bf16.gmra.mxu0 %v341
  %v358 = vpop.f32.mrf.mxu0
  %v359 = vadd.f32 %v81, %v358
  %v360 = vpop.f32.mrf.mxu0
  %361 = vdwg.mxu0
  %362 = vmatpush.bf16.msra.mxu0 %v236
  %363 = vmatpush.bf16.msra.mxu0 %v235
  %364 = vmatpush.bf16.msra.mxu0 %v234
  %365 = vmatpush.bf16.msra.mxu0 %v233
  %366 = vmatpush.bf16.msra.mxu0 %v232
  %367 = vmatpush.bf16.msra.mxu0 %v231
  %368 = vmatpush.bf16.msra.mxu0 %v230
  %369 = vmatpush.bf16.msra.mxu0 %v229
  %370 = vmatmul.bf16.gmra.mxu0 %v342
  %v371 = vpop.f32.mrf.mxu0
  %v372 = vadd.f32 %v359, %v371
  %v373 = vpop.f32.mrf.mxu0
  %374 = vdwg.mxu0
  %375 = vmatpush.bf16.msra.mxu0 %v244
  %376 = vmatpush.bf16.msra.mxu0 %v243
  %377 = vmatpush.bf16.msra.mxu0 %v242
  %378 = vmatpush.bf16.msra.mxu0 %v241
  %379 = vmatpush.bf16.msra.mxu0 %v240
  %380 = vmatpush.bf16.msra.mxu0 %v239
  %381 = vmatpush.bf16.msra.mxu0 %v238
  %382 = vmatpush.bf16.msra.mxu0 %v237
  %383 = vmatmul.bf16.gmra.mxu0 %v343
  %v384 = vpop.f32.mrf.mxu0
  %v385 = vadd.f32 %v372, %v384
  %v386 = vpop.f32.mrf.mxu0
  %387 = vdwg.mxu0
  %388 = vmatpush.bf16.msra.mxu0 %v252
  %389 = vmatpush.bf16.msra.mxu0 %v251
  %390 = vmatpush.bf16.msra.mxu0 %v250
  %391 = vmatpush.bf16.msra.mxu0 %v249
  %392 = vmatpush.bf16.msra.mxu0 %v248
  %393 = vmatpush.bf16.msra.mxu0 %v247
  %394 = vmatpush.bf16.msra.mxu0 %v246
  %395 = vmatpush.bf16.msra.mxu0 %v245
  %396 = vmatmul.bf16.gmra.mxu0 %v344
  %v397 = vpop.f32.mrf.mxu0
  %v398 = vadd.f32 %v385, %v397
  %v399 = vpop.f32.mrf.mxu0
  %400 = vdwg.mxu0
  %s401 = scalar_lea.vmem %s0, 8
  %v402 = vld [vmem:[%s401] sm:$0xf]
  %404 = vst [vmem:[#allocation1] ss:$9 sm:$0xff] %v402
  %v405 = vld [vmem:[#allocation1] sm:$0xff]
  %v406 = vld [vmem:[#allocation1 + $0x9] sm:$0xff]
  %v407 = vld [vmem:[#allocation1 + $0x12] sm:$0xff]
  %v408 = vld [vmem:[#allocation1 + $0x1b] sm:$0xff]
  %413 = vmatpush.bf16.msra.mxu0 %v228
  %414 = vmatpush.bf16.msra.mxu0 %v227
  %415 = vmatpush.bf16.msra.mxu0 %v226
  %416 = vmatpush.bf16.msra.mxu0 %v225
  %417 = vmatpush.bf16.msra.mxu0 %v224
  %418 = vmatpush.bf16.msra.mxu0 %v223
  %419 = vmatpush.bf16.msra.mxu0 %v222
  %420 = vmatpush.bf16.msra.mxu0 %v221
  %421 = vmatmul.bf16.gmra.mxu0 %v405
  %v422 = vpop.f32.mrf.mxu0
  %v423 = vadd.f32 %v81, %v422
  %v424 = vpop.f32.mrf.mxu0
  %425 = vdwg.mxu0
  %426 = vmatpush.bf16.msra.mxu0 %v236
  %427 = vmatpush.bf16.msra.mxu0 %v235
  %428 = vmatpush.bf16.msra.mxu0 %v234
  %429 = vmatpush.bf16.msra.mxu0 %v233
  %430 = vmatpush.bf16.msra.mxu0 %v232
  %431 = vmatpush.bf16.msra.mxu0 %v231
  %432 = vmatpush.bf16.msra.mxu0 %v230
  %433 = vmatpush.bf16.msra.mxu0 %v229
  %434 = vmatmul.bf16.gmra.mxu0 %v406
  %v435 = vpop.f32.mrf.mxu0
  %v436 = vadd.f32 %v423, %v435
  %v437 = vpop.f32.mrf.mxu0
  %438 = vdwg.mxu0
  %439 = vmatpush.bf16.msra.mxu0 %v244
  %440 = vmatpush.bf16.msra.mxu0 %v243
  %441 = vmatpush.bf16.msra.mxu0 %v242
  %442 = vmatpush.bf16.msra.mxu0 %v241
  %443 = vmatpush.bf16.msra.mxu0 %v240
  %444 = vmatpush.bf16.msra.mxu0 %v239
  %445 = vmatpush.bf16.msra.mxu0 %v238
  %446 = vmatpush.bf16.msra.mxu0 %v237
  %447 = vmatmul.bf16.gmra.mxu0 %v407
  %v448 = vpop.f32.mrf.mxu0
  %v449 = vadd.f32 %v436, %v448
  %v450 = vpop.f32.mrf.mxu0
  %451 = vdwg.mxu0
  %452 = vmatpush.bf16.msra.mxu0 %v252
  %453 = vmatpush.bf16.msra.mxu0 %v251
  %454 = vmatpush.bf16.msra.mxu0 %v250
  %455 = vmatpush.bf16.msra.mxu0 %v249
  %456 = vmatpush.bf16.msra.mxu0 %v248
  %457 = vmatpush.bf16.msra.mxu0 %v247
  %458 = vmatpush.bf16.msra.mxu0 %v246
  %459 = vmatpush.bf16.msra.mxu0 %v245
  %460 = vmatmul.bf16.gmra.mxu0 %v408
  %v461 = vpop.f32.mrf.mxu0
  %v462 = vadd.f32 %v449, %v461
  %v463 = vpop.f32.mrf.mxu0
  %464 = vdwg.mxu0
  %v465 = vsub.f32 %v334, %v398
  %v466 = vsub.f32 %v334, %v462
  %v467 = vmul.f32 %v465, %v465
  %vm468 = vcmask 1041408
  %v469 = vsel %vm468, %v467, 0.0
  %470 = vadd.xlane.f32.xlu0 %v469
  %v471 = vpop.xlane.xlu0 %470
  %v472 = vrsqrt.pop %v471
  %v473 = vmul.f32 %v472, %v471
  %v474 = vmul.f32 %v473, %v472
  %v475 = vmul.f32 0.5, %v474
  %v476 = vsub.f32 1.5, %v475
  %v477 = vmul.f32 %v472, %v476
  %v478 = vmul.f32 %v471, %v477
  %vm479 = vcmp.eq.f32.partialorder %v471, inf
  %v480 = vsel %vm479, %v471, %v478
  %vm481 = vcmp.eq.f32.partialorder %v471, 0.0
  %v482 = vand.u32 %v471, 2147483648
  %v483 = vsel %vm481, %v482, %v480
  %vm484 = vcmask 1024
  %485 = vst.msk [vmem:[%s3] sm:$0x3] %vm484, %v483
  %v486 = vmul.f32 %v466, %v466
  %v487 = vsel %vm468, %v486, 0.0
  %488 = vadd.xlane.f32.xlu0 %v487
  %v489 = vpop.xlane.xlu0 %488
  %v490 = vrsqrt.pop %v489
  %v491 = vmul.f32 %v490, %v489
  %v492 = vmul.f32 %v491, %v490
  %v493 = vmul.f32 0.5, %v492
  %v494 = vsub.f32 1.5, %v493
  %v495 = vmul.f32 %v490, %v494
  %v496 = vmul.f32 %v489, %v495
  %vm497 = vcmp.eq.f32.partialorder %v489, inf
  %v498 = vsel %vm497, %v489, %v496
  %vm499 = vcmp.eq.f32.partialorder %v489, 0.0
  %v500 = vand.u32 %v489, 2147483648
  %v501 = vsel %vm499, %v500, %v498
  %vm502 = vcmask 9224
  %503 = vst.msk [vmem:[%s3] sm:$0x3] %vm502, %v501
  // Predicated region
  $region14: #{triplet_forward.7} parent=0 // pred_check
    _
  $region15: #{triplet_forward.7} parent=0 // pred_check_branch
    %505 = sbr.rel (0) target = $region17
  $region16: #{triplet_forward.7} parent=0 // pred_region
    _
  $region17: #{triplet_forward.7} parent=0 // pred_fallthru
    _
  // Predicated region
  $region18: #{triplet_forward.7} parent=0 // pred_check
    _
  $region19: #{triplet_forward.7} parent=0 // pred_check_branch
    %507 = sbr.rel (0) target = $region21
  $region20: #{triplet_forward.7} parent=0 // pred_region
    _
  $region21: #{triplet_forward.7} parent=0 // pred_fallthru
    _

</llo_original>
